<compile_context>
chip_gen: v6e
topology: v6e:2x2x1
jax: 0.10.0
libtpu: 0.0.40
codegen_flags: <defaults>
</compile_context>

<pallas_src>
import functools

import jax
import jax.numpy as jnp
from jax import lax
from jax.experimental import pallas as pl
from jax.experimental.pallas import tpu as pltpu


# ---------------------------------------------------------------------------
# Model hyper-parameters (small demo shapes, consistent with the module:
# nb_layers=8, skip at nb_layers // 2; torch defaults are hid=256, emb=84).
# ---------------------------------------------------------------------------
NB_LAYERS = 8
HID_DIMS = 32          # hid_dims (small for the demo)
EMB_DIMS = 16          # emb_dims (small for the demo)
SKIP = NB_LAYERS // 2  # skip layer index (concat [x, embeds] before fc4)
OUT_DIMS = 3

# dot_general dimension_numbers contracting dim 1 of both operands:
#   (HID, EMB) x (TN, EMB) -> (HID, TN)    (Mosaic absorbs the rhs transpose)
_DN_TRANS_RHS = (((1,), (1,)), ((), ()))


def _nelf_kernel(emb_ref, w0_ref, wmid_ref, w4x_ref, w4e_ref, b_ref,
                 wc_ref, bc_ref, out_ref, *, compute_dtype, approx_sigmoid):
    """One batch tile of the NeLF MLP, feature-on-sublane / batch-on-lane.

    emb_ref : (TN, EMB_DIMS) f32          embeddings tile (row layout, as stored)
    w0_ref  : (HID, EMB_DIMS) f32         fc0 weight (torch (out, in) layout)
    wmid_ref: (NB_LAYERS-2, HID, HID) f32 fc1..fc7 weights except fc{SKIP}
    w4x_ref : (HID, HID) f32              fc{SKIP} weight, hidden-input part
    w4e_ref : (HID, EMB_DIMS) f32         fc{SKIP} weight, embed-input part
    b_ref   : (NB_LAYERS, HID, 1) f32     biases of fc0..fc{NB_LAYERS-1}
    wc_ref  : (OUT_DIMS, HID) f32         color_out weight
    bc_ref  : (OUT_DIMS, 1) f32           color_out bias
    out_ref : (OUT_DIMS, TN) f32          sigmoid(colors) tile (lane-dense)
    """
    cdt = compute_dtype
    emb = emb_ref[...].astype(cdt)                         # (TN, EMB)

    # fc0: W0 (HID, EMB) contracted with emb (TN, EMB) over EMB -> (HID, TN)
    h = lax.dot_general(w0_ref[...].astype(cdt), emb, _DN_TRANS_RHS,
                        preferred_element_type=jnp.float32)
    x = jnp.maximum(h + b_ref[0], 0.0).astype(cdt)         # (HID, TN)

    mid = 0
    for i in range(1, NB_LAYERS):
        if i == SKIP:
            # torch: x = fc_i(cat([x, embeds], dim=1))
            #      -> W[:, :HID] @ x + W[:, HID:] @ embeds + b
            y = jnp.dot(w4x_ref[...].astype(cdt), x,
                        preferred_element_type=jnp.float32)
            y = y + lax.dot_general(w4e_ref[...].astype(cdt), emb,
                                    _DN_TRANS_RHS,
                                    preferred_element_type=jnp.float32)
        else:
            y = jnp.dot(wmid_ref[mid].astype(cdt), x,
                        preferred_element_type=jnp.float32)
            mid += 1
        x = jnp.maximum(y + b_ref[i], 0.0).astype(cdt)

    colors = jnp.dot(wc_ref[...].astype(cdt), x,
                     preferred_element_type=jnp.float32)
    colors = colors + bc_ref[...]                          # (3, TN) f32
    if approx_sigmoid:
        # 1 / (1 + exp(-x)) with the divide on the EUP slot (free-ish).
        sig = pl.reciprocal(1.0 + jnp.exp(-colors), approx=True)
    else:
        sig = jax.nn.sigmoid(colors)
    out_ref[...] = sig.astype(out_ref.dtype)


@functools.partial(jax.jit, static_argnames=("tile_n", "compute_dtype"))
def nelf_forward(embeds, params, *, tile_n=1024, compute_dtype=jnp.bfloat16):
    """Pallas forward. embeds: (N, EMB_DIMS) float32 -> colors (N, 3) float32.

    tile_n must be a multiple of 128.  N need not be a multiple of tile_n:
    the last grid step runs on a partial block (OOB columns are discarded by
    the masked output store).  compute_dtype: jnp.bfloat16 (default, MXU-native
    on v5e/v6e/v7x) or jnp.float32; accumulation is always float32.
    """
    n, e = embeds.shape
    assert e == EMB_DIMS
    assert tile_n % 128 == 0
    # Don't use a tile far larger than N (keeps small-N calls cheap).
    tile_n = min(tile_n, max(128, pl.cdiv(n, 128) * 128))
    w0, wmid, w4x, w4e, b, wc, bc = params

    grid = (pl.cdiv(n, tile_n),)
    full = lambda *shape: pl.BlockSpec(shape, lambda i: (0,) * len(shape))

    kernel = functools.partial(
        _nelf_kernel,
        compute_dtype=compute_dtype,
        approx_sigmoid=(compute_dtype == jnp.bfloat16))

    out_t = pl.pallas_call(
        kernel,
        out_shape=jax.ShapeDtypeStruct((OUT_DIMS, n), jnp.float32),
        grid_spec=pltpu.PrefetchScalarGridSpec(
            num_scalar_prefetch=0,
            grid=grid,
            in_specs=[
                pl.BlockSpec((tile_n, EMB_DIMS), lambda i: (i, 0)),  # embeds
                full(HID_DIMS, EMB_DIMS),                            # w0
                full(NB_LAYERS - 2, HID_DIMS, HID_DIMS),             # wmid
                full(HID_DIMS, HID_DIMS),                            # w4x
                full(HID_DIMS, EMB_DIMS),                            # w4e
                full(NB_LAYERS, HID_DIMS, 1),                        # biases
                full(OUT_DIMS, HID_DIMS),                            # wc
                full(OUT_DIMS, 1),                                   # bc
            ],
            out_specs=pl.BlockSpec((OUT_DIMS, tile_n), lambda i: (0, i)),
        ),
        compiler_params=pltpu.CompilerParams(
            dimension_semantics=("parallel",)),
    )(embeds, w0, wmid, w4x, w4e, b, wc, bc)

    return out_t.T                                         # back to (N, 3)


def init_params(key):
    """Deterministic synthetic parameters in torch nn.Linear (out, in) layout."""
    keys = jax.random.split(key, 2 * NB_LAYERS + 2)

    def lin(kw, kb, fan_in, fan_out):
        bound = 1.0 / jnp.sqrt(fan_in)
        w = jax.random.uniform(kw, (fan_out, fan_in), jnp.float32,
                               -bound, bound)
        bias = jax.random.uniform(kb, (fan_out,), jnp.float32, -bound, bound)
        return w, bias

    w0, b0 = lin(keys[0], keys[1], EMB_DIMS, HID_DIMS)
    wmid_list, biases = [], [b0]
    w4x = w4e = None
    k = 2
    for i in range(1, NB_LAYERS):
        if i == SKIP:
            w, bi = lin(keys[k], keys[k + 1], HID_DIMS + EMB_DIMS, HID_DIMS)
            w4x, w4e = w[:, :HID_DIMS], w[:, HID_DIMS:]
        else:
            w, bi = lin(keys[k], keys[k + 1], HID_DIMS, HID_DIMS)
            wmid_list.append(w)
        biases.append(bi)
        k += 2
    wc, bc = lin(keys[k], keys[k + 1], HID_DIMS, OUT_DIMS)

    wmid = jnp.stack(wmid_list, axis=0)            # (NB_LAYERS-2, HID, HID)
    b = jnp.stack(biases, axis=0)[..., None]       # (NB_LAYERS, HID, 1)
    bc = bc[:, None]                               # (3, 1)
    return (w0, wmid, w4x, w4e, b, wc, bc)


def reference_forward(embeds, params):
    """Pure-JAX reference matching the torch forward semantics (row layout)."""
    w0, wmid, w4x, w4e, b, wc, bc = params
    x = jax.nn.relu(embeds @ w0.T + b[0, :, 0])
    mid = 0
    for i in range(1, NB_LAYERS):
        if i == SKIP:
            x = jax.nn.relu(x @ w4x.T + embeds @ w4e.T + b[i, :, 0])
        else:
            x = jax.nn.relu(x @ wmid[mid].T + b[i, :, 0])
            mid += 1
    return jax.nn.sigmoid(x @ wc.T + bc[:, 0])


if __name__ == "__main__":
    key = jax.random.PRNGKey(0)
    k_param, k_emb = jax.random.split(key)

    params = init_params(k_param)
    n = 2048                                   # 2 grid steps at tile_n=1024
    embeds = jax.random.normal(k_emb, (n, EMB_DIMS), jnp.float32)

    ref = reference_forward(embeds, params)

    # Default path: bf16 MXU inputs (all generations), f32 accumulation,
    # tile_n=1024 -> 2 "parallel" steps (keeps both v7x TensorCores busy).
    colors = jax.block_until_ready(nelf_forward(embeds, params))
    assert colors.shape == (n, OUT_DIMS)
    assert jnp.allclose(colors, ref, atol=3e-2, rtol=3e-2)

    # f32 compute path (exact sigmoid); smaller tile keeps the f32 activation
    # chain inside the vreg budget.
    colors_f32 = jax.block_until_ready(
        nelf_forward(embeds, params, tile_n=512, compute_dtype=jnp.float32))
    assert jnp.allclose(colors_f32, ref, atol=1e-5, rtol=1e-5)

    # Ragged N exercises the partial-last-block path (no wrapper pad/slice).
    colors_ragged = jax.block_until_ready(
        nelf_forward(embeds[: n - 100], params))
    assert colors_ragged.shape == (n - 100, OUT_DIMS)
    assert jnp.allclose(colors_ragged, ref[: n - 100], atol=3e-2, rtol=3e-2)

    print("KERNEL_OK")
</pallas_src>

<mosaic_0001>
module attributes {stable_mosaic.version = 11 : i64} {
  func.func @_nelf_kernel(%arg0: i32, %arg1: memref<1024x16xf32, #tpu.memory_space<vmem>>, %arg2: memref<32x16xf32, #tpu.memory_space<vmem>>, %arg3: memref<6x32x32xf32, #tpu.memory_space<vmem>>, %arg4: memref<32x32xf32, #tpu.memory_space<vmem>>, %arg5: memref<32x16xf32, #tpu.memory_space<vmem>>, %arg6: memref<8x32x1xf32, #tpu.memory_space<vmem>>, %arg7: memref<3x32xf32, #tpu.memory_space<vmem>>, %arg8: memref<3x1xf32, #tpu.memory_space<vmem>>, %arg9: memref<3x1024xf32, #tpu.memory_space<vmem>>) attributes {dimension_semantics = [#tpu.dimension_semantics<parallel>], iteration_bounds = array<i64: 2>, scalar_prefetch = 0 : i64, scratch_operands = 0 : i64, tpu.core_type = #tpu.core_type<tc>, window_params = [{transform_indices = @transform_0, window_bounds = array<i64: 1024, 16>}, {pipeline_mode = #tpu.pipeline_mode<synchronous>, transform_indices = @transform_1, window_bounds = array<i64: 32, 16>}, {pipeline_mode = #tpu.pipeline_mode<synchronous>, transform_indices = @transform_2, window_bounds = array<i64: 6, 32, 32>}, {pipeline_mode = #tpu.pipeline_mode<synchronous>, transform_indices = @transform_3, window_bounds = array<i64: 32, 32>}, {pipeline_mode = #tpu.pipeline_mode<synchronous>, transform_indices = @transform_4, window_bounds = array<i64: 32, 16>}, {pipeline_mode = #tpu.pipeline_mode<synchronous>, transform_indices = @transform_5, window_bounds = array<i64: 8, 32, 1>}, {pipeline_mode = #tpu.pipeline_mode<synchronous>, transform_indices = @transform_6, window_bounds = array<i64: 3, 32>}, {pipeline_mode = #tpu.pipeline_mode<synchronous>, transform_indices = @transform_7, window_bounds = array<i64: 3, 1>}, {transform_indices = @transform_8, window_bounds = array<i64: 3, 1024>}]} {
    %c0 = arith.constant 0 : index
    %c0_0 = arith.constant 0 : index
    %0 = vector.load %arg1[%c0, %c0_0] : memref<1024x16xf32, #tpu.memory_space<vmem>>, vector<1024x16xf32>
    %1 = arith.truncf %0 : vector<1024x16xf32> to vector<1024x16xbf16>
    %c0_1 = arith.constant 0 : index
    %c0_2 = arith.constant 0 : index
    %2 = vector.load %arg2[%c0_1, %c0_2] : memref<32x16xf32, #tpu.memory_space<vmem>>, vector<32x16xf32>
    %3 = arith.truncf %2 : vector<32x16xf32> to vector<32x16xbf16>
    %cst = arith.constant dense<0.000000e+00> : vector<32x1024xf32>
    %4 = tpu.matmul %3, %1, %cst {dimension_numbers = #tpu.dot_dimension_numbers<[1], [1], [0], [0], [0, 0, 1, 0], [], []>} : vector<32x16xbf16>, vector<1024x16xbf16>, vector<32x1024xf32> -> vector<32x1024xf32>
    %c0_3 = arith.constant 0 : index
    %c0_4 = arith.constant 0 : index
    %c0_5 = arith.constant 0 : index
    %5 = vector.load %arg6[%c0_3, %c0_4, %c0_5] : memref<8x32x1xf32, #tpu.memory_space<vmem>>, vector<1x32x1xf32>
    %6 = vector.shape_cast %5 : vector<1x32x1xf32> to vector<32x1xf32>
    %7 = vector.broadcast %6 : vector<32x1xf32> to vector<32x1024xf32>
    %8 = arith.addf %4, %7 : vector<32x1024xf32>
    %cst_6 = arith.constant 0.000000e+00 : f32
    %9 = vector.broadcast %cst_6 : f32 to vector<32x1024xf32>
    %10 = arith.maximumf %8, %9 : vector<32x1024xf32>
    %11 = arith.truncf %10 : vector<32x1024xf32> to vector<32x1024xbf16>
    %c0_7 = arith.constant 0 : index
    %c0_8 = arith.constant 0 : index
    %c0_9 = arith.constant 0 : index
    %12 = vector.load %arg3[%c0_7, %c0_8, %c0_9] : memref<6x32x32xf32, #tpu.memory_space<vmem>>, vector<1x32x32xf32>
    %13 = vector.shape_cast %12 : vector<1x32x32xf32> to vector<32x32xf32>
    %14 = arith.truncf %13 : vector<32x32xf32> to vector<32x32xbf16>
    %cst_10 = arith.constant dense<0.000000e+00> : vector<32x1024xf32>
    %15 = tpu.matmul %14, %11, %cst_10 {dimension_numbers = #tpu.dot_dimension_numbers<[1], [0], [0], [1], [0, 0, 1, 1], [], []>} : vector<32x32xbf16>, vector<32x1024xbf16>, vector<32x1024xf32> -> vector<32x1024xf32>
    %c1 = arith.constant 1 : index
    %c0_11 = arith.constant 0 : index
    %c0_12 = arith.constant 0 : index
    %16 = vector.load %arg6[%c1, %c0_11, %c0_12] : memref<8x32x1xf32, #tpu.memory_space<vmem>>, vector<1x32x1xf32>
    %17 = vector.shape_cast %16 : vector<1x32x1xf32> to vector<32x1xf32>
    %18 = vector.broadcast %17 : vector<32x1xf32> to vector<32x1024xf32>
    %19 = arith.addf %15, %18 : vector<32x1024xf32>
    %cst_13 = arith.constant 0.000000e+00 : f32
    %20 = vector.broadcast %cst_13 : f32 to vector<32x1024xf32>
    %21 = arith.maximumf %19, %20 : vector<32x1024xf32>
    %22 = arith.truncf %21 : vector<32x1024xf32> to vector<32x1024xbf16>
    %c1_14 = arith.constant 1 : index
    %c0_15 = arith.constant 0 : index
    %c0_16 = arith.constant 0 : index
    %23 = vector.load %arg3[%c1_14, %c0_15, %c0_16] : memref<6x32x32xf32, #tpu.memory_space<vmem>>, vector<1x32x32xf32>
    %24 = vector.shape_cast %23 : vector<1x32x32xf32> to vector<32x32xf32>
    %25 = arith.truncf %24 : vector<32x32xf32> to vector<32x32xbf16>
    %cst_17 = arith.constant dense<0.000000e+00> : vector<32x1024xf32>
    %26 = tpu.matmul %25, %22, %cst_17 {dimension_numbers = #tpu.dot_dimension_numbers<[1], [0], [0], [1], [0, 0, 1, 1], [], []>} : vector<32x32xbf16>, vector<32x1024xbf16>, vector<32x1024xf32> -> vector<32x1024xf32>
    %c2 = arith.constant 2 : index
    %c0_18 = arith.constant 0 : index
    %c0_19 = arith.constant 0 : index
    %27 = vector.load %arg6[%c2, %c0_18, %c0_19] : memref<8x32x1xf32, #tpu.memory_space<vmem>>, vector<1x32x1xf32>
    %28 = vector.shape_cast %27 : vector<1x32x1xf32> to vector<32x1xf32>
    %29 = vector.broadcast %28 : vector<32x1xf32> to vector<32x1024xf32>
    %30 = arith.addf %26, %29 : vector<32x1024xf32>
    %cst_20 = arith.constant 0.000000e+00 : f32
    %31 = vector.broadcast %cst_20 : f32 to vector<32x1024xf32>
    %32 = arith.maximumf %30, %31 : vector<32x1024xf32>
    %33 = arith.truncf %32 : vector<32x1024xf32> to vector<32x1024xbf16>
    %c2_21 = arith.constant 2 : index
    %c0_22 = arith.constant 0 : index
    %c0_23 = arith.constant 0 : index
    %34 = vector.load %arg3[%c2_21, %c0_22, %c0_23] : memref<6x32x32xf32, #tpu.memory_space<vmem>>, vector<1x32x32xf32>
    %35 = vector.shape_cast %34 : vector<1x32x32xf32> to vector<32x32xf32>
    %36 = arith.truncf %35 : vector<32x32xf32> to vector<32x32xbf16>
    %cst_24 = arith.constant dense<0.000000e+00> : vector<32x1024xf32>
    %37 = tpu.matmul %36, %33, %cst_24 {dimension_numbers = #tpu.dot_dimension_numbers<[1], [0], [0], [1], [0, 0, 1, 1], [], []>} : vector<32x32xbf16>, vector<32x1024xbf16>, vector<32x1024xf32> -> vector<32x1024xf32>
    %c3 = arith.constant 3 : index
    %c0_25 = arith.constant 0 : index
    %c0_26 = arith.constant 0 : index
    %38 = vector.load %arg6[%c3, %c0_25, %c0_26] : memref<8x32x1xf32, #tpu.memory_space<vmem>>, vector<1x32x1xf32>
    %39 = vector.shape_cast %38 : vector<1x32x1xf32> to vector<32x1xf32>
    %40 = vector.broadcast %39 : vector<32x1xf32> to vector<32x1024xf32>
    %41 = arith.addf %37, %40 : vector<32x1024xf32>
    %cst_27 = arith.constant 0.000000e+00 : f32
    %42 = vector.broadcast %cst_27 : f32 to vector<32x1024xf32>
    %43 = arith.maximumf %41, %42 : vector<32x1024xf32>
    %44 = arith.truncf %43 : vector<32x1024xf32> to vector<32x1024xbf16>
    %c0_28 = arith.constant 0 : index
    %c0_29 = arith.constant 0 : index
    %45 = vector.load %arg4[%c0_28, %c0_29] : memref<32x32xf32, #tpu.memory_space<vmem>>, vector<32x32xf32>
    %46 = arith.truncf %45 : vector<32x32xf32> to vector<32x32xbf16>
    %cst_30 = arith.constant dense<0.000000e+00> : vector<32x1024xf32>
    %47 = tpu.matmul %46, %44, %cst_30 {dimension_numbers = #tpu.dot_dimension_numbers<[1], [0], [0], [1], [0, 0, 1, 1], [], []>} : vector<32x32xbf16>, vector<32x1024xbf16>, vector<32x1024xf32> -> vector<32x1024xf32>
    %c0_31 = arith.constant 0 : index
    %c0_32 = arith.constant 0 : index
    %48 = vector.load %arg5[%c0_31, %c0_32] : memref<32x16xf32, #tpu.memory_space<vmem>>, vector<32x16xf32>
    %49 = arith.truncf %48 : vector<32x16xf32> to vector<32x16xbf16>
    %cst_33 = arith.constant dense<0.000000e+00> : vector<32x1024xf32>
    %50 = tpu.matmul %49, %1, %cst_33 {dimension_numbers = #tpu.dot_dimension_numbers<[1], [1], [0], [0], [0, 0, 1, 0], [], []>} : vector<32x16xbf16>, vector<1024x16xbf16>, vector<32x1024xf32> -> vector<32x1024xf32>
    %51 = arith.addf %47, %50 : vector<32x1024xf32>
    %c4 = arith.constant 4 : index
    %c0_34 = arith.constant 0 : index
    %c0_35 = arith.constant 0 : index
    %52 = vector.load %arg6[%c4, %c0_34, %c0_35] : memref<8x32x1xf32, #tpu.memory_space<vmem>>, vector<1x32x1xf32>
    %53 = vector.shape_cast %52 : vector<1x32x1xf32> to vector<32x1xf32>
    %54 = vector.broadcast %53 : vector<32x1xf32> to vector<32x1024xf32>
    %55 = arith.addf %51, %54 : vector<32x1024xf32>
    %cst_36 = arith.constant 0.000000e+00 : f32
    %56 = vector.broadcast %cst_36 : f32 to vector<32x1024xf32>
    %57 = arith.maximumf %55, %56 : vector<32x1024xf32>
    %58 = arith.truncf %57 : vector<32x1024xf32> to vector<32x1024xbf16>
    %c3_37 = arith.constant 3 : index
    %c0_38 = arith.constant 0 : index
    %c0_39 = arith.constant 0 : index
    %59 = vector.load %arg3[%c3_37, %c0_38, %c0_39] : memref<6x32x32xf32, #tpu.memory_space<vmem>>, vector<1x32x32xf32>
    %60 = vector.shape_cast %59 : vector<1x32x32xf32> to vector<32x32xf32>
    %61 = arith.truncf %60 : vector<32x32xf32> to vector<32x32xbf16>
    %cst_40 = arith.constant dense<0.000000e+00> : vector<32x1024xf32>
    %62 = tpu.matmul %61, %58, %cst_40 {dimension_numbers = #tpu.dot_dimension_numbers<[1], [0], [0], [1], [0, 0, 1, 1], [], []>} : vector<32x32xbf16>, vector<32x1024xbf16>, vector<32x1024xf32> -> vector<32x1024xf32>
    %c5 = arith.constant 5 : index
    %c0_41 = arith.constant 0 : index
    %c0_42 = arith.constant 0 : index
    %63 = vector.load %arg6[%c5, %c0_41, %c0_42] : memref<8x32x1xf32, #tpu.memory_space<vmem>>, vector<1x32x1xf32>
    %64 = vector.shape_cast %63 : vector<1x32x1xf32> to vector<32x1xf32>
    %65 = vector.broadcast %64 : vector<32x1xf32> to vector<32x1024xf32>
    %66 = arith.addf %62, %65 : vector<32x1024xf32>
    %cst_43 = arith.constant 0.000000e+00 : f32
    %67 = vector.broadcast %cst_43 : f32 to vector<32x1024xf32>
    %68 = arith.maximumf %66, %67 : vector<32x1024xf32>
    %69 = arith.truncf %68 : vector<32x1024xf32> to vector<32x1024xbf16>
    %c4_44 = arith.constant 4 : index
    %c0_45 = arith.constant 0 : index
    %c0_46 = arith.constant 0 : index
    %70 = vector.load %arg3[%c4_44, %c0_45, %c0_46] : memref<6x32x32xf32, #tpu.memory_space<vmem>>, vector<1x32x32xf32>
    %71 = vector.shape_cast %70 : vector<1x32x32xf32> to vector<32x32xf32>
    %72 = arith.truncf %71 : vector<32x32xf32> to vector<32x32xbf16>
    %cst_47 = arith.constant dense<0.000000e+00> : vector<32x1024xf32>
    %73 = tpu.matmul %72, %69, %cst_47 {dimension_numbers = #tpu.dot_dimension_numbers<[1], [0], [0], [1], [0, 0, 1, 1], [], []>} : vector<32x32xbf16>, vector<32x1024xbf16>, vector<32x1024xf32> -> vector<32x1024xf32>
    %c6 = arith.constant 6 : index
    %c0_48 = arith.constant 0 : index
    %c0_49 = arith.constant 0 : index
    %74 = vector.load %arg6[%c6, %c0_48, %c0_49] : memref<8x32x1xf32, #tpu.memory_space<vmem>>, vector<1x32x1xf32>
    %75 = vector.shape_cast %74 : vector<1x32x1xf32> to vector<32x1xf32>
    %76 = vector.broadcast %75 : vector<32x1xf32> to vector<32x1024xf32>
    %77 = arith.addf %73, %76 : vector<32x1024xf32>
    %cst_50 = arith.constant 0.000000e+00 : f32
    %78 = vector.broadcast %cst_50 : f32 to vector<32x1024xf32>
    %79 = arith.maximumf %77, %78 : vector<32x1024xf32>
    %80 = arith.truncf %79 : vector<32x1024xf32> to vector<32x1024xbf16>
    %c5_51 = arith.constant 5 : index
    %c0_52 = arith.constant 0 : index
    %c0_53 = arith.constant 0 : index
    %81 = vector.load %arg3[%c5_51, %c0_52, %c0_53] : memref<6x32x32xf32, #tpu.memory_space<vmem>>, vector<1x32x32xf32>
    %82 = vector.shape_cast %81 : vector<1x32x32xf32> to vector<32x32xf32>
    %83 = arith.truncf %82 : vector<32x32xf32> to vector<32x32xbf16>
    %cst_54 = arith.constant dense<0.000000e+00> : vector<32x1024xf32>
    %84 = tpu.matmul %83, %80, %cst_54 {dimension_numbers = #tpu.dot_dimension_numbers<[1], [0], [0], [1], [0, 0, 1, 1], [], []>} : vector<32x32xbf16>, vector<32x1024xbf16>, vector<32x1024xf32> -> vector<32x1024xf32>
    %c7 = arith.constant 7 : index
    %c0_55 = arith.constant 0 : index
    %c0_56 = arith.constant 0 : index
    %85 = vector.load %arg6[%c7, %c0_55, %c0_56] : memref<8x32x1xf32, #tpu.memory_space<vmem>>, vector<1x32x1xf32>
    %86 = vector.shape_cast %85 : vector<1x32x1xf32> to vector<32x1xf32>
    %87 = vector.broadcast %86 : vector<32x1xf32> to vector<32x1024xf32>
    %88 = arith.addf %84, %87 : vector<32x1024xf32>
    %cst_57 = arith.constant 0.000000e+00 : f32
    %89 = vector.broadcast %cst_57 : f32 to vector<32x1024xf32>
    %90 = arith.maximumf %88, %89 : vector<32x1024xf32>
    %91 = arith.truncf %90 : vector<32x1024xf32> to vector<32x1024xbf16>
    %c0_58 = arith.constant 0 : index
    %c0_59 = arith.constant 0 : index
    %92 = vector.load %arg7[%c0_58, %c0_59] : memref<3x32xf32, #tpu.memory_space<vmem>>, vector<3x32xf32>
    %93 = arith.truncf %92 : vector<3x32xf32> to vector<3x32xbf16>
    %cst_60 = arith.constant dense<0.000000e+00> : vector<3x1024xf32>
    %94 = tpu.matmul %93, %91, %cst_60 {dimension_numbers = #tpu.dot_dimension_numbers<[1], [0], [0], [1], [0, 0, 1, 1], [], []>} : vector<3x32xbf16>, vector<32x1024xbf16>, vector<3x1024xf32> -> vector<3x1024xf32>
    %c0_61 = arith.constant 0 : index
    %c0_62 = arith.constant 0 : index
    %95 = vector.load %arg8[%c0_61, %c0_62] : memref<3x1xf32, #tpu.memory_space<vmem>>, vector<3x1xf32>
    %96 = vector.broadcast %95 : vector<3x1xf32> to vector<3x1024xf32>
    %97 = arith.addf %94, %96 : vector<3x1024xf32>
    %cst_63 = arith.constant 0.000000e+00 : f32
    %98 = vector.broadcast %cst_63 : f32 to vector<3x1024xf32>
    %99 = arith.subf %98, %97 : vector<3x1024xf32>
    %100 = math.exp %99 : vector<3x1024xf32>
    %cst_64 = arith.constant 1.000000e+00 : f32
    %101 = vector.broadcast %cst_64 : f32 to vector<3x1024xf32>
    %102 = arith.addf %101, %100 : vector<3x1024xf32>
    %103 = tpu.reciprocal %102 {approx = true} : vector<3x1024xf32> -> vector<3x1024xf32>
    %c0_65 = arith.constant 0 : index
    %c0_66 = arith.constant 0 : index
    %104 = vector.load %arg9[%c0_65, %c0_66] : memref<3x1024xf32, #tpu.memory_space<vmem>>, vector<3x1024xf32>
    tpu.vector_store %arg9[%c0_65, %c0_66], %103 {strides = array<i32>} : memref<3x1024xf32, #tpu.memory_space<vmem>>, vector<3x1024xf32>,
    return
  }
  func.func @transform_0(%arg0: i32) -> (i32, i32) {
    %c0_i32 = arith.constant 0 : i32
    %c0_i32_0 = arith.constant 0 : i32
    return %arg0, %c0_i32 : i32, i32
  }
  func.func @transform_1(%arg0: i32) -> (i32, i32) {
    %c0_i32 = arith.constant 0 : i32
    %c0_i32_0 = arith.constant 0 : i32
    %c0_i32_1 = arith.constant 0 : i32
    return %c0_i32, %c0_i32_0 : i32, i32
  }
  func.func @transform_2(%arg0: i32) -> (i32, i32, i32) {
    %c0_i32 = arith.constant 0 : i32
    %c0_i32_0 = arith.constant 0 : i32
    %c0_i32_1 = arith.constant 0 : i32
    %c0_i32_2 = arith.constant 0 : i32
    return %c0_i32, %c0_i32_0, %c0_i32_1 : i32, i32, i32
  }
  func.func @transform_3(%arg0: i32) -> (i32, i32) {
    %c0_i32 = arith.constant 0 : i32
    %c0_i32_0 = arith.constant 0 : i32
    %c0_i32_1 = arith.constant 0 : i32
    return %c0_i32, %c0_i32_0 : i32, i32
  }
  func.func @transform_4(%arg0: i32) -> (i32, i32) {
    %c0_i32 = arith.constant 0 : i32
    %c0_i32_0 = arith.constant 0 : i32
    %c0_i32_1 = arith.constant 0 : i32
    return %c0_i32, %c0_i32_0 : i32, i32
  }
  func.func @transform_5(%arg0: i32) -> (i32, i32, i32) {
    %c0_i32 = arith.constant 0 : i32
    %c0_i32_0 = arith.constant 0 : i32
    %c0_i32_1 = arith.constant 0 : i32
    %c0_i32_2 = arith.constant 0 : i32
    return %c0_i32, %c0_i32_0, %c0_i32_1 : i32, i32, i32
  }
  func.func @transform_6(%arg0: i32) -> (i32, i32) {
    %c0_i32 = arith.constant 0 : i32
    %c0_i32_0 = arith.constant 0 : i32
    %c0_i32_1 = arith.constant 0 : i32
    return %c0_i32, %c0_i32_0 : i32, i32
  }
  func.func @transform_7(%arg0: i32) -> (i32, i32) {
    %c0_i32 = arith.constant 0 : i32
    %c0_i32_0 = arith.constant 0 : i32
    %c0_i32_1 = arith.constant 0 : i32
    return %c0_i32, %c0_i32_0 : i32, i32
  }
  func.func @transform_8(%arg0: i32) -> (i32, i32) {
    %c0_i32 = arith.constant 0 : i32
    %c0_i32_0 = arith.constant 0 : i32
    return %c0_i32, %arg0 : i32, i32
  }
}

</mosaic_0001>

<llo_original>
// kernel: nelf_forward.1
$region0: #{nelf_forward.1}
  #allocation0 [shape = 'u32[]', space=smem, size = 0x4, offset = 0x4, fixed_abs, tag = 'smem constant byte address 0x4 - core index']
  #allocation1 [shape = 'u32[144,128]{1,0:T(1,128)}', space=vmem, size = 0x12000, scoped, tag = 'internal scratch']
  %s0 = inlined_call_operand.vmem [shape: f32[2048,16], index: 0, kind: input, shape index: {}]
  %s1 = inlined_call_operand.vmem [shape: f32[32,16], index: 1, kind: input, shape index: {}]
  %s2 = inlined_call_operand.vmem [shape: f32[6,32,32], index: 2, kind: input, shape index: {}]
  %s3 = inlined_call_operand.vmem [shape: f32[32,32], index: 3, kind: input, shape index: {}]
  %s4 = inlined_call_operand.vmem [shape: f32[32,16], index: 4, kind: input, shape index: {}]
  %s5 = inlined_call_operand.vmem [shape: f32[8,32,1], index: 5, kind: input, shape index: {}]
  %s6 = inlined_call_operand.vmem [shape: f32[3,32], index: 6, kind: input, shape index: {}]
  %s7 = inlined_call_operand.vmem [shape: f32[3,1], index: 7, kind: input, shape index: {}]
  %s8 = inlined_call_operand.hbm [shape: f32[3,2048], index: 8, kind: output, shape index: {}]
  %s9 = sld [smem:[#allocation0]]
  $region65: #{nelf_forward.1} parent=0
    _
  %s11 = ssub.s32 1, %s9
  %s12 = scalar_select 0, %s11, %s9
  $region1: #{nelf_forward.1} parent=0
    #allocation2 [shape = 'u8[32768]{0}', space=vmem, size = 0x8000, scoped, tag = 'output window, operand 0']
    #allocation3 [shape = 's32[2]{0}', space=sflag, size = 0x8, scoped, tag = 'scoped memory for nelf_forward.1']
    %13 = vsyncpa [#allocation3], 0
    %s14 = scalar_lea.sflag [#allocation3], 1
    %15 = vsyncpa %s14, 0
    loop: start=0, step=1, limit=4
    $region2: #{nelf_forward.1} parent=1 // loop_pre_header
      _
    $region3: #{nelf_forward.1} parent=1 // loop_header
      %s17 = sphi 0, %s21
      %p18 = scmp.ge.s32.totalorder %s17, 4
      %s27 = sphi 0, %s29
      %s30 = sphi 0, %s27
      %s31 = sphi 0, %s30
      %s47 = sphi 0, %s31
      %s51 = sphi 0, %s51
      %s53 = sphi 0, %s51
      %s54 = sphi 0, %s53
      %s68 = sphi 0, %s54
      %s72 = sphi 0, %s72
      %s74 = sphi 0, %s72
      %s75 = sphi 0, %s74
      %s89 = sphi 0, %s75
      %s93 = sphi 0, %s93
      %s95 = sphi 0, %s93
      %s96 = sphi 0, %s95
      %s110 = sphi 0, %s96
      %s114 = sphi 0, %s114
      %s116 = sphi 0, %s114
      %s117 = sphi 0, %s116
      %s131 = sphi 0, %s117
      %s135 = sphi 0, %s135
      %s137 = sphi 0, %s135
      %s138 = sphi 0, %s137
      %s152 = sphi 0, %s138
      %s156 = sphi 0, %s156
      %s158 = sphi 0, %s156
      %s159 = sphi 0, %s158
      %s173 = sphi 0, %s159
      %s177 = sphi 0, %s177
      %s179 = sphi 0, %s177
      %s180 = sphi 0, %s179
      %s194 = sphi 0, %s180
      %s200 = sphi 0, %s202
      %s203 = sphi 0, %s200
      %s204 = sphi 0, %s203
      %s220 = sphi 0, %s204
    $region4: #{nelf_forward.1} parent=1 // loop_header_branch
      %20 = sbr.rel (%p18) target = $region8
    $region5: #{nelf_forward.1} parent=1 // loop_body
      %s22 = ssub.s32 %s17, 1
      %s23 = ssub.s32 %s17, 2
      %s24 = sadd.s32 %s17, 1
      %s25 = ssub.s32 %s17, %s24
      %p26 = scmp.eq.s32.totalorder %s25, 0
      %s28 = sadd.s32 %s27, 1
      %s29 = scalar_select %p26, %s27, %s28
      %p32 = pneg %p26
      %p33 = scmp.eq.s32.totalorder %s17, 1
      %p34 = por %p32, %p33
      %p35 = scmp.ne.s32.totalorder %s27, %s30
      %p36 = scmp.eq.s32.totalorder %s17, 0
      %p37 = por %p35, %p36
      %p38 = scmp.ne.s32.totalorder %s27, %s30
      %p39 = scmp.eq.s32.totalorder %s22, 1
      %p40 = por %p38, %p39
      %p41 = scmp.ne.s32.totalorder %s30, %s31
      %p42 = scmp.eq.s32.totalorder %s22, 0
      %p43 = por %p41, %p42
      %p44 = scmp.ne.s32.totalorder %s30, %s31
      %p45 = scmp.eq.s32.totalorder %s23, 1
      %p46 = por %p44, %p45
      %p48 = scmp.ne.s32.totalorder %s31, %s47
      %p49 = scmp.eq.s32.totalorder %s23, 0
      %p50 = por %p48, %p49
      %s52 = sadd.s32 %s51, 1
      %p55 = scmp.eq.s32.totalorder %s17, 1
      %p56 = scmp.ne.s32.totalorder %s51, %s53
      %p57 = scmp.eq.s32.totalorder %s17, 0
      %p58 = por %p56, %p57
      %p59 = scmp.ne.s32.totalorder %s51, %s53
      %p60 = scmp.eq.s32.totalorder %s22, 1
      %p61 = por %p59, %p60
      %p62 = scmp.ne.s32.totalorder %s53, %s54
      %p63 = scmp.eq.s32.totalorder %s22, 0
      %p64 = por %p62, %p63
      %p65 = scmp.ne.s32.totalorder %s53, %s54
      %p66 = scmp.eq.s32.totalorder %s23, 1
      %p67 = por %p65, %p66
      %p69 = scmp.ne.s32.totalorder %s54, %s68
      %p70 = scmp.eq.s32.totalorder %s23, 0
      %p71 = por %p69, %p70
      %s73 = sadd.s32 %s72, 1
      %p76 = scmp.eq.s32.totalorder %s17, 1
      %p77 = scmp.ne.s32.totalorder %s72, %s74
      %p78 = scmp.eq.s32.totalorder %s17, 0
      %p79 = por %p77, %p78
      %p80 = scmp.ne.s32.totalorder %s72, %s74
      %p81 = scmp.eq.s32.totalorder %s22, 1
      %p82 = por %p80, %p81
      %p83 = scmp.ne.s32.totalorder %s74, %s75
      %p84 = scmp.eq.s32.totalorder %s22, 0
      %p85 = por %p83, %p84
      %p86 = scmp.ne.s32.totalorder %s74, %s75
      %p87 = scmp.eq.s32.totalorder %s23, 1
      %p88 = por %p86, %p87
      %p90 = scmp.ne.s32.totalorder %s75, %s89
      %p91 = scmp.eq.s32.totalorder %s23, 0
      %p92 = por %p90, %p91
      %s94 = sadd.s32 %s93, 1
      %p97 = scmp.eq.s32.totalorder %s17, 1
      %p98 = scmp.ne.s32.totalorder %s93, %s95
      %p99 = scmp.eq.s32.totalorder %s17, 0
      %p100 = por %p98, %p99
      %p101 = scmp.ne.s32.totalorder %s93, %s95
      %p102 = scmp.eq.s32.totalorder %s22, 1
      %p103 = por %p101, %p102
      %p104 = scmp.ne.s32.totalorder %s95, %s96
      %p105 = scmp.eq.s32.totalorder %s22, 0
      %p106 = por %p104, %p105
      %p107 = scmp.ne.s32.totalorder %s95, %s96
      %p108 = scmp.eq.s32.totalorder %s23, 1
      %p109 = por %p107, %p108
      %p111 = scmp.ne.s32.totalorder %s96, %s110
      %p112 = scmp.eq.s32.totalorder %s23, 0
      %p113 = por %p111, %p112
      %s115 = sadd.s32 %s114, 1
      %p118 = scmp.eq.s32.totalorder %s17, 1
      %p119 = scmp.ne.s32.totalorder %s114, %s116
      %p120 = scmp.eq.s32.totalorder %s17, 0
      %p121 = por %p119, %p120
      %p122 = scmp.ne.s32.totalorder %s114, %s116
      %p123 = scmp.eq.s32.totalorder %s22, 1
      %p124 = por %p122, %p123
      %p125 = scmp.ne.s32.totalorder %s116, %s117
      %p126 = scmp.eq.s32.totalorder %s22, 0
      %p127 = por %p125, %p126
      %p128 = scmp.ne.s32.totalorder %s116, %s117
      %p129 = scmp.eq.s32.totalorder %s23, 1
      %p130 = por %p128, %p129
      %p132 = scmp.ne.s32.totalorder %s117, %s131
      %p133 = scmp.eq.s32.totalorder %s23, 0
      %p134 = por %p132, %p133
      %s136 = sadd.s32 %s135, 1
      %p139 = scmp.eq.s32.totalorder %s17, 1
      %p140 = scmp.ne.s32.totalorder %s135, %s137
      %p141 = scmp.eq.s32.totalorder %s17, 0
      %p142 = por %p140, %p141
      %p143 = scmp.ne.s32.totalorder %s135, %s137
      %p144 = scmp.eq.s32.totalorder %s22, 1
      %p145 = por %p143, %p144
      %p146 = scmp.ne.s32.totalorder %s137, %s138
      %p147 = scmp.eq.s32.totalorder %s22, 0
      %p148 = por %p146, %p147
      %p149 = scmp.ne.s32.totalorder %s137, %s138
      %p150 = scmp.eq.s32.totalorder %s23, 1
      %p151 = por %p149, %p150
      %p153 = scmp.ne.s32.totalorder %s138, %s152
      %p154 = scmp.eq.s32.totalorder %s23, 0
      %p155 = por %p153, %p154
      %s157 = sadd.s32 %s156, 1
      %p160 = scmp.eq.s32.totalorder %s17, 1
      %p161 = scmp.ne.s32.totalorder %s156, %s158
      %p162 = scmp.eq.s32.totalorder %s17, 0
      %p163 = por %p161, %p162
      %p164 = scmp.ne.s32.totalorder %s156, %s158
      %p165 = scmp.eq.s32.totalorder %s22, 1
      %p166 = por %p164, %p165
      %p167 = scmp.ne.s32.totalorder %s158, %s159
      %p168 = scmp.eq.s32.totalorder %s22, 0
      %p169 = por %p167, %p168
      %p170 = scmp.ne.s32.totalorder %s158, %s159
      %p171 = scmp.eq.s32.totalorder %s23, 1
      %p172 = por %p170, %p171
      %p174 = scmp.ne.s32.totalorder %s159, %s173
      %p175 = scmp.eq.s32.totalorder %s23, 0
      %p176 = por %p174, %p175
      %s178 = sadd.s32 %s177, 1
      %p181 = scmp.eq.s32.totalorder %s17, 1
      %p182 = scmp.ne.s32.totalorder %s177, %s179
      %p183 = scmp.eq.s32.totalorder %s17, 0
      %p184 = por %p182, %p183
      %p185 = scmp.ne.s32.totalorder %s177, %s179
      %p186 = scmp.eq.s32.totalorder %s22, 1
      %p187 = por %p185, %p186
      %p188 = scmp.ne.s32.totalorder %s179, %s180
      %p189 = scmp.eq.s32.totalorder %s22, 0
      %p190 = por %p188, %p189
      %p191 = scmp.ne.s32.totalorder %s179, %s180
      %p192 = scmp.eq.s32.totalorder %s23, 1
      %p193 = por %p191, %p192
      %p195 = scmp.ne.s32.totalorder %s180, %s194
      %p196 = scmp.eq.s32.totalorder %s23, 0
      %p197 = por %p195, %p196
      %s198 = ssub.s32 %s17, %s24
      %p199 = scmp.eq.s32.totalorder %s198, 0
      %s201 = sadd.s32 %s200, 1
      %s202 = scalar_select %p199, %s200, %s201
      %p205 = pneg %p199
      %p206 = scmp.eq.s32.totalorder %s17, 1
      %p207 = por %p205, %p206
      %p208 = scmp.ne.s32.totalorder %s200, %s203
      %p209 = scmp.eq.s32.totalorder %s17, 0
      %p210 = por %p208, %p209
      %p211 = scmp.ne.s32.totalorder %s200, %s203
      %p212 = scmp.eq.s32.totalorder %s22, 1
      %p213 = por %p211, %p212
      %p214 = scmp.ne.s32.totalorder %s203, %s204
      %p215 = scmp.eq.s32.totalorder %s22, 0
      %p216 = por %p214, %p215
      %p217 = scmp.ne.s32.totalorder %s203, %s204
      %p218 = scmp.eq.s32.totalorder %s23, 1
      %p219 = por %p217, %p218
      %p221 = scmp.ne.s32.totalorder %s204, %s220
      %p222 = scmp.eq.s32.totalorder %s23, 0
      %p223 = por %p221, %p222
      %p224 = scmp.le.s32.totalorder 1, %s17
      %p225 = scmp.lt.s32.totalorder %s17, 3
      %p226 = pnand %p224, %p225
      %p227 = pneg %p226
      // Predicated region
      $region9: #{nelf_forward.1} parent=5 // pred_check
        _
      $region10: #{nelf_forward.1} parent=5 // pred_check_branch
        %229 = sbr.rel (%p226) target = $region12
      $region11: #{nelf_forward.1} parent=5 // pred_region
        %s230 = ssub.s32 %s17, 1
        // Predicated region
        $region13: #{nelf_forward.1} parent=11 // pred_check
          %p231 = pneg %p64
        $region14: #{nelf_forward.1} parent=11 // pred_check_branch
          %233 = sbr.rel (%p231) target = $region16
        $region15: #{nelf_forward.1} parent=11 // pred_region
          _
        $region16: #{nelf_forward.1} parent=11 // pred_fallthru
          _
        // Predicated region
        $region17: #{nelf_forward.1} parent=11 // pred_check
          %p234 = pneg %p85
        $region18: #{nelf_forward.1} parent=11 // pred_check_branch
          %236 = sbr.rel (%p234) target = $region20
        $region19: #{nelf_forward.1} parent=11 // pred_region
          _
        $region20: #{nelf_forward.1} parent=11 // pred_fallthru
          _
        // Predicated region
        $region21: #{nelf_forward.1} parent=11 // pred_check
          %p237 = pneg %p106
        $region22: #{nelf_forward.1} parent=11 // pred_check_branch
          %239 = sbr.rel (%p237) target = $region24
        $region23: #{nelf_forward.1} parent=11 // pred_region
          _
        $region24: #{nelf_forward.1} parent=11 // pred_fallthru
          _
        // Predicated region
        $region25: #{nelf_forward.1} parent=11 // pred_check
          %p240 = pneg %p127
        $region26: #{nelf_forward.1} parent=11 // pred_check_branch
          %242 = sbr.rel (%p240) target = $region28
        $region27: #{nelf_forward.1} parent=11 // pred_region
          _
        $region28: #{nelf_forward.1} parent=11 // pred_fallthru
          _
        // Predicated region
        $region29: #{nelf_forward.1} parent=11 // pred_check
          %p243 = pneg %p148
        $region30: #{nelf_forward.1} parent=11 // pred_check_branch
          %245 = sbr.rel (%p243) target = $region32
        $region31: #{nelf_forward.1} parent=11 // pred_region
          _
        $region32: #{nelf_forward.1} parent=11 // pred_fallthru
          _
        // Predicated region
        $region33: #{nelf_forward.1} parent=11 // pred_check
          %p246 = pneg %p169
        $region34: #{nelf_forward.1} parent=11 // pred_check_branch
          %248 = sbr.rel (%p246) target = $region36
        $region35: #{nelf_forward.1} parent=11 // pred_region
          _
        $region36: #{nelf_forward.1} parent=11 // pred_fallthru
          _
        // Predicated region
        $region37: #{nelf_forward.1} parent=11 // pred_check
          %p249 = pneg %p190
        $region38: #{nelf_forward.1} parent=11 // pred_check_branch
          %251 = sbr.rel (%p249) target = $region40
        $region39: #{nelf_forward.1} parent=11 // pred_region
          _
        $region40: #{nelf_forward.1} parent=11 // pred_fallthru
          _
      $region12: #{nelf_forward.1} parent=5 // pred_fallthru
        _
      %p252 = scmp.lt.s32.totalorder %s17, 2
      // Predicated region
      $region41: #{nelf_forward.1} parent=5 // pred_check
        %p253 = pneg %p252
      $region42: #{nelf_forward.1} parent=5 // pred_check_branch
        %255 = sbr.rel (%p253) target = $region44
      $region43: #{nelf_forward.1} parent=5 // pred_region
        // Predicated region
        $region45: #{nelf_forward.1} parent=43 // pred_check
          %p256 = pneg %p37
        $region46: #{nelf_forward.1} parent=43 // pred_check_branch
          %258 = sbr.rel (%p256) target = $region48
        $region47: #{nelf_forward.1} parent=43 // pred_region
          %s259 = smul.u32 128, %s17
          %p260 = scmp.lt.s32.totalorder %s259, 255
          %s261 = scalar_select %p260, %s259, 255
          %s262 = smul.addr %s261, 8
          %s263 = scalar_lea.vmem %s0, %s262
          %s264 = smul.u32 128, %s17
        $region48: #{nelf_forward.1} parent=43 // pred_fallthru
          _
      $region44: #{nelf_forward.1} parent=5 // pred_fallthru
        _
      %p265 = scmp.le.s32.totalorder 1, %s17
      %p266 = scmp.lt.s32.totalorder %s17, 3
      %p267 = pnand %p265, %p266
      %p268 = pneg %p267
      // Predicated region
      $region49: #{nelf_forward.1} parent=5 // pred_check
        _
      $region50: #{nelf_forward.1} parent=5 // pred_check_branch
        %270 = sbr.rel (%p267) target = $region52
      $region51: #{nelf_forward.1} parent=5 // pred_region
        %s271 = ssub.s32 %s17, 1
        %s272 = smul.u32 128, %s22
        %p273 = scmp.lt.s32.totalorder %s272, 255
        %s274 = scalar_select %p273, %s272, 255
        %s275 = smul.addr %s274, 8
        %s276 = scalar_lea.vmem %s0, %s275
        %p277 = pneg %p43
        %p278 = pneg %p40
        %p279 = pneg %p64
        %p280 = pneg %p61
        %p281 = pneg %p85
        %p282 = pneg %p82
        %p283 = pneg %p106
        %p284 = pneg %p103
        %p285 = pneg %p127
        %p286 = pneg %p124
        %p287 = pneg %p148
        %p288 = pneg %p145
        %p289 = pneg %p169
        %p290 = pneg %p166
        %p291 = pneg %p190
        %p292 = pneg %p187
        %p293 = pneg %p216
        %p294 = pneg %p213
        %s295 = sand.u32 %s203, 1
        %s296 = scalar_lea.sflag [#allocation3], %s295
        %s297 = sand.u32 %s203, 1
        %s298 = smul.addr %s297, 32
        %s299 = scalar_lea.vmem [#allocation2], %s298
        %s300 = smul.u32 128, %s22
        %p301 = scmp.lt.s32.totalorder %s300, 255
        %s302 = scalar_select %p301, %s300, 255
        %s303 = smul.addr %s302, 8
        %s304 = scalar_lea.vmem %s0, %s303
        %s305 = smul.u32 128, %s22
        %s306 = smul.u32 8, %s22
        %v308 = vld [vmem:[%s304] sm:$0xff]
        %v309 = vld [vmem:[%s304 + $0x8] sm:$0xff]
        %v310 = vld [vmem:[%s304 + $0x10] sm:$0xff]
        %v311 = vld [vmem:[%s304 + $0x18] sm:$0xff]
        %v312 = vld [vmem:[%s304 + $0x20] sm:$0xff]
        %v313 = vld [vmem:[%s304 + $0x28] sm:$0xff]
        %v314 = vld [vmem:[%s304 + $0x30] sm:$0xff]
        %v315 = vld [vmem:[%s304 + $0x38] sm:$0xff]
        %v316 = vld [vmem:[%s304 + $0x40] sm:$0xff]
        %v317 = vld [vmem:[%s304 + $0x48] sm:$0xff]
        %v318 = vld [vmem:[%s304 + $0x50] sm:$0xff]
        %v319 = vld [vmem:[%s304 + $0x58] sm:$0xff]
        %v320 = vld [vmem:[%s304 + $0x60] sm:$0xff]
        %v321 = vld [vmem:[%s304 + $0x68] sm:$0xff]
        %v322 = vld [vmem:[%s304 + $0x70] sm:$0xff]
        %v323 = vld [vmem:[%s304 + $0x78] sm:$0xff]
        %v324 = vld [vmem:[%s304 + $0x80] sm:$0xff]
        %v325 = vld [vmem:[%s304 + $0x88] sm:$0xff]
        %v326 = vld [vmem:[%s304 + $0x90] sm:$0xff]
        %v327 = vld [vmem:[%s304 + $0x98] sm:$0xff]
        %v328 = vld [vmem:[%s304 + $0xa0] sm:$0xff]
        %v329 = vld [vmem:[%s304 + $0xa8] sm:$0xff]
        %v330 = vld [vmem:[%s304 + $0xb0] sm:$0xff]
        %v331 = vld [vmem:[%s304 + $0xb8] sm:$0xff]
        %v332 = vld [vmem:[%s304 + $0xc0] sm:$0xff]
        %v333 = vld [vmem:[%s304 + $0xc8] sm:$0xff]
        %v334 = vld [vmem:[%s304 + $0xd0] sm:$0xff]
        %v335 = vld [vmem:[%s304 + $0xd8] sm:$0xff]
        %v336 = vld [vmem:[%s304 + $0xe0] sm:$0xff]
        %v337 = vld [vmem:[%s304 + $0xe8] sm:$0xff]
        %v338 = vld [vmem:[%s304 + $0xf0] sm:$0xff]
        %v339 = vld [vmem:[%s304 + $0xf8] sm:$0xff]
        %v340 = vld [vmem:[%s304 + $0x100] sm:$0xff]
        %v341 = vld [vmem:[%s304 + $0x108] sm:$0xff]
        %v342 = vld [vmem:[%s304 + $0x110] sm:$0xff]
        %v343 = vld [vmem:[%s304 + $0x118] sm:$0xff]
        %v344 = vld [vmem:[%s304 + $0x120] sm:$0xff]
        %v345 = vld [vmem:[%s304 + $0x128] sm:$0xff]
        %v346 = vld [vmem:[%s304 + $0x130] sm:$0xff]
        %v347 = vld [vmem:[%s304 + $0x138] sm:$0xff]
        %v348 = vld [vmem:[%s304 + $0x140] sm:$0xff]
        %v349 = vld [vmem:[%s304 + $0x148] sm:$0xff]
        %v350 = vld [vmem:[%s304 + $0x150] sm:$0xff]
        %v351 = vld [vmem:[%s304 + $0x158] sm:$0xff]
        %v352 = vld [vmem:[%s304 + $0x160] sm:$0xff]
        %v353 = vld [vmem:[%s304 + $0x168] sm:$0xff]
        %v354 = vld [vmem:[%s304 + $0x170] sm:$0xff]
        %v355 = vld [vmem:[%s304 + $0x178] sm:$0xff]
        %v356 = vld [vmem:[%s304 + $0x180] sm:$0xff]
        %v357 = vld [vmem:[%s304 + $0x188] sm:$0xff]
        %v358 = vld [vmem:[%s304 + $0x190] sm:$0xff]
        %v359 = vld [vmem:[%s304 + $0x198] sm:$0xff]
        %v360 = vld [vmem:[%s304 + $0x1a0] sm:$0xff]
        %v361 = vld [vmem:[%s304 + $0x1a8] sm:$0xff]
        %v362 = vld [vmem:[%s304 + $0x1b0] sm:$0xff]
        %v363 = vld [vmem:[%s304 + $0x1b8] sm:$0xff]
        %v364 = vld [vmem:[%s304 + $0x1c0] sm:$0xff]
        %v365 = vld [vmem:[%s304 + $0x1c8] sm:$0xff]
        %v366 = vld [vmem:[%s304 + $0x1d0] sm:$0xff]
        %v367 = vld [vmem:[%s304 + $0x1d8] sm:$0xff]
        %v368 = vld [vmem:[%s304 + $0x1e0] sm:$0xff]
        %v369 = vld [vmem:[%s304 + $0x1e8] sm:$0xff]
        %v370 = vld [vmem:[%s304 + $0x1f0] sm:$0xff]
        %v371 = vld [vmem:[%s304 + $0x1f8] sm:$0xff]
        %v372 = vld [vmem:[%s304 + $0x200] sm:$0xff]
        %v373 = vld [vmem:[%s304 + $0x208] sm:$0xff]
        %v374 = vld [vmem:[%s304 + $0x210] sm:$0xff]
        %v375 = vld [vmem:[%s304 + $0x218] sm:$0xff]
        %v376 = vld [vmem:[%s304 + $0x220] sm:$0xff]
        %v377 = vld [vmem:[%s304 + $0x228] sm:$0xff]
        %v378 = vld [vmem:[%s304 + $0x230] sm:$0xff]
        %v379 = vld [vmem:[%s304 + $0x238] sm:$0xff]
        %v380 = vld [vmem:[%s304 + $0x240] sm:$0xff]
        %v381 = vld [vmem:[%s304 + $0x248] sm:$0xff]
        %v382 = vld [vmem:[%s304 + $0x250] sm:$0xff]
        %v383 = vld [vmem:[%s304 + $0x258] sm:$0xff]
        %v384 = vld [vmem:[%s304 + $0x260] sm:$0xff]
        %v385 = vld [vmem:[%s304 + $0x268] sm:$0xff]
        %v386 = vld [vmem:[%s304 + $0x270] sm:$0xff]
        %v387 = vld [vmem:[%s304 + $0x278] sm:$0xff]
        %v388 = vld [vmem:[%s304 + $0x280] sm:$0xff]
        %v389 = vld [vmem:[%s304 + $0x288] sm:$0xff]
        %v390 = vld [vmem:[%s304 + $0x290] sm:$0xff]
        %v391 = vld [vmem:[%s304 + $0x298] sm:$0xff]
        %v392 = vld [vmem:[%s304 + $0x2a0] sm:$0xff]
        %v393 = vld [vmem:[%s304 + $0x2a8] sm:$0xff]
        %v394 = vld [vmem:[%s304 + $0x2b0] sm:$0xff]
        %v395 = vld [vmem:[%s304 + $0x2b8] sm:$0xff]
        %v396 = vld [vmem:[%s304 + $0x2c0] sm:$0xff]
        %v397 = vld [vmem:[%s304 + $0x2c8] sm:$0xff]
        %v398 = vld [vmem:[%s304 + $0x2d0] sm:$0xff]
        %v399 = vld [vmem:[%s304 + $0x2d8] sm:$0xff]
        %v400 = vld [vmem:[%s304 + $0x2e0] sm:$0xff]
        %v401 = vld [vmem:[%s304 + $0x2e8] sm:$0xff]
        %v402 = vld [vmem:[%s304 + $0x2f0] sm:$0xff]
        %v403 = vld [vmem:[%s304 + $0x2f8] sm:$0xff]
        %v404 = vld [vmem:[%s304 + $0x300] sm:$0xff]
        %v405 = vld [vmem:[%s304 + $0x308] sm:$0xff]
        %v406 = vld [vmem:[%s304 + $0x310] sm:$0xff]
        %v407 = vld [vmem:[%s304 + $0x318] sm:$0xff]
        %v408 = vld [vmem:[%s304 + $0x320] sm:$0xff]
        %v409 = vld [vmem:[%s304 + $0x328] sm:$0xff]
        %v410 = vld [vmem:[%s304 + $0x330] sm:$0xff]
        %v411 = vld [vmem:[%s304 + $0x338] sm:$0xff]
        %v412 = vld [vmem:[%s304 + $0x340] sm:$0xff]
        %v413 = vld [vmem:[%s304 + $0x348] sm:$0xff]
        %v414 = vld [vmem:[%s304 + $0x350] sm:$0xff]
        %v415 = vld [vmem:[%s304 + $0x358] sm:$0xff]
        %v416 = vld [vmem:[%s304 + $0x360] sm:$0xff]
        %v417 = vld [vmem:[%s304 + $0x368] sm:$0xff]
        %v418 = vld [vmem:[%s304 + $0x370] sm:$0xff]
        %v419 = vld [vmem:[%s304 + $0x378] sm:$0xff]
        %v420 = vld [vmem:[%s304 + $0x380] sm:$0xff]
        %v421 = vld [vmem:[%s304 + $0x388] sm:$0xff]
        %v422 = vld [vmem:[%s304 + $0x390] sm:$0xff]
        %v423 = vld [vmem:[%s304 + $0x398] sm:$0xff]
        %v424 = vld [vmem:[%s304 + $0x3a0] sm:$0xff]
        %v425 = vld [vmem:[%s304 + $0x3a8] sm:$0xff]
        %v426 = vld [vmem:[%s304 + $0x3b0] sm:$0xff]
        %v427 = vld [vmem:[%s304 + $0x3b8] sm:$0xff]
        %v428 = vld [vmem:[%s304 + $0x3c0] sm:$0xff]
        %v429 = vld [vmem:[%s304 + $0x3c8] sm:$0xff]
        %v430 = vld [vmem:[%s304 + $0x3d0] sm:$0xff]
        %v431 = vld [vmem:[%s304 + $0x3d8] sm:$0xff]
        %v432 = vld [vmem:[%s304 + $0x3e0] sm:$0xff]
        %v433 = vld [vmem:[%s304 + $0x3e8] sm:$0xff]
        %v434 = vld [vmem:[%s304 + $0x3f0] sm:$0xff]
        %v435 = vld [vmem:[%s304 + $0x3f8] sm:$0xff]
        %v436 = vpack.c.bf16 %v309, %v308
        %v437 = vpack.c.bf16 %v311, %v310
        %v438 = vpack.c.bf16 %v313, %v312
        %v439 = vpack.c.bf16 %v315, %v314
        %v440 = vpack.c.bf16 %v317, %v316
        %v441 = vpack.c.bf16 %v319, %v318
        %v442 = vpack.c.bf16 %v321, %v320
        %v443 = vpack.c.bf16 %v323, %v322
        %v444 = vpack.c.bf16 %v325, %v324
        %v445 = vpack.c.bf16 %v327, %v326
        %v446 = vpack.c.bf16 %v329, %v328
        %v447 = vpack.c.bf16 %v331, %v330
        %v448 = vpack.c.bf16 %v333, %v332
        %v449 = vpack.c.bf16 %v335, %v334
        %v450 = vpack.c.bf16 %v337, %v336
        %v451 = vpack.c.bf16 %v339, %v338
        %v452 = vpack.c.bf16 %v341, %v340
        %v453 = vpack.c.bf16 %v343, %v342
        %v454 = vpack.c.bf16 %v345, %v344
        %v455 = vpack.c.bf16 %v347, %v346
        %v456 = vpack.c.bf16 %v349, %v348
        %v457 = vpack.c.bf16 %v351, %v350
        %v458 = vpack.c.bf16 %v353, %v352
        %v459 = vpack.c.bf16 %v355, %v354
        %v460 = vpack.c.bf16 %v357, %v356
        %v461 = vpack.c.bf16 %v359, %v358
        %v462 = vpack.c.bf16 %v361, %v360
        %v463 = vpack.c.bf16 %v363, %v362
        %v464 = vpack.c.bf16 %v365, %v364
        %v465 = vpack.c.bf16 %v367, %v366
        %v466 = vpack.c.bf16 %v369, %v368
        %v467 = vpack.c.bf16 %v371, %v370
        %v468 = vpack.c.bf16 %v373, %v372
        %v469 = vpack.c.bf16 %v375, %v374
        %v470 = vpack.c.bf16 %v377, %v376
        %v471 = vpack.c.bf16 %v379, %v378
        %v472 = vpack.c.bf16 %v381, %v380
        %v473 = vpack.c.bf16 %v383, %v382
        %v474 = vpack.c.bf16 %v385, %v384
        %v475 = vpack.c.bf16 %v387, %v386
        %v476 = vpack.c.bf16 %v389, %v388
        %v477 = vpack.c.bf16 %v391, %v390
        %v478 = vpack.c.bf16 %v393, %v392
        %v479 = vpack.c.bf16 %v395, %v394
        %v480 = vpack.c.bf16 %v397, %v396
        %v481 = vpack.c.bf16 %v399, %v398
        %v482 = vpack.c.bf16 %v401, %v400
        %v483 = vpack.c.bf16 %v403, %v402
        %v484 = vpack.c.bf16 %v405, %v404
        %v485 = vpack.c.bf16 %v407, %v406
        %v486 = vpack.c.bf16 %v409, %v408
        %v487 = vpack.c.bf16 %v411, %v410
        %v488 = vpack.c.bf16 %v413, %v412
        %v489 = vpack.c.bf16 %v415, %v414
        %v490 = vpack.c.bf16 %v417, %v416
        %v491 = vpack.c.bf16 %v419, %v418
        %v492 = vpack.c.bf16 %v421, %v420
        %v493 = vpack.c.bf16 %v423, %v422
        %v494 = vpack.c.bf16 %v425, %v424
        %v495 = vpack.c.bf16 %v427, %v426
        %v496 = vpack.c.bf16 %v429, %v428
        %v497 = vpack.c.bf16 %v431, %v430
        %v498 = vpack.c.bf16 %v433, %v432
        %v499 = vpack.c.bf16 %v435, %v434
        %v500 = vld [vmem:[%s1] sm:$0xff]
        %v501 = vld [vmem:[%s1 + $0x8] sm:$0xff]
        %v502 = vld [vmem:[%s1 + $0x10] sm:$0xff]
        %v503 = vld [vmem:[%s1 + $0x18] sm:$0xff]
        %v504 = vpack.c.bf16 %v501, %v500
        %v505 = vpack.c.bf16 %v503, %v502
        %v506 = vld [vmem:[%s5] sm:$0xff]
        %v507 = vld [vmem:[%s5 + $0x8] sm:$0xff]
        %v508 = vld [vmem:[%s5 + $0x10] sm:$0xff]
        %v509 = vld [vmem:[%s5 + $0x18] sm:$0xff]
        %511 = vset.pattern.permute.xlu0 0
        %512 = vperm.xlu0 %511, %v506
        %v513 = vpop.permute.xlu0 %512
        %516 = vset.pattern.permute.xlu0 0
        %517 = vperm.xlu0 %516, %v507
        %v518 = vpop.permute.xlu0 %517
        %521 = vset.pattern.permute.xlu0 0
        %522 = vperm.xlu0 %521, %v508
        %v523 = vpop.permute.xlu0 %522
        %526 = vset.pattern.permute.xlu0 0
        %527 = vperm.xlu0 %526, %v509
        %v528 = vpop.permute.xlu0 %527
        %vm530 = vcmask 130048
        %v532 = vsel %vm530, %v504, 0
        %v535 = vsel %vm530, %v505, 0
        %v538 = vsel %vm530, %v436, 0
        %v541 = vsel %vm530, %v437, 0
        %v544 = vsel %vm530, %v438, 0
        %v547 = vsel %vm530, %v439, 0
        %v550 = vsel %vm530, %v440, 0
        %v553 = vsel %vm530, %v441, 0
        %v556 = vsel %vm530, %v442, 0
        %v559 = vsel %vm530, %v443, 0
        %v562 = vsel %vm530, %v444, 0
        %v565 = vsel %vm530, %v445, 0
        %v568 = vsel %vm530, %v446, 0
        %v571 = vsel %vm530, %v447, 0
        %v574 = vsel %vm530, %v448, 0
        %v577 = vsel %vm530, %v449, 0
        %v580 = vsel %vm530, %v450, 0
        %v583 = vsel %vm530, %v451, 0
        %v586 = vsel %vm530, %v452, 0
        %v589 = vsel %vm530, %v453, 0
        %v592 = vsel %vm530, %v454, 0
        %v595 = vsel %vm530, %v455, 0
        %v598 = vsel %vm530, %v456, 0
        %v601 = vsel %vm530, %v457, 0
        %v604 = vsel %vm530, %v458, 0
        %v607 = vsel %vm530, %v459, 0
        %v610 = vsel %vm530, %v460, 0
        %v613 = vsel %vm530, %v461, 0
        %v616 = vsel %vm530, %v462, 0
        %v619 = vsel %vm530, %v463, 0
        %v622 = vsel %vm530, %v464, 0
        %v625 = vsel %vm530, %v465, 0
        %v628 = vsel %vm530, %v466, 0
        %v631 = vsel %vm530, %v467, 0
        %v634 = vsel %vm530, %v468, 0
        %v637 = vsel %vm530, %v469, 0
        %v640 = vsel %vm530, %v470, 0
        %v643 = vsel %vm530, %v471, 0
        %v646 = vsel %vm530, %v472, 0
        %v649 = vsel %vm530, %v473, 0
        %v652 = vsel %vm530, %v474, 0
        %v655 = vsel %vm530, %v475, 0
        %v658 = vsel %vm530, %v476, 0
        %v661 = vsel %vm530, %v477, 0
        %v664 = vsel %vm530, %v478, 0
        %v667 = vsel %vm530, %v479, 0
        %v670 = vsel %vm530, %v480, 0
        %v673 = vsel %vm530, %v481, 0
        %v676 = vsel %vm530, %v482, 0
        %v679 = vsel %vm530, %v483, 0
        %v682 = vsel %vm530, %v484, 0
        %v685 = vsel %vm530, %v485, 0
        %v688 = vsel %vm530, %v486, 0
        %v691 = vsel %vm530, %v487, 0
        %v694 = vsel %vm530, %v488, 0
        %v697 = vsel %vm530, %v489, 0
        %v700 = vsel %vm530, %v490, 0
        %v703 = vsel %vm530, %v491, 0
        %v706 = vsel %vm530, %v492, 0
        %v709 = vsel %vm530, %v493, 0
        %v712 = vsel %vm530, %v494, 0
        %v715 = vsel %vm530, %v495, 0
        %v718 = vsel %vm530, %v496, 0
        %v721 = vsel %vm530, %v497, 0
        %v724 = vsel %vm530, %v498, 0
        %v727 = vsel %vm530, %v499, 0
        %729 = vmatprep.subr.bf16.mxu0 0
        %730 = vmatpush1.bf16.xpose.msra.mxu0 %v559
        %731 = vmatprep.subr.bf16.mxu0 0
        %732 = vmatpush1.bf16.xpose.msra.mxu0 %v556
        %733 = vmatprep.subr.bf16.mxu0 0
        %734 = vmatpush1.bf16.xpose.msra.mxu0 %v553
        %735 = vmatprep.subr.bf16.mxu0 0
        %736 = vmatpush1.bf16.xpose.msra.mxu0 %v550
        %737 = vmatprep.subr.bf16.mxu0 0
        %738 = vmatpush1.bf16.xpose.msra.mxu0 %v547
        %739 = vmatprep.subr.bf16.mxu0 0
        %740 = vmatpush1.bf16.xpose.msra.mxu0 %v544
        %741 = vmatprep.subr.bf16.mxu0 0
        %742 = vmatpush1.bf16.xpose.msra.mxu0 %v541
        %743 = vmatprep.subr.bf16.mxu0 0
        %744 = vmatpush1.bf16.xpose.msra.mxu0 %v538
        %745 = vmatprep.subr.bf16.mxu0 0
        %746 = vmatpush2.bf16.xpose.msra.mxu0 %v583
        %747 = vmatprep.subr.bf16.mxu0 0
        %748 = vmatpush2.bf16.xpose.msra.mxu0 %v580
        %749 = vmatprep.subr.bf16.mxu0 0
        %750 = vmatpush2.bf16.xpose.msra.mxu0 %v577
        %751 = vmatprep.subr.bf16.mxu0 0
        %752 = vmatpush2.bf16.xpose.msra.mxu0 %v574
        %753 = vmatprep.subr.bf16.mxu0 0
        %754 = vmatpush2.bf16.xpose.msra.mxu0 %v571
        %755 = vmatprep.subr.bf16.mxu0 0
        %756 = vmatpush2.bf16.xpose.msra.mxu0 %v568
        %757 = vmatprep.subr.bf16.mxu0 0
        %758 = vmatpush2.bf16.xpose.msra.mxu0 %v565
        %759 = vmatprep.subr.bf16.mxu0 0
        %760 = vmatpush2.bf16.xpose.msra.mxu0 %v562
        %761 = vmatprep.mubr.bf16.mxu0 0
        %762 = vmatmul.mubr.bf16.gmra.mxu0 %v532
        %v763 = vpop.f32.mrf.mxu0
        %v764 = vadd.f32 %v513, %v763
        %v765 = vpop.f32.mrf.mxu0
        %v766 = vadd.f32 %v513, %v765
        %v767 = vpop.f32.mrf.mxu0
        %v768 = vadd.f32 %v518, %v767
        %v769 = vpop.f32.mrf.mxu0
        %v770 = vadd.f32 %v518, %v769
        %771 = vmatprep.mubr.bf16.mxu0 0
        %772 = vmatmul.mubr.bf16.gmra.mxu0 %v535
        %v773 = vpop.f32.mrf.mxu0
        %v774 = vadd.f32 %v523, %v773
        %v775 = vpop.f32.mrf.mxu0
        %v776 = vadd.f32 %v523, %v775
        %v777 = vpop.f32.mrf.mxu0
        %v778 = vadd.f32 %v528, %v777
        %v779 = vpop.f32.mrf.mxu0
        %v780 = vadd.f32 %v528, %v779
        %781 = vdwg.mxu0
        %782 = vmatprep.subr.bf16.mxu0 0
        %783 = vmatpush1.bf16.xpose.msra.mxu0 %v607
        %784 = vmatprep.subr.bf16.mxu0 0
        %785 = vmatpush1.bf16.xpose.msra.mxu0 %v604
        %786 = vmatprep.subr.bf16.mxu0 0
        %787 = vmatpush1.bf16.xpose.msra.mxu0 %v601
        %788 = vmatprep.subr.bf16.mxu0 0
        %789 = vmatpush1.bf16.xpose.msra.mxu0 %v598
        %790 = vmatprep.subr.bf16.mxu0 0
        %791 = vmatpush1.bf16.xpose.msra.mxu0 %v595
        %792 = vmatprep.subr.bf16.mxu0 0
        %793 = vmatpush1.bf16.xpose.msra.mxu0 %v592
        %794 = vmatprep.subr.bf16.mxu0 0
        %795 = vmatpush1.bf16.xpose.msra.mxu0 %v589
        %796 = vmatprep.subr.bf16.mxu0 0
        %797 = vmatpush1.bf16.xpose.msra.mxu0 %v586
        %798 = vmatprep.subr.bf16.mxu0 0
        %799 = vmatpush2.bf16.xpose.msra.mxu0 %v631
        %800 = vmatprep.subr.bf16.mxu0 0
        %801 = vmatpush2.bf16.xpose.msra.mxu0 %v628
        %802 = vmatprep.subr.bf16.mxu0 0
        %803 = vmatpush2.bf16.xpose.msra.mxu0 %v625
        %804 = vmatprep.subr.bf16.mxu0 0
        %805 = vmatpush2.bf16.xpose.msra.mxu0 %v622
        %806 = vmatprep.subr.bf16.mxu0 0
        %807 = vmatpush2.bf16.xpose.msra.mxu0 %v619
        %808 = vmatprep.subr.bf16.mxu0 0
        %809 = vmatpush2.bf16.xpose.msra.mxu0 %v616
        %810 = vmatprep.subr.bf16.mxu0 0
        %811 = vmatpush2.bf16.xpose.msra.mxu0 %v613
        %812 = vmatprep.subr.bf16.mxu0 0
        %813 = vmatpush2.bf16.xpose.msra.mxu0 %v610
        %814 = vmatprep.mubr.bf16.mxu0 0
        %815 = vmatmul.mubr.bf16.gmra.mxu0 %v532
        %v816 = vpop.f32.mrf.mxu0
        %v817 = vadd.f32 %v513, %v816
        %v818 = vpop.f32.mrf.mxu0
        %v819 = vadd.f32 %v513, %v818
        %v820 = vpop.f32.mrf.mxu0
        %v821 = vadd.f32 %v518, %v820
        %v822 = vpop.f32.mrf.mxu0
        %v823 = vadd.f32 %v518, %v822
        %824 = vmatprep.mubr.bf16.mxu0 0
        %825 = vmatmul.mubr.bf16.gmra.mxu0 %v535
        %v826 = vpop.f32.mrf.mxu0
        %v827 = vadd.f32 %v523, %v826
        %v828 = vpop.f32.mrf.mxu0
        %v829 = vadd.f32 %v523, %v828
        %v830 = vpop.f32.mrf.mxu0
        %v831 = vadd.f32 %v528, %v830
        %v832 = vpop.f32.mrf.mxu0
        %v833 = vadd.f32 %v528, %v832
        %834 = vdwg.mxu0
        %835 = vmatprep.subr.bf16.mxu0 0
        %836 = vmatpush1.bf16.xpose.msra.mxu0 %v655
        %837 = vmatprep.subr.bf16.mxu0 0
        %838 = vmatpush1.bf16.xpose.msra.mxu0 %v652
        %839 = vmatprep.subr.bf16.mxu0 0
        %840 = vmatpush1.bf16.xpose.msra.mxu0 %v649
        %841 = vmatprep.subr.bf16.mxu0 0
        %842 = vmatpush1.bf16.xpose.msra.mxu0 %v646
        %843 = vmatprep.subr.bf16.mxu0 0
        %844 = vmatpush1.bf16.xpose.msra.mxu0 %v643
        %845 = vmatprep.subr.bf16.mxu0 0
        %846 = vmatpush1.bf16.xpose.msra.mxu0 %v640
        %847 = vmatprep.subr.bf16.mxu0 0
        %848 = vmatpush1.bf16.xpose.msra.mxu0 %v637
        %849 = vmatprep.subr.bf16.mxu0 0
        %850 = vmatpush1.bf16.xpose.msra.mxu0 %v634
        %851 = vmatprep.subr.bf16.mxu0 0
        %852 = vmatpush2.bf16.xpose.msra.mxu0 %v679
        %853 = vmatprep.subr.bf16.mxu0 0
        %854 = vmatpush2.bf16.xpose.msra.mxu0 %v676
        %855 = vmatprep.subr.bf16.mxu0 0
        %856 = vmatpush2.bf16.xpose.msra.mxu0 %v673
        %857 = vmatprep.subr.bf16.mxu0 0
        %858 = vmatpush2.bf16.xpose.msra.mxu0 %v670
        %859 = vmatprep.subr.bf16.mxu0 0
        %860 = vmatpush2.bf16.xpose.msra.mxu0 %v667
        %861 = vmatprep.subr.bf16.mxu0 0
        %862 = vmatpush2.bf16.xpose.msra.mxu0 %v664
        %863 = vmatprep.subr.bf16.mxu0 0
        %864 = vmatpush2.bf16.xpose.msra.mxu0 %v661
        %865 = vmatprep.subr.bf16.mxu0 0
        %866 = vmatpush2.bf16.xpose.msra.mxu0 %v658
        %867 = vmatprep.mubr.bf16.mxu0 0
        %868 = vmatmul.mubr.bf16.gmra.mxu0 %v532
        %v869 = vpop.f32.mrf.mxu0
        %v870 = vadd.f32 %v513, %v869
        %v871 = vpop.f32.mrf.mxu0
        %v872 = vadd.f32 %v513, %v871
        %v873 = vpop.f32.mrf.mxu0
        %v874 = vadd.f32 %v518, %v873
        %v875 = vpop.f32.mrf.mxu0
        %v876 = vadd.f32 %v518, %v875
        %877 = vmatprep.mubr.bf16.mxu0 0
        %878 = vmatmul.mubr.bf16.gmra.mxu0 %v535
        %v879 = vpop.f32.mrf.mxu0
        %v880 = vadd.f32 %v523, %v879
        %v881 = vpop.f32.mrf.mxu0
        %v882 = vadd.f32 %v523, %v881
        %v883 = vpop.f32.mrf.mxu0
        %v884 = vadd.f32 %v528, %v883
        %v885 = vpop.f32.mrf.mxu0
        %v886 = vadd.f32 %v528, %v885
        %887 = vdwg.mxu0
        %888 = vmatprep.subr.bf16.mxu0 0
        %889 = vmatpush1.bf16.xpose.msra.mxu0 %v703
        %890 = vmatprep.subr.bf16.mxu0 0
        %891 = vmatpush1.bf16.xpose.msra.mxu0 %v700
        %892 = vmatprep.subr.bf16.mxu0 0
        %893 = vmatpush1.bf16.xpose.msra.mxu0 %v697
        %894 = vmatprep.subr.bf16.mxu0 0
        %895 = vmatpush1.bf16.xpose.msra.mxu0 %v694
        %896 = vmatprep.subr.bf16.mxu0 0
        %897 = vmatpush1.bf16.xpose.msra.mxu0 %v691
        %898 = vmatprep.subr.bf16.mxu0 0
        %899 = vmatpush1.bf16.xpose.msra.mxu0 %v688
        %900 = vmatprep.subr.bf16.mxu0 0
        %901 = vmatpush1.bf16.xpose.msra.mxu0 %v685
        %902 = vmatprep.subr.bf16.mxu0 0
        %903 = vmatpush1.bf16.xpose.msra.mxu0 %v682
        %904 = vmatprep.subr.bf16.mxu0 0
        %905 = vmatpush2.bf16.xpose.msra.mxu0 %v727
        %906 = vmatprep.subr.bf16.mxu0 0
        %907 = vmatpush2.bf16.xpose.msra.mxu0 %v724
        %908 = vmatprep.subr.bf16.mxu0 0
        %909 = vmatpush2.bf16.xpose.msra.mxu0 %v721
        %910 = vmatprep.subr.bf16.mxu0 0
        %911 = vmatpush2.bf16.xpose.msra.mxu0 %v718
        %912 = vmatprep.subr.bf16.mxu0 0
        %913 = vmatpush2.bf16.xpose.msra.mxu0 %v715
        %914 = vmatprep.subr.bf16.mxu0 0
        %915 = vmatpush2.bf16.xpose.msra.mxu0 %v712
        %916 = vmatprep.subr.bf16.mxu0 0
        %917 = vmatpush2.bf16.xpose.msra.mxu0 %v709
        %918 = vmatprep.subr.bf16.mxu0 0
        %919 = vmatpush2.bf16.xpose.msra.mxu0 %v706
        %920 = vmatprep.mubr.bf16.mxu0 0
        %921 = vmatmul.mubr.bf16.gmra.mxu0 %v532
        %v922 = vpop.f32.mrf.mxu0
        %v923 = vadd.f32 %v513, %v922
        %v924 = vpop.f32.mrf.mxu0
        %v925 = vadd.f32 %v513, %v924
        %v926 = vpop.f32.mrf.mxu0
        %v927 = vadd.f32 %v518, %v926
        %v928 = vpop.f32.mrf.mxu0
        %v929 = vadd.f32 %v518, %v928
        %930 = vmatprep.mubr.bf16.mxu0 0
        %931 = vmatmul.mubr.bf16.gmra.mxu0 %v535
        %v932 = vpop.f32.mrf.mxu0
        %v933 = vadd.f32 %v523, %v932
        %v934 = vpop.f32.mrf.mxu0
        %v935 = vadd.f32 %v523, %v934
        %v936 = vpop.f32.mrf.mxu0
        %v937 = vadd.f32 %v528, %v936
        %v938 = vpop.f32.mrf.mxu0
        %v939 = vadd.f32 %v528, %v938
        %940 = vdwg.mxu0
        %v941 = vmax.f32 %v764, 0.0
        %v942 = vmax.f32 %v766, 0.0
        %v943 = vmax.f32 %v817, 0.0
        %v944 = vmax.f32 %v819, 0.0
        %v945 = vmax.f32 %v870, 0.0
        %v946 = vmax.f32 %v872, 0.0
        %v947 = vmax.f32 %v923, 0.0
        %v948 = vmax.f32 %v925, 0.0
        %v949 = vmax.f32 %v768, 0.0
        %v950 = vmax.f32 %v770, 0.0
        %v951 = vmax.f32 %v821, 0.0
        %v952 = vmax.f32 %v823, 0.0
        %v953 = vmax.f32 %v874, 0.0
        %v954 = vmax.f32 %v876, 0.0
        %v955 = vmax.f32 %v927, 0.0
        %v956 = vmax.f32 %v929, 0.0
        %v957 = vmax.f32 %v774, 0.0
        %v958 = vmax.f32 %v776, 0.0
        %v959 = vmax.f32 %v827, 0.0
        %v960 = vmax.f32 %v829, 0.0
        %v961 = vmax.f32 %v880, 0.0
        %v962 = vmax.f32 %v882, 0.0
        %v963 = vmax.f32 %v933, 0.0
        %v964 = vmax.f32 %v935, 0.0
        %v965 = vmax.f32 %v778, 0.0
        %v966 = vmax.f32 %v780, 0.0
        %v967 = vmax.f32 %v831, 0.0
        %v968 = vmax.f32 %v833, 0.0
        %v969 = vmax.f32 %v884, 0.0
        %v970 = vmax.f32 %v886, 0.0
        %v971 = vmax.f32 %v937, 0.0
        %v972 = vmax.f32 %v939, 0.0
        %v973 = vpack.c.bf16 %v949, %v941
        %v974 = vpack.c.bf16 %v950, %v942
        %v975 = vpack.c.bf16 %v951, %v943
        %v976 = vpack.c.bf16 %v952, %v944
        %v977 = vpack.c.bf16 %v953, %v945
        %v978 = vpack.c.bf16 %v954, %v946
        %v979 = vpack.c.bf16 %v955, %v947
        %v980 = vpack.c.bf16 %v956, %v948
        %v981 = vpack.c.bf16 %v965, %v957
        %v982 = vpack.c.bf16 %v966, %v958
        %v983 = vpack.c.bf16 %v967, %v959
        %v984 = vpack.c.bf16 %v968, %v960
        %v985 = vpack.c.bf16 %v969, %v961
        %v986 = vpack.c.bf16 %v970, %v962
        %v987 = vpack.c.bf16 %v971, %v963
        %v988 = vpack.c.bf16 %v972, %v964
        %v989 = vld [vmem:[%s2] sm:$0xff]
        %v990 = vld [vmem:[%s2 + $0x8] sm:$0xff]
        %v991 = vld [vmem:[%s2 + $0x10] sm:$0xff]
        %v992 = vld [vmem:[%s2 + $0x18] sm:$0xff]
        %v993 = vpack.c.bf16 %v990, %v989
        %v994 = vpack.c.bf16 %v992, %v991
        %s995 = scalar_lea.vmem %s5, 32
        %v996 = vld [vmem:[%s995] sm:$0xff]
        %v997 = vld [vmem:[%s995 + $0x8] sm:$0xff]
        %v998 = vld [vmem:[%s995 + $0x10] sm:$0xff]
        %v999 = vld [vmem:[%s995 + $0x18] sm:$0xff]
        %1001 = vset.pattern.permute.xlu0 0
        %1002 = vperm.xlu0 %1001, %v996
        %v1003 = vpop.permute.xlu0 %1002
        %1006 = vset.pattern.permute.xlu0 0
        %1007 = vperm.xlu0 %1006, %v997
        %v1008 = vpop.permute.xlu0 %1007
        %1011 = vset.pattern.permute.xlu0 0
        %1012 = vperm.xlu0 %1011, %v998
        %v1013 = vpop.permute.xlu0 %1012
        %1016 = vset.pattern.permute.xlu0 0
        %1017 = vperm.xlu0 %1016, %v999
        %v1018 = vpop.permute.xlu0 %1017
        %vm1020 = vcmask 261120
        %v1022 = vsel %vm1020, %v993, 0
        %v1025 = vsel %vm1020, %v994, 0
        %1027 = vmatprep.subr.bf16.mxu0 0
        %1028 = vmatpush1.bf16.msra.mxu0 0
        %1029 = vmatprep.subr.bf16.mxu0 0
        %1030 = vmatpush1.bf16.msra.mxu0 0
        %1031 = vmatprep.subr.bf16.mxu0 0
        %1032 = vmatpush1.bf16.msra.mxu0 0
        %1033 = vmatprep.subr.bf16.mxu0 0
        %1034 = vmatpush1.bf16.msra.mxu0 0
        %1035 = vmatprep.subr.bf16.mxu0 0
        %1036 = vmatpush1.bf16.msra.mxu0 0
        %1037 = vmatprep.subr.bf16.mxu0 0
        %1038 = vmatpush1.bf16.msra.mxu0 0
        %1039 = vmatprep.subr.bf16.mxu0 %v982
        %1040 = vmatpush1.bf16.msra.mxu0 %v981
        %1041 = vmatprep.subr.bf16.mxu0 %v974
        %1042 = vmatpush1.bf16.msra.mxu0 %v973
        %1043 = vmatprep.subr.bf16.mxu0 0
        %1044 = vmatpush2.bf16.msra.mxu0 0
        %1045 = vmatprep.subr.bf16.mxu0 0
        %1046 = vmatpush2.bf16.msra.mxu0 0
        %1047 = vmatprep.subr.bf16.mxu0 0
        %1048 = vmatpush2.bf16.msra.mxu0 0
        %1049 = vmatprep.subr.bf16.mxu0 0
        %1050 = vmatpush2.bf16.msra.mxu0 0
        %1051 = vmatprep.subr.bf16.mxu0 0
        %1052 = vmatpush2.bf16.msra.mxu0 0
        %1053 = vmatprep.subr.bf16.mxu0 0
        %1054 = vmatpush2.bf16.msra.mxu0 0
        %1055 = vmatprep.subr.bf16.mxu0 0
        %1056 = vmatpush2.bf16.msra.mxu0 0
        %1057 = vmatprep.subr.bf16.mxu0 0
        %1058 = vmatpush2.bf16.msra.mxu0 0
        %1059 = vmatprep.mubr.bf16.mxu0 0
        %1060 = vmatmul.mubr.bf16.gmra.mxu0 %v1022
        %v1061 = vpop.f32.mrf.mxu0
        %v1062 = vadd.f32 %v1003, %v1061
        %v1063 = vpop.f32.mrf.mxu0
        %v1064 = vadd.f32 %v1003, %v1063
        %v1065 = vpop.f32.mrf.mxu0
        %v1066 = vadd.f32 %v1008, %v1065
        %v1067 = vpop.f32.mrf.mxu0
        %v1068 = vadd.f32 %v1008, %v1067
        %1069 = vmatprep.mubr.bf16.mxu0 0
        %1070 = vmatmul.mubr.bf16.gmra.mxu0 %v1025
        %v1071 = vpop.f32.mrf.mxu0
        %v1072 = vadd.f32 %v1013, %v1071
        %v1073 = vpop.f32.mrf.mxu0
        %v1074 = vadd.f32 %v1013, %v1073
        %v1075 = vpop.f32.mrf.mxu0
        %v1076 = vadd.f32 %v1018, %v1075
        %v1077 = vpop.f32.mrf.mxu0
        %v1078 = vadd.f32 %v1018, %v1077
        %1079 = vdwg.mxu0
        %1080 = vmatprep.subr.bf16.mxu0 0
        %1081 = vmatpush1.bf16.msra.mxu0 0
        %1082 = vmatprep.subr.bf16.mxu0 0
        %1083 = vmatpush1.bf16.msra.mxu0 0
        %1084 = vmatprep.subr.bf16.mxu0 0
        %1085 = vmatpush1.bf16.msra.mxu0 0
        %1086 = vmatprep.subr.bf16.mxu0 0
        %1087 = vmatpush1.bf16.msra.mxu0 0
        %1088 = vmatprep.subr.bf16.mxu0 0
        %1089 = vmatpush1.bf16.msra.mxu0 0
        %1090 = vmatprep.subr.bf16.mxu0 0
        %1091 = vmatpush1.bf16.msra.mxu0 0
        %1092 = vmatprep.subr.bf16.mxu0 %v984
        %1093 = vmatpush1.bf16.msra.mxu0 %v983
        %1094 = vmatprep.subr.bf16.mxu0 %v976
        %1095 = vmatpush1.bf16.msra.mxu0 %v975
        %1096 = vmatprep.subr.bf16.mxu0 0
        %1097 = vmatpush2.bf16.msra.mxu0 0
        %1098 = vmatprep.subr.bf16.mxu0 0
        %1099 = vmatpush2.bf16.msra.mxu0 0
        %1100 = vmatprep.subr.bf16.mxu0 0
        %1101 = vmatpush2.bf16.msra.mxu0 0
        %1102 = vmatprep.subr.bf16.mxu0 0
        %1103 = vmatpush2.bf16.msra.mxu0 0
        %1104 = vmatprep.subr.bf16.mxu0 0
        %1105 = vmatpush2.bf16.msra.mxu0 0
        %1106 = vmatprep.subr.bf16.mxu0 0
        %1107 = vmatpush2.bf16.msra.mxu0 0
        %1108 = vmatprep.subr.bf16.mxu0 0
        %1109 = vmatpush2.bf16.msra.mxu0 0
        %1110 = vmatprep.subr.bf16.mxu0 0
        %1111 = vmatpush2.bf16.msra.mxu0 0
        %1112 = vmatprep.mubr.bf16.mxu0 0
        %1113 = vmatmul.mubr.bf16.gmra.mxu0 %v1022
        %v1114 = vpop.f32.mrf.mxu0
        %v1115 = vadd.f32 %v1003, %v1114
        %v1116 = vpop.f32.mrf.mxu0
        %v1117 = vadd.f32 %v1003, %v1116
        %v1118 = vpop.f32.mrf.mxu0
        %v1119 = vadd.f32 %v1008, %v1118
        %v1120 = vpop.f32.mrf.mxu0
        %v1121 = vadd.f32 %v1008, %v1120
        %1122 = vmatprep.mubr.bf16.mxu0 0
        %1123 = vmatmul.mubr.bf16.gmra.mxu0 %v1025
        %v1124 = vpop.f32.mrf.mxu0
        %v1125 = vadd.f32 %v1013, %v1124
        %v1126 = vpop.f32.mrf.mxu0
        %v1127 = vadd.f32 %v1013, %v1126
        %v1128 = vpop.f32.mrf.mxu0
        %v1129 = vadd.f32 %v1018, %v1128
        %v1130 = vpop.f32.mrf.mxu0
        %v1131 = vadd.f32 %v1018, %v1130
        %1132 = vdwg.mxu0
        %1133 = vmatprep.subr.bf16.mxu0 0
        %1134 = vmatpush1.bf16.msra.mxu0 0
        %1135 = vmatprep.subr.bf16.mxu0 0
        %1136 = vmatpush1.bf16.msra.mxu0 0
        %1137 = vmatprep.subr.bf16.mxu0 0
        %1138 = vmatpush1.bf16.msra.mxu0 0
        %1139 = vmatprep.subr.bf16.mxu0 0
        %1140 = vmatpush1.bf16.msra.mxu0 0
        %1141 = vmatprep.subr.bf16.mxu0 0
        %1142 = vmatpush1.bf16.msra.mxu0 0
        %1143 = vmatprep.subr.bf16.mxu0 0
        %1144 = vmatpush1.bf16.msra.mxu0 0
        %1145 = vmatprep.subr.bf16.mxu0 %v986
        %1146 = vmatpush1.bf16.msra.mxu0 %v985
        %1147 = vmatprep.subr.bf16.mxu0 %v978
        %1148 = vmatpush1.bf16.msra.mxu0 %v977
        %1149 = vmatprep.subr.bf16.mxu0 0
        %1150 = vmatpush2.bf16.msra.mxu0 0
        %1151 = vmatprep.subr.bf16.mxu0 0
        %1152 = vmatpush2.bf16.msra.mxu0 0
        %1153 = vmatprep.subr.bf16.mxu0 0
        %1154 = vmatpush2.bf16.msra.mxu0 0
        %1155 = vmatprep.subr.bf16.mxu0 0
        %1156 = vmatpush2.bf16.msra.mxu0 0
        %1157 = vmatprep.subr.bf16.mxu0 0
        %1158 = vmatpush2.bf16.msra.mxu0 0
        %1159 = vmatprep.subr.bf16.mxu0 0
        %1160 = vmatpush2.bf16.msra.mxu0 0
        %1161 = vmatprep.subr.bf16.mxu0 0
        %1162 = vmatpush2.bf16.msra.mxu0 0
        %1163 = vmatprep.subr.bf16.mxu0 0
        %1164 = vmatpush2.bf16.msra.mxu0 0
        %1165 = vmatprep.mubr.bf16.mxu0 0
        %1166 = vmatmul.mubr.bf16.gmra.mxu0 %v1022
        %v1167 = vpop.f32.mrf.mxu0
        %v1168 = vadd.f32 %v1003, %v1167
        %v1169 = vpop.f32.mrf.mxu0
        %v1170 = vadd.f32 %v1003, %v1169
        %v1171 = vpop.f32.mrf.mxu0
        %v1172 = vadd.f32 %v1008, %v1171
        %v1173 = vpop.f32.mrf.mxu0
        %v1174 = vadd.f32 %v1008, %v1173
        %1175 = vmatprep.mubr.bf16.mxu0 0
        %1176 = vmatmul.mubr.bf16.gmra.mxu0 %v1025
        %v1177 = vpop.f32.mrf.mxu0
        %v1178 = vadd.f32 %v1013, %v1177
        %v1179 = vpop.f32.mrf.mxu0
        %v1180 = vadd.f32 %v1013, %v1179
        %v1181 = vpop.f32.mrf.mxu0
        %v1182 = vadd.f32 %v1018, %v1181
        %v1183 = vpop.f32.mrf.mxu0
        %v1184 = vadd.f32 %v1018, %v1183
        %1185 = vdwg.mxu0
        %1186 = vmatprep.subr.bf16.mxu0 0
        %1187 = vmatpush1.bf16.msra.mxu0 0
        %1188 = vmatprep.subr.bf16.mxu0 0
        %1189 = vmatpush1.bf16.msra.mxu0 0
        %1190 = vmatprep.subr.bf16.mxu0 0
        %1191 = vmatpush1.bf16.msra.mxu0 0
        %1192 = vmatprep.subr.bf16.mxu0 0
        %1193 = vmatpush1.bf16.msra.mxu0 0
        %1194 = vmatprep.subr.bf16.mxu0 0
        %1195 = vmatpush1.bf16.msra.mxu0 0
        %1196 = vmatprep.subr.bf16.mxu0 0
        %1197 = vmatpush1.bf16.msra.mxu0 0
        %1198 = vmatprep.subr.bf16.mxu0 %v988
        %1199 = vmatpush1.bf16.msra.mxu0 %v987
        %1200 = vmatprep.subr.bf16.mxu0 %v980
        %1201 = vmatpush1.bf16.msra.mxu0 %v979
        %1202 = vmatprep.subr.bf16.mxu0 0
        %1203 = vmatpush2.bf16.msra.mxu0 0
        %1204 = vmatprep.subr.bf16.mxu0 0
        %1205 = vmatpush2.bf16.msra.mxu0 0
        %1206 = vmatprep.subr.bf16.mxu0 0
        %1207 = vmatpush2.bf16.msra.mxu0 0
        %1208 = vmatprep.subr.bf16.mxu0 0
        %1209 = vmatpush2.bf16.msra.mxu0 0
        %1210 = vmatprep.subr.bf16.mxu0 0
        %1211 = vmatpush2.bf16.msra.mxu0 0
        %1212 = vmatprep.subr.bf16.mxu0 0
        %1213 = vmatpush2.bf16.msra.mxu0 0
        %1214 = vmatprep.subr.bf16.mxu0 0
        %1215 = vmatpush2.bf16.msra.mxu0 0
        %1216 = vmatprep.subr.bf16.mxu0 0
        %1217 = vmatpush2.bf16.msra.mxu0 0
        %1218 = vmatprep.mubr.bf16.mxu0 0
        %1219 = vmatmul.mubr.bf16.gmra.mxu0 %v1022
        %v1220 = vpop.f32.mrf.mxu0
        %v1221 = vadd.f32 %v1003, %v1220
        %v1222 = vpop.f32.mrf.mxu0
        %v1223 = vadd.f32 %v1003, %v1222
        %v1224 = vpop.f32.mrf.mxu0
        %v1225 = vadd.f32 %v1008, %v1224
        %v1226 = vpop.f32.mrf.mxu0
        %v1227 = vadd.f32 %v1008, %v1226
        %1228 = vmatprep.mubr.bf16.mxu0 0
        %1229 = vmatmul.mubr.bf16.gmra.mxu0 %v1025
        %v1230 = vpop.f32.mrf.mxu0
        %v1231 = vadd.f32 %v1013, %v1230
        %v1232 = vpop.f32.mrf.mxu0
        %v1233 = vadd.f32 %v1013, %v1232
        %v1234 = vpop.f32.mrf.mxu0
        %v1235 = vadd.f32 %v1018, %v1234
        %v1236 = vpop.f32.mrf.mxu0
        %v1237 = vadd.f32 %v1018, %v1236
        %1238 = vdwg.mxu0
        %v1239 = vmax.f32 %v1062, 0.0
        %v1240 = vmax.f32 %v1064, 0.0
        %v1241 = vmax.f32 %v1115, 0.0
        %v1242 = vmax.f32 %v1117, 0.0
        %v1243 = vmax.f32 %v1168, 0.0
        %v1244 = vmax.f32 %v1170, 0.0
        %v1245 = vmax.f32 %v1221, 0.0
        %v1246 = vmax.f32 %v1223, 0.0
        %v1247 = vmax.f32 %v1066, 0.0
        %v1248 = vmax.f32 %v1068, 0.0
        %v1249 = vmax.f32 %v1119, 0.0
        %v1250 = vmax.f32 %v1121, 0.0
        %v1251 = vmax.f32 %v1172, 0.0
        %v1252 = vmax.f32 %v1174, 0.0
        %v1253 = vmax.f32 %v1225, 0.0
        %v1254 = vmax.f32 %v1227, 0.0
        %v1255 = vmax.f32 %v1072, 0.0
        %v1256 = vmax.f32 %v1074, 0.0
        %v1257 = vmax.f32 %v1125, 0.0
        %v1258 = vmax.f32 %v1127, 0.0
        %v1259 = vmax.f32 %v1178, 0.0
        %v1260 = vmax.f32 %v1180, 0.0
        %v1261 = vmax.f32 %v1231, 0.0
        %v1262 = vmax.f32 %v1233, 0.0
        %v1263 = vmax.f32 %v1076, 0.0
        %v1264 = vmax.f32 %v1078, 0.0
        %v1265 = vmax.f32 %v1129, 0.0
        %v1266 = vmax.f32 %v1131, 0.0
        %v1267 = vmax.f32 %v1182, 0.0
        %v1268 = vmax.f32 %v1184, 0.0
        %v1269 = vmax.f32 %v1235, 0.0
        %v1270 = vmax.f32 %v1237, 0.0
        %v1271 = vpack.c.bf16 %v1247, %v1239
        %v1272 = vpack.c.bf16 %v1248, %v1240
        %v1273 = vpack.c.bf16 %v1249, %v1241
        %v1274 = vpack.c.bf16 %v1250, %v1242
        %v1275 = vpack.c.bf16 %v1251, %v1243
        %v1276 = vpack.c.bf16 %v1252, %v1244
        %v1277 = vpack.c.bf16 %v1253, %v1245
        %v1278 = vpack.c.bf16 %v1254, %v1246
        %v1279 = vpack.c.bf16 %v1263, %v1255
        %v1280 = vpack.c.bf16 %v1264, %v1256
        %v1281 = vpack.c.bf16 %v1265, %v1257
        %v1282 = vpack.c.bf16 %v1266, %v1258
        %v1283 = vpack.c.bf16 %v1267, %v1259
        %v1284 = vpack.c.bf16 %v1268, %v1260
        %v1285 = vpack.c.bf16 %v1269, %v1261
        %v1286 = vpack.c.bf16 %v1270, %v1262
        %s1287 = scalar_lea.vmem %s2, 32
        %v1288 = vld [vmem:[%s1287] sm:$0xff]
        %v1289 = vld [vmem:[%s1287 + $0x8] sm:$0xff]
        %v1290 = vld [vmem:[%s1287 + $0x10] sm:$0xff]
        %v1291 = vld [vmem:[%s1287 + $0x18] sm:$0xff]
        %v1292 = vpack.c.bf16 %v1289, %v1288
        %v1293 = vpack.c.bf16 %v1291, %v1290
        %s1294 = scalar_lea.vmem %s5, 64
        %v1295 = vld [vmem:[%s1294] sm:$0xff]
        %v1296 = vld [vmem:[%s1294 + $0x8] sm:$0xff]
        %v1297 = vld [vmem:[%s1294 + $0x10] sm:$0xff]
        %v1298 = vld [vmem:[%s1294 + $0x18] sm:$0xff]
        %1300 = vset.pattern.permute.xlu0 0
        %1301 = vperm.xlu0 %1300, %v1295
        %v1302 = vpop.permute.xlu0 %1301
        %1305 = vset.pattern.permute.xlu0 0
        %1306 = vperm.xlu0 %1305, %v1296
        %v1307 = vpop.permute.xlu0 %1306
        %1310 = vset.pattern.permute.xlu0 0
        %1311 = vperm.xlu0 %1310, %v1297
        %v1312 = vpop.permute.xlu0 %1311
        %1315 = vset.pattern.permute.xlu0 0
        %1316 = vperm.xlu0 %1315, %v1298
        %v1317 = vpop.permute.xlu0 %1316
        %v1320 = vsel %vm1020, %v1292, 0
        %v1323 = vsel %vm1020, %v1293, 0
        %1325 = vmatprep.subr.bf16.mxu0 0
        %1326 = vmatpush1.bf16.msra.mxu0 0
        %1327 = vmatprep.subr.bf16.mxu0 0
        %1328 = vmatpush1.bf16.msra.mxu0 0
        %1329 = vmatprep.subr.bf16.mxu0 0
        %1330 = vmatpush1.bf16.msra.mxu0 0
        %1331 = vmatprep.subr.bf16.mxu0 0
        %1332 = vmatpush1.bf16.msra.mxu0 0
        %1333 = vmatprep.subr.bf16.mxu0 0
        %1334 = vmatpush1.bf16.msra.mxu0 0
        %1335 = vmatprep.subr.bf16.mxu0 0
        %1336 = vmatpush1.bf16.msra.mxu0 0
        %1337 = vmatprep.subr.bf16.mxu0 %v1280
        %1338 = vmatpush1.bf16.msra.mxu0 %v1279
        %1339 = vmatprep.subr.bf16.mxu0 %v1272
        %1340 = vmatpush1.bf16.msra.mxu0 %v1271
        %1341 = vmatprep.subr.bf16.mxu0 0
        %1342 = vmatpush2.bf16.msra.mxu0 0
        %1343 = vmatprep.subr.bf16.mxu0 0
        %1344 = vmatpush2.bf16.msra.mxu0 0
        %1345 = vmatprep.subr.bf16.mxu0 0
        %1346 = vmatpush2.bf16.msra.mxu0 0
        %1347 = vmatprep.subr.bf16.mxu0 0
        %1348 = vmatpush2.bf16.msra.mxu0 0
        %1349 = vmatprep.subr.bf16.mxu0 0
        %1350 = vmatpush2.bf16.msra.mxu0 0
        %1351 = vmatprep.subr.bf16.mxu0 0
        %1352 = vmatpush2.bf16.msra.mxu0 0
        %1353 = vmatprep.subr.bf16.mxu0 0
        %1354 = vmatpush2.bf16.msra.mxu0 0
        %1355 = vmatprep.subr.bf16.mxu0 0
        %1356 = vmatpush2.bf16.msra.mxu0 0
        %1357 = vmatprep.mubr.bf16.mxu0 0
        %1358 = vmatmul.mubr.bf16.gmra.mxu0 %v1320
        %v1359 = vpop.f32.mrf.mxu0
        %v1360 = vadd.f32 %v1302, %v1359
        %v1361 = vpop.f32.mrf.mxu0
        %v1362 = vadd.f32 %v1302, %v1361
        %v1363 = vpop.f32.mrf.mxu0
        %v1364 = vadd.f32 %v1307, %v1363
        %v1365 = vpop.f32.mrf.mxu0
        %v1366 = vadd.f32 %v1307, %v1365
        %1367 = vmatprep.mubr.bf16.mxu0 0
        %1368 = vmatmul.mubr.bf16.gmra.mxu0 %v1323
        %v1369 = vpop.f32.mrf.mxu0
        %v1370 = vadd.f32 %v1312, %v1369
        %v1371 = vpop.f32.mrf.mxu0
        %v1372 = vadd.f32 %v1312, %v1371
        %v1373 = vpop.f32.mrf.mxu0
        %v1374 = vadd.f32 %v1317, %v1373
        %v1375 = vpop.f32.mrf.mxu0
        %v1376 = vadd.f32 %v1317, %v1375
        %1377 = vdwg.mxu0
        %1378 = vmatprep.subr.bf16.mxu0 0
        %1379 = vmatpush1.bf16.msra.mxu0 0
        %1380 = vmatprep.subr.bf16.mxu0 0
        %1381 = vmatpush1.bf16.msra.mxu0 0
        %1382 = vmatprep.subr.bf16.mxu0 0
        %1383 = vmatpush1.bf16.msra.mxu0 0
        %1384 = vmatprep.subr.bf16.mxu0 0
        %1385 = vmatpush1.bf16.msra.mxu0 0
        %1386 = vmatprep.subr.bf16.mxu0 0
        %1387 = vmatpush1.bf16.msra.mxu0 0
        %1388 = vmatprep.subr.bf16.mxu0 0
        %1389 = vmatpush1.bf16.msra.mxu0 0
        %1390 = vmatprep.subr.bf16.mxu0 %v1282
        %1391 = vmatpush1.bf16.msra.mxu0 %v1281
        %1392 = vmatprep.subr.bf16.mxu0 %v1274
        %1393 = vmatpush1.bf16.msra.mxu0 %v1273
        %1394 = vmatprep.subr.bf16.mxu0 0
        %1395 = vmatpush2.bf16.msra.mxu0 0
        %1396 = vmatprep.subr.bf16.mxu0 0
        %1397 = vmatpush2.bf16.msra.mxu0 0
        %1398 = vmatprep.subr.bf16.mxu0 0
        %1399 = vmatpush2.bf16.msra.mxu0 0
        %1400 = vmatprep.subr.bf16.mxu0 0
        %1401 = vmatpush2.bf16.msra.mxu0 0
        %1402 = vmatprep.subr.bf16.mxu0 0
        %1403 = vmatpush2.bf16.msra.mxu0 0
        %1404 = vmatprep.subr.bf16.mxu0 0
        %1405 = vmatpush2.bf16.msra.mxu0 0
        %1406 = vmatprep.subr.bf16.mxu0 0
        %1407 = vmatpush2.bf16.msra.mxu0 0
        %1408 = vmatprep.subr.bf16.mxu0 0
        %1409 = vmatpush2.bf16.msra.mxu0 0
        %1410 = vmatprep.mubr.bf16.mxu0 0
        %1411 = vmatmul.mubr.bf16.gmra.mxu0 %v1320
        %v1412 = vpop.f32.mrf.mxu0
        %v1413 = vadd.f32 %v1302, %v1412
        %v1414 = vpop.f32.mrf.mxu0
        %v1415 = vadd.f32 %v1302, %v1414
        %v1416 = vpop.f32.mrf.mxu0
        %v1417 = vadd.f32 %v1307, %v1416
        %v1418 = vpop.f32.mrf.mxu0
        %v1419 = vadd.f32 %v1307, %v1418
        %1420 = vmatprep.mubr.bf16.mxu0 0
        %1421 = vmatmul.mubr.bf16.gmra.mxu0 %v1323
        %v1422 = vpop.f32.mrf.mxu0
        %v1423 = vadd.f32 %v1312, %v1422
        %v1424 = vpop.f32.mrf.mxu0
        %v1425 = vadd.f32 %v1312, %v1424
        %v1426 = vpop.f32.mrf.mxu0
        %v1427 = vadd.f32 %v1317, %v1426
        %v1428 = vpop.f32.mrf.mxu0
        %v1429 = vadd.f32 %v1317, %v1428
        %1430 = vdwg.mxu0
        %1431 = vmatprep.subr.bf16.mxu0 0
        %1432 = vmatpush1.bf16.msra.mxu0 0
        %1433 = vmatprep.subr.bf16.mxu0 0
        %1434 = vmatpush1.bf16.msra.mxu0 0
        %1435 = vmatprep.subr.bf16.mxu0 0
        %1436 = vmatpush1.bf16.msra.mxu0 0
        %1437 = vmatprep.subr.bf16.mxu0 0
        %1438 = vmatpush1.bf16.msra.mxu0 0
        %1439 = vmatprep.subr.bf16.mxu0 0
        %1440 = vmatpush1.bf16.msra.mxu0 0
        %1441 = vmatprep.subr.bf16.mxu0 0
        %1442 = vmatpush1.bf16.msra.mxu0 0
        %1443 = vmatprep.subr.bf16.mxu0 %v1284
        %1444 = vmatpush1.bf16.msra.mxu0 %v1283
        %1445 = vmatprep.subr.bf16.mxu0 %v1276
        %1446 = vmatpush1.bf16.msra.mxu0 %v1275
        %1447 = vmatprep.subr.bf16.mxu0 0
        %1448 = vmatpush2.bf16.msra.mxu0 0
        %1449 = vmatprep.subr.bf16.mxu0 0
        %1450 = vmatpush2.bf16.msra.mxu0 0
        %1451 = vmatprep.subr.bf16.mxu0 0
        %1452 = vmatpush2.bf16.msra.mxu0 0
        %1453 = vmatprep.subr.bf16.mxu0 0
        %1454 = vmatpush2.bf16.msra.mxu0 0
        %1455 = vmatprep.subr.bf16.mxu0 0
        %1456 = vmatpush2.bf16.msra.mxu0 0
        %1457 = vmatprep.subr.bf16.mxu0 0
        %1458 = vmatpush2.bf16.msra.mxu0 0
        %1459 = vmatprep.subr.bf16.mxu0 0
        %1460 = vmatpush2.bf16.msra.mxu0 0
        %1461 = vmatprep.subr.bf16.mxu0 0
        %1462 = vmatpush2.bf16.msra.mxu0 0
        %1463 = vmatprep.mubr.bf16.mxu0 0
        %1464 = vmatmul.mubr.bf16.gmra.mxu0 %v1320
        %v1465 = vpop.f32.mrf.mxu0
        %v1466 = vadd.f32 %v1302, %v1465
        %v1467 = vpop.f32.mrf.mxu0
        %v1468 = vadd.f32 %v1302, %v1467
        %v1469 = vpop.f32.mrf.mxu0
        %v1470 = vadd.f32 %v1307, %v1469
        %v1471 = vpop.f32.mrf.mxu0
        %v1472 = vadd.f32 %v1307, %v1471
        %1473 = vmatprep.mubr.bf16.mxu0 0
        %1474 = vmatmul.mubr.bf16.gmra.mxu0 %v1323
        %v1475 = vpop.f32.mrf.mxu0
        %v1476 = vadd.f32 %v1312, %v1475
        %v1477 = vpop.f32.mrf.mxu0
        %v1478 = vadd.f32 %v1312, %v1477
        %v1479 = vpop.f32.mrf.mxu0
        %v1480 = vadd.f32 %v1317, %v1479
        %v1481 = vpop.f32.mrf.mxu0
        %v1482 = vadd.f32 %v1317, %v1481
        %1483 = vdwg.mxu0
        %1484 = vmatprep.subr.bf16.mxu0 0
        %1485 = vmatpush1.bf16.msra.mxu0 0
        %1486 = vmatprep.subr.bf16.mxu0 0
        %1487 = vmatpush1.bf16.msra.mxu0 0
        %1488 = vmatprep.subr.bf16.mxu0 0
        %1489 = vmatpush1.bf16.msra.mxu0 0
        %1490 = vmatprep.subr.bf16.mxu0 0
        %1491 = vmatpush1.bf16.msra.mxu0 0
        %1492 = vmatprep.subr.bf16.mxu0 0
        %1493 = vmatpush1.bf16.msra.mxu0 0
        %1494 = vmatprep.subr.bf16.mxu0 0
        %1495 = vmatpush1.bf16.msra.mxu0 0
        %1496 = vmatprep.subr.bf16.mxu0 %v1286
        %1497 = vmatpush1.bf16.msra.mxu0 %v1285
        %1498 = vmatprep.subr.bf16.mxu0 %v1278
        %1499 = vmatpush1.bf16.msra.mxu0 %v1277
        %1500 = vmatprep.subr.bf16.mxu0 0
        %1501 = vmatpush2.bf16.msra.mxu0 0
        %1502 = vmatprep.subr.bf16.mxu0 0
        %1503 = vmatpush2.bf16.msra.mxu0 0
        %1504 = vmatprep.subr.bf16.mxu0 0
        %1505 = vmatpush2.bf16.msra.mxu0 0
        %1506 = vmatprep.subr.bf16.mxu0 0
        %1507 = vmatpush2.bf16.msra.mxu0 0
        %1508 = vmatprep.subr.bf16.mxu0 0
        %1509 = vmatpush2.bf16.msra.mxu0 0
        %1510 = vmatprep.subr.bf16.mxu0 0
        %1511 = vmatpush2.bf16.msra.mxu0 0
        %1512 = vmatprep.subr.bf16.mxu0 0
        %1513 = vmatpush2.bf16.msra.mxu0 0
        %1514 = vmatprep.subr.bf16.mxu0 0
        %1515 = vmatpush2.bf16.msra.mxu0 0
        %1516 = vmatprep.mubr.bf16.mxu0 0
        %1517 = vmatmul.mubr.bf16.gmra.mxu0 %v1320
        %v1518 = vpop.f32.mrf.mxu0
        %v1519 = vadd.f32 %v1302, %v1518
        %v1520 = vpop.f32.mrf.mxu0
        %v1521 = vadd.f32 %v1302, %v1520
        %v1522 = vpop.f32.mrf.mxu0
        %v1523 = vadd.f32 %v1307, %v1522
        %v1524 = vpop.f32.mrf.mxu0
        %v1525 = vadd.f32 %v1307, %v1524
        %1526 = vmatprep.mubr.bf16.mxu0 0
        %1527 = vmatmul.mubr.bf16.gmra.mxu0 %v1323
        %v1528 = vpop.f32.mrf.mxu0
        %v1529 = vadd.f32 %v1312, %v1528
        %v1530 = vpop.f32.mrf.mxu0
        %v1531 = vadd.f32 %v1312, %v1530
        %v1532 = vpop.f32.mrf.mxu0
        %v1533 = vadd.f32 %v1317, %v1532
        %v1534 = vpop.f32.mrf.mxu0
        %v1535 = vadd.f32 %v1317, %v1534
        %1536 = vdwg.mxu0
        %v1537 = vmax.f32 %v1360, 0.0
        %v1538 = vmax.f32 %v1362, 0.0
        %v1539 = vmax.f32 %v1413, 0.0
        %v1540 = vmax.f32 %v1415, 0.0
        %v1541 = vmax.f32 %v1466, 0.0
        %v1542 = vmax.f32 %v1468, 0.0
        %v1543 = vmax.f32 %v1519, 0.0
        %v1544 = vmax.f32 %v1521, 0.0
        %v1545 = vmax.f32 %v1364, 0.0
        %v1546 = vmax.f32 %v1366, 0.0
        %v1547 = vmax.f32 %v1417, 0.0
        %v1548 = vmax.f32 %v1419, 0.0
        %v1549 = vmax.f32 %v1470, 0.0
        %v1550 = vmax.f32 %v1472, 0.0
        %v1551 = vmax.f32 %v1523, 0.0
        %v1552 = vmax.f32 %v1525, 0.0
        %v1553 = vmax.f32 %v1370, 0.0
        %v1554 = vmax.f32 %v1372, 0.0
        %v1555 = vmax.f32 %v1423, 0.0
        %v1556 = vmax.f32 %v1425, 0.0
        %v1557 = vmax.f32 %v1476, 0.0
        %v1558 = vmax.f32 %v1478, 0.0
        %v1559 = vmax.f32 %v1529, 0.0
        %v1560 = vmax.f32 %v1531, 0.0
        %v1561 = vmax.f32 %v1374, 0.0
        %v1562 = vmax.f32 %v1376, 0.0
        %v1563 = vmax.f32 %v1427, 0.0
        %v1564 = vmax.f32 %v1429, 0.0
        %v1565 = vmax.f32 %v1480, 0.0
        %v1566 = vmax.f32 %v1482, 0.0
        %v1567 = vmax.f32 %v1533, 0.0
        %v1568 = vmax.f32 %v1535, 0.0
        %v1569 = vpack.c.bf16 %v1545, %v1537
        %v1570 = vpack.c.bf16 %v1546, %v1538
        %v1571 = vpack.c.bf16 %v1547, %v1539
        %v1572 = vpack.c.bf16 %v1548, %v1540
        %v1573 = vpack.c.bf16 %v1549, %v1541
        %v1574 = vpack.c.bf16 %v1550, %v1542
        %v1575 = vpack.c.bf16 %v1551, %v1543
        %v1576 = vpack.c.bf16 %v1552, %v1544
        %v1577 = vpack.c.bf16 %v1561, %v1553
        %v1578 = vpack.c.bf16 %v1562, %v1554
        %v1579 = vpack.c.bf16 %v1563, %v1555
        %v1580 = vpack.c.bf16 %v1564, %v1556
        %v1581 = vpack.c.bf16 %v1565, %v1557
        %v1582 = vpack.c.bf16 %v1566, %v1558
        %v1583 = vpack.c.bf16 %v1567, %v1559
        %v1584 = vpack.c.bf16 %v1568, %v1560
        %s1585 = scalar_lea.vmem %s2, 64
        %v1586 = vld [vmem:[%s1585] sm:$0xff]
        %v1587 = vld [vmem:[%s1585 + $0x8] sm:$0xff]
        %v1588 = vld [vmem:[%s1585 + $0x10] sm:$0xff]
        %v1589 = vld [vmem:[%s1585 + $0x18] sm:$0xff]
        %v1590 = vpack.c.bf16 %v1587, %v1586
        %v1591 = vpack.c.bf16 %v1589, %v1588
        %s1592 = scalar_lea.vmem %s5, 96
        %v1593 = vld [vmem:[%s1592] sm:$0xff]
        %v1594 = vld [vmem:[%s1592 + $0x8] sm:$0xff]
        %v1595 = vld [vmem:[%s1592 + $0x10] sm:$0xff]
        %v1596 = vld [vmem:[%s1592 + $0x18] sm:$0xff]
        %1598 = vset.pattern.permute.xlu0 0
        %1599 = vperm.xlu0 %1598, %v1593
        %v1600 = vpop.permute.xlu0 %1599
        %1603 = vset.pattern.permute.xlu0 0
        %1604 = vperm.xlu0 %1603, %v1594
        %v1605 = vpop.permute.xlu0 %1604
        %1608 = vset.pattern.permute.xlu0 0
        %1609 = vperm.xlu0 %1608, %v1595
        %v1610 = vpop.permute.xlu0 %1609
        %1613 = vset.pattern.permute.xlu0 0
        %1614 = vperm.xlu0 %1613, %v1596
        %v1615 = vpop.permute.xlu0 %1614
        %v1618 = vsel %vm1020, %v1590, 0
        %v1621 = vsel %vm1020, %v1591, 0
        %1623 = vmatprep.subr.bf16.mxu0 0
        %1624 = vmatpush1.bf16.msra.mxu0 0
        %1625 = vmatprep.subr.bf16.mxu0 0
        %1626 = vmatpush1.bf16.msra.mxu0 0
        %1627 = vmatprep.subr.bf16.mxu0 0
        %1628 = vmatpush1.bf16.msra.mxu0 0
        %1629 = vmatprep.subr.bf16.mxu0 0
        %1630 = vmatpush1.bf16.msra.mxu0 0
        %1631 = vmatprep.subr.bf16.mxu0 0
        %1632 = vmatpush1.bf16.msra.mxu0 0
        %1633 = vmatprep.subr.bf16.mxu0 0
        %1634 = vmatpush1.bf16.msra.mxu0 0
        %1635 = vmatprep.subr.bf16.mxu0 %v1578
        %1636 = vmatpush1.bf16.msra.mxu0 %v1577
        %1637 = vmatprep.subr.bf16.mxu0 %v1570
        %1638 = vmatpush1.bf16.msra.mxu0 %v1569
        %1639 = vmatprep.subr.bf16.mxu0 0
        %1640 = vmatpush2.bf16.msra.mxu0 0
        %1641 = vmatprep.subr.bf16.mxu0 0
        %1642 = vmatpush2.bf16.msra.mxu0 0
        %1643 = vmatprep.subr.bf16.mxu0 0
        %1644 = vmatpush2.bf16.msra.mxu0 0
        %1645 = vmatprep.subr.bf16.mxu0 0
        %1646 = vmatpush2.bf16.msra.mxu0 0
        %1647 = vmatprep.subr.bf16.mxu0 0
        %1648 = vmatpush2.bf16.msra.mxu0 0
        %1649 = vmatprep.subr.bf16.mxu0 0
        %1650 = vmatpush2.bf16.msra.mxu0 0
        %1651 = vmatprep.subr.bf16.mxu0 0
        %1652 = vmatpush2.bf16.msra.mxu0 0
        %1653 = vmatprep.subr.bf16.mxu0 0
        %1654 = vmatpush2.bf16.msra.mxu0 0
        %1655 = vmatprep.mubr.bf16.mxu0 0
        %1656 = vmatmul.mubr.bf16.gmra.mxu0 %v1618
        %v1657 = vpop.f32.mrf.mxu0
        %v1658 = vadd.f32 %v1600, %v1657
        %v1659 = vpop.f32.mrf.mxu0
        %v1660 = vadd.f32 %v1600, %v1659
        %v1661 = vpop.f32.mrf.mxu0
        %v1662 = vadd.f32 %v1605, %v1661
        %v1663 = vpop.f32.mrf.mxu0
        %v1664 = vadd.f32 %v1605, %v1663
        %1665 = vmatprep.mubr.bf16.mxu0 0
        %1666 = vmatmul.mubr.bf16.gmra.mxu0 %v1621
        %v1667 = vpop.f32.mrf.mxu0
        %v1668 = vadd.f32 %v1610, %v1667
        %v1669 = vpop.f32.mrf.mxu0
        %v1670 = vadd.f32 %v1610, %v1669
        %v1671 = vpop.f32.mrf.mxu0
        %v1672 = vadd.f32 %v1615, %v1671
        %v1673 = vpop.f32.mrf.mxu0
        %v1674 = vadd.f32 %v1615, %v1673
        %1675 = vdwg.mxu0
        %1676 = vmatprep.subr.bf16.mxu0 0
        %1677 = vmatpush1.bf16.msra.mxu0 0
        %1678 = vmatprep.subr.bf16.mxu0 0
        %1679 = vmatpush1.bf16.msra.mxu0 0
        %1680 = vmatprep.subr.bf16.mxu0 0
        %1681 = vmatpush1.bf16.msra.mxu0 0
        %1682 = vmatprep.subr.bf16.mxu0 0
        %1683 = vmatpush1.bf16.msra.mxu0 0
        %1684 = vmatprep.subr.bf16.mxu0 0
        %1685 = vmatpush1.bf16.msra.mxu0 0
        %1686 = vmatprep.subr.bf16.mxu0 0
        %1687 = vmatpush1.bf16.msra.mxu0 0
        %1688 = vmatprep.subr.bf16.mxu0 %v1580
        %1689 = vmatpush1.bf16.msra.mxu0 %v1579
        %1690 = vmatprep.subr.bf16.mxu0 %v1572
        %1691 = vmatpush1.bf16.msra.mxu0 %v1571
        %1692 = vmatprep.subr.bf16.mxu0 0
        %1693 = vmatpush2.bf16.msra.mxu0 0
        %1694 = vmatprep.subr.bf16.mxu0 0
        %1695 = vmatpush2.bf16.msra.mxu0 0
        %1696 = vmatprep.subr.bf16.mxu0 0
        %1697 = vmatpush2.bf16.msra.mxu0 0
        %1698 = vmatprep.subr.bf16.mxu0 0
        %1699 = vmatpush2.bf16.msra.mxu0 0
        %1700 = vmatprep.subr.bf16.mxu0 0
        %1701 = vmatpush2.bf16.msra.mxu0 0
        %1702 = vmatprep.subr.bf16.mxu0 0
        %1703 = vmatpush2.bf16.msra.mxu0 0
        %1704 = vmatprep.subr.bf16.mxu0 0
        %1705 = vmatpush2.bf16.msra.mxu0 0
        %1706 = vmatprep.subr.bf16.mxu0 0
        %1707 = vmatpush2.bf16.msra.mxu0 0
        %1708 = vmatprep.mubr.bf16.mxu0 0
        %1709 = vmatmul.mubr.bf16.gmra.mxu0 %v1618
        %v1710 = vpop.f32.mrf.mxu0
        %v1711 = vadd.f32 %v1600, %v1710
        %v1712 = vpop.f32.mrf.mxu0
        %v1713 = vadd.f32 %v1600, %v1712
        %v1714 = vpop.f32.mrf.mxu0
        %v1715 = vadd.f32 %v1605, %v1714
        %v1716 = vpop.f32.mrf.mxu0
        %v1717 = vadd.f32 %v1605, %v1716
        %1718 = vmatprep.mubr.bf16.mxu0 0
        %1719 = vmatmul.mubr.bf16.gmra.mxu0 %v1621
        %v1720 = vpop.f32.mrf.mxu0
        %v1721 = vadd.f32 %v1610, %v1720
        %v1722 = vpop.f32.mrf.mxu0
        %v1723 = vadd.f32 %v1610, %v1722
        %v1724 = vpop.f32.mrf.mxu0
        %v1725 = vadd.f32 %v1615, %v1724
        %v1726 = vpop.f32.mrf.mxu0
        %v1727 = vadd.f32 %v1615, %v1726
        %1728 = vdwg.mxu0
        %1729 = vmatprep.subr.bf16.mxu0 0
        %1730 = vmatpush1.bf16.msra.mxu0 0
        %1731 = vmatprep.subr.bf16.mxu0 0
        %1732 = vmatpush1.bf16.msra.mxu0 0
        %1733 = vmatprep.subr.bf16.mxu0 0
        %1734 = vmatpush1.bf16.msra.mxu0 0
        %1735 = vmatprep.subr.bf16.mxu0 0
        %1736 = vmatpush1.bf16.msra.mxu0 0
        %1737 = vmatprep.subr.bf16.mxu0 0
        %1738 = vmatpush1.bf16.msra.mxu0 0
        %1739 = vmatprep.subr.bf16.mxu0 0
        %1740 = vmatpush1.bf16.msra.mxu0 0
        %1741 = vmatprep.subr.bf16.mxu0 %v1582
        %1742 = vmatpush1.bf16.msra.mxu0 %v1581
        %1743 = vmatprep.subr.bf16.mxu0 %v1574
        %1744 = vmatpush1.bf16.msra.mxu0 %v1573
        %1745 = vmatprep.subr.bf16.mxu0 0
        %1746 = vmatpush2.bf16.msra.mxu0 0
        %1747 = vmatprep.subr.bf16.mxu0 0
        %1748 = vmatpush2.bf16.msra.mxu0 0
        %1749 = vmatprep.subr.bf16.mxu0 0
        %1750 = vmatpush2.bf16.msra.mxu0 0
        %1751 = vmatprep.subr.bf16.mxu0 0
        %1752 = vmatpush2.bf16.msra.mxu0 0
        %1753 = vmatprep.subr.bf16.mxu0 0
        %1754 = vmatpush2.bf16.msra.mxu0 0
        %1755 = vmatprep.subr.bf16.mxu0 0
        %1756 = vmatpush2.bf16.msra.mxu0 0
        %1757 = vmatprep.subr.bf16.mxu0 0
        %1758 = vmatpush2.bf16.msra.mxu0 0
        %1759 = vmatprep.subr.bf16.mxu0 0
        %1760 = vmatpush2.bf16.msra.mxu0 0
        %1761 = vmatprep.mubr.bf16.mxu0 0
        %1762 = vmatmul.mubr.bf16.gmra.mxu0 %v1618
        %v1763 = vpop.f32.mrf.mxu0
        %v1764 = vadd.f32 %v1600, %v1763
        %v1765 = vpop.f32.mrf.mxu0
        %v1766 = vadd.f32 %v1600, %v1765
        %v1767 = vpop.f32.mrf.mxu0
        %v1768 = vadd.f32 %v1605, %v1767
        %v1769 = vpop.f32.mrf.mxu0
        %v1770 = vadd.f32 %v1605, %v1769
        %1771 = vmatprep.mubr.bf16.mxu0 0
        %1772 = vmatmul.mubr.bf16.gmra.mxu0 %v1621
        %v1773 = vpop.f32.mrf.mxu0
        %v1774 = vadd.f32 %v1610, %v1773
        %v1775 = vpop.f32.mrf.mxu0
        %v1776 = vadd.f32 %v1610, %v1775
        %v1777 = vpop.f32.mrf.mxu0
        %v1778 = vadd.f32 %v1615, %v1777
        %v1779 = vpop.f32.mrf.mxu0
        %v1780 = vadd.f32 %v1615, %v1779
        %1781 = vdwg.mxu0
        %1782 = vmatprep.subr.bf16.mxu0 0
        %1783 = vmatpush1.bf16.msra.mxu0 0
        %1784 = vmatprep.subr.bf16.mxu0 0
        %1785 = vmatpush1.bf16.msra.mxu0 0
        %1786 = vmatprep.subr.bf16.mxu0 0
        %1787 = vmatpush1.bf16.msra.mxu0 0
        %1788 = vmatprep.subr.bf16.mxu0 0
        %1789 = vmatpush1.bf16.msra.mxu0 0
        %1790 = vmatprep.subr.bf16.mxu0 0
        %1791 = vmatpush1.bf16.msra.mxu0 0
        %1792 = vmatprep.subr.bf16.mxu0 0
        %1793 = vmatpush1.bf16.msra.mxu0 0
        %1794 = vmatprep.subr.bf16.mxu0 %v1584
        %1795 = vmatpush1.bf16.msra.mxu0 %v1583
        %1796 = vmatprep.subr.bf16.mxu0 %v1576
        %1797 = vmatpush1.bf16.msra.mxu0 %v1575
        %1798 = vmatprep.subr.bf16.mxu0 0
        %1799 = vmatpush2.bf16.msra.mxu0 0
        %1800 = vmatprep.subr.bf16.mxu0 0
        %1801 = vmatpush2.bf16.msra.mxu0 0
        %1802 = vmatprep.subr.bf16.mxu0 0
        %1803 = vmatpush2.bf16.msra.mxu0 0
        %1804 = vmatprep.subr.bf16.mxu0 0
        %1805 = vmatpush2.bf16.msra.mxu0 0
        %1806 = vmatprep.subr.bf16.mxu0 0
        %1807 = vmatpush2.bf16.msra.mxu0 0
        %1808 = vmatprep.subr.bf16.mxu0 0
        %1809 = vmatpush2.bf16.msra.mxu0 0
        %1810 = vmatprep.subr.bf16.mxu0 0
        %1811 = vmatpush2.bf16.msra.mxu0 0
        %1812 = vmatprep.subr.bf16.mxu0 0
        %1813 = vmatpush2.bf16.msra.mxu0 0
        %1814 = vmatprep.mubr.bf16.mxu0 0
        %1815 = vmatmul.mubr.bf16.gmra.mxu0 %v1618
        %v1816 = vpop.f32.mrf.mxu0
        %v1817 = vadd.f32 %v1600, %v1816
        %v1818 = vpop.f32.mrf.mxu0
        %v1819 = vadd.f32 %v1600, %v1818
        %v1820 = vpop.f32.mrf.mxu0
        %v1821 = vadd.f32 %v1605, %v1820
        %v1822 = vpop.f32.mrf.mxu0
        %v1823 = vadd.f32 %v1605, %v1822
        %1824 = vmatprep.mubr.bf16.mxu0 0
        %1825 = vmatmul.mubr.bf16.gmra.mxu0 %v1621
        %v1826 = vpop.f32.mrf.mxu0
        %v1827 = vadd.f32 %v1610, %v1826
        %v1828 = vpop.f32.mrf.mxu0
        %v1829 = vadd.f32 %v1610, %v1828
        %v1830 = vpop.f32.mrf.mxu0
        %v1831 = vadd.f32 %v1615, %v1830
        %v1832 = vpop.f32.mrf.mxu0
        %v1833 = vadd.f32 %v1615, %v1832
        %1834 = vdwg.mxu0
        %v1835 = vmax.f32 %v1658, 0.0
        %v1836 = vmax.f32 %v1660, 0.0
        %v1837 = vmax.f32 %v1711, 0.0
        %v1838 = vmax.f32 %v1713, 0.0
        %v1839 = vmax.f32 %v1764, 0.0
        %v1840 = vmax.f32 %v1766, 0.0
        %v1841 = vmax.f32 %v1817, 0.0
        %v1842 = vmax.f32 %v1819, 0.0
        %v1843 = vmax.f32 %v1662, 0.0
        %v1844 = vmax.f32 %v1664, 0.0
        %v1845 = vmax.f32 %v1715, 0.0
        %v1846 = vmax.f32 %v1717, 0.0
        %v1847 = vmax.f32 %v1768, 0.0
        %v1848 = vmax.f32 %v1770, 0.0
        %v1849 = vmax.f32 %v1821, 0.0
        %v1850 = vmax.f32 %v1823, 0.0
        %v1851 = vmax.f32 %v1668, 0.0
        %v1852 = vmax.f32 %v1670, 0.0
        %v1853 = vmax.f32 %v1721, 0.0
        %v1854 = vmax.f32 %v1723, 0.0
        %v1855 = vmax.f32 %v1774, 0.0
        %v1856 = vmax.f32 %v1776, 0.0
        %v1857 = vmax.f32 %v1827, 0.0
        %v1858 = vmax.f32 %v1829, 0.0
        %v1859 = vmax.f32 %v1672, 0.0
        %v1860 = vmax.f32 %v1674, 0.0
        %v1861 = vmax.f32 %v1725, 0.0
        %v1862 = vmax.f32 %v1727, 0.0
        %v1863 = vmax.f32 %v1778, 0.0
        %v1864 = vmax.f32 %v1780, 0.0
        %v1865 = vmax.f32 %v1831, 0.0
        %v1866 = vmax.f32 %v1833, 0.0
        %v1867 = vpack.c.bf16 %v1843, %v1835
        %v1868 = vpack.c.bf16 %v1844, %v1836
        %v1869 = vpack.c.bf16 %v1845, %v1837
        %v1870 = vpack.c.bf16 %v1846, %v1838
        %v1871 = vpack.c.bf16 %v1847, %v1839
        %v1872 = vpack.c.bf16 %v1848, %v1840
        %v1873 = vpack.c.bf16 %v1849, %v1841
        %v1874 = vpack.c.bf16 %v1850, %v1842
        %v1875 = vpack.c.bf16 %v1859, %v1851
        %v1876 = vpack.c.bf16 %v1860, %v1852
        %v1877 = vpack.c.bf16 %v1861, %v1853
        %v1878 = vpack.c.bf16 %v1862, %v1854
        %v1879 = vpack.c.bf16 %v1863, %v1855
        %v1880 = vpack.c.bf16 %v1864, %v1856
        %v1881 = vpack.c.bf16 %v1865, %v1857
        %v1882 = vpack.c.bf16 %v1866, %v1858
        %v1883 = vld [vmem:[%s3] sm:$0xff]
        %v1884 = vld [vmem:[%s3 + $0x8] sm:$0xff]
        %v1885 = vld [vmem:[%s3 + $0x10] sm:$0xff]
        %v1886 = vld [vmem:[%s3 + $0x18] sm:$0xff]
        %v1887 = vpack.c.bf16 %v1884, %v1883
        %v1888 = vpack.c.bf16 %v1886, %v1885
        %v1889 = vld [vmem:[%s4] sm:$0xff]
        %v1890 = vld [vmem:[%s4 + $0x8] sm:$0xff]
        %v1891 = vld [vmem:[%s4 + $0x10] sm:$0xff]
        %v1892 = vld [vmem:[%s4 + $0x18] sm:$0xff]
        %v1893 = vpack.c.bf16 %v1890, %v1889
        %v1894 = vpack.c.bf16 %v1892, %v1891
        %v1896 = vsel %vm530, %v1893, 0
        %v1899 = vsel %vm530, %v1894, 0
        %1901 = vmatprep.subr.bf16.mxu0 0
        %1902 = vmatpush1.bf16.xpose.msra.mxu0 %v559
        %1903 = vmatprep.subr.bf16.mxu0 0
        %1904 = vmatpush1.bf16.xpose.msra.mxu0 %v556
        %1905 = vmatprep.subr.bf16.mxu0 0
        %1906 = vmatpush1.bf16.xpose.msra.mxu0 %v553
        %1907 = vmatprep.subr.bf16.mxu0 0
        %1908 = vmatpush1.bf16.xpose.msra.mxu0 %v550
        %1909 = vmatprep.subr.bf16.mxu0 0
        %1910 = vmatpush1.bf16.xpose.msra.mxu0 %v547
        %1911 = vmatprep.subr.bf16.mxu0 0
        %1912 = vmatpush1.bf16.xpose.msra.mxu0 %v544
        %1913 = vmatprep.subr.bf16.mxu0 0
        %1914 = vmatpush1.bf16.xpose.msra.mxu0 %v541
        %1915 = vmatprep.subr.bf16.mxu0 0
        %1916 = vmatpush1.bf16.xpose.msra.mxu0 %v538
        %1917 = vmatprep.subr.bf16.mxu0 0
        %1918 = vmatpush2.bf16.xpose.msra.mxu0 %v583
        %1919 = vmatprep.subr.bf16.mxu0 0
        %1920 = vmatpush2.bf16.xpose.msra.mxu0 %v580
        %1921 = vmatprep.subr.bf16.mxu0 0
        %1922 = vmatpush2.bf16.xpose.msra.mxu0 %v577
        %1923 = vmatprep.subr.bf16.mxu0 0
        %1924 = vmatpush2.bf16.xpose.msra.mxu0 %v574
        %1925 = vmatprep.subr.bf16.mxu0 0
        %1926 = vmatpush2.bf16.xpose.msra.mxu0 %v571
        %1927 = vmatprep.subr.bf16.mxu0 0
        %1928 = vmatpush2.bf16.xpose.msra.mxu0 %v568
        %1929 = vmatprep.subr.bf16.mxu0 0
        %1930 = vmatpush2.bf16.xpose.msra.mxu0 %v565
        %1931 = vmatprep.subr.bf16.mxu0 0
        %1932 = vmatpush2.bf16.xpose.msra.mxu0 %v562
        %1933 = vmatprep.mubr.bf16.mxu0 0
        %1934 = vmatmul.mubr.bf16.gmra.mxu0 %v1896
        %v1935 = vpop.f32.mrf.mxu0
        %v1936 = vadd.f32 0.0, %v1935
        %v1937 = vpop.f32.mrf.mxu0
        %v1938 = vadd.f32 0.0, %v1937
        %v1939 = vpop.f32.mrf.mxu0
        %v1940 = vadd.f32 0.0, %v1939
        %v1941 = vpop.f32.mrf.mxu0
        %v1942 = vadd.f32 0.0, %v1941
        %1943 = vmatprep.mubr.bf16.mxu0 0
        %1944 = vmatmul.mubr.bf16.gmra.mxu0 %v1899
        %v1945 = vpop.f32.mrf.mxu0
        %v1946 = vadd.f32 0.0, %v1945
        %v1947 = vpop.f32.mrf.mxu0
        %v1948 = vadd.f32 0.0, %v1947
        %v1949 = vpop.f32.mrf.mxu0
        %v1950 = vadd.f32 0.0, %v1949
        %v1951 = vpop.f32.mrf.mxu0
        %v1952 = vadd.f32 0.0, %v1951
        %1953 = vdwg.mxu0
        %1954 = vmatprep.subr.bf16.mxu0 0
        %1955 = vmatpush1.bf16.xpose.msra.mxu0 %v607
        %1956 = vmatprep.subr.bf16.mxu0 0
        %1957 = vmatpush1.bf16.xpose.msra.mxu0 %v604
        %1958 = vmatprep.subr.bf16.mxu0 0
        %1959 = vmatpush1.bf16.xpose.msra.mxu0 %v601
        %1960 = vmatprep.subr.bf16.mxu0 0
        %1961 = vmatpush1.bf16.xpose.msra.mxu0 %v598
        %1962 = vmatprep.subr.bf16.mxu0 0
        %1963 = vmatpush1.bf16.xpose.msra.mxu0 %v595
        %1964 = vmatprep.subr.bf16.mxu0 0
        %1965 = vmatpush1.bf16.xpose.msra.mxu0 %v592
        %1966 = vmatprep.subr.bf16.mxu0 0
        %1967 = vmatpush1.bf16.xpose.msra.mxu0 %v589
        %1968 = vmatprep.subr.bf16.mxu0 0
        %1969 = vmatpush1.bf16.xpose.msra.mxu0 %v586
        %1970 = vmatprep.subr.bf16.mxu0 0
        %1971 = vmatpush2.bf16.xpose.msra.mxu0 %v631
        %1972 = vmatprep.subr.bf16.mxu0 0
        %1973 = vmatpush2.bf16.xpose.msra.mxu0 %v628
        %1974 = vmatprep.subr.bf16.mxu0 0
        %1975 = vmatpush2.bf16.xpose.msra.mxu0 %v625
        %1976 = vmatprep.subr.bf16.mxu0 0
        %1977 = vmatpush2.bf16.xpose.msra.mxu0 %v622
        %1978 = vmatprep.subr.bf16.mxu0 0
        %1979 = vmatpush2.bf16.xpose.msra.mxu0 %v619
        %1980 = vmatprep.subr.bf16.mxu0 0
        %1981 = vmatpush2.bf16.xpose.msra.mxu0 %v616
        %1982 = vmatprep.subr.bf16.mxu0 0
        %1983 = vmatpush2.bf16.xpose.msra.mxu0 %v613
        %1984 = vmatprep.subr.bf16.mxu0 0
        %1985 = vmatpush2.bf16.xpose.msra.mxu0 %v610
        %1986 = vmatprep.mubr.bf16.mxu0 0
        %1987 = vmatmul.mubr.bf16.gmra.mxu0 %v1896
        %v1988 = vpop.f32.mrf.mxu0
        %v1989 = vadd.f32 0.0, %v1988
        %v1990 = vpop.f32.mrf.mxu0
        %v1991 = vadd.f32 0.0, %v1990
        %v1992 = vpop.f32.mrf.mxu0
        %v1993 = vadd.f32 0.0, %v1992
        %v1994 = vpop.f32.mrf.mxu0
        %v1995 = vadd.f32 0.0, %v1994
        %1996 = vmatprep.mubr.bf16.mxu0 0
        %1997 = vmatmul.mubr.bf16.gmra.mxu0 %v1899
        %v1998 = vpop.f32.mrf.mxu0
        %v1999 = vadd.f32 0.0, %v1998
        %v2000 = vpop.f32.mrf.mxu0
        %v2001 = vadd.f32 0.0, %v2000
        %v2002 = vpop.f32.mrf.mxu0
        %v2003 = vadd.f32 0.0, %v2002
        %v2004 = vpop.f32.mrf.mxu0
        %v2005 = vadd.f32 0.0, %v2004
        %2006 = vdwg.mxu0
        %2007 = vmatprep.subr.bf16.mxu0 0
        %2008 = vmatpush1.bf16.xpose.msra.mxu0 %v655
        %2009 = vmatprep.subr.bf16.mxu0 0
        %2010 = vmatpush1.bf16.xpose.msra.mxu0 %v652
        %2011 = vmatprep.subr.bf16.mxu0 0
        %2012 = vmatpush1.bf16.xpose.msra.mxu0 %v649
        %2013 = vmatprep.subr.bf16.mxu0 0
        %2014 = vmatpush1.bf16.xpose.msra.mxu0 %v646
        %2015 = vmatprep.subr.bf16.mxu0 0
        %2016 = vmatpush1.bf16.xpose.msra.mxu0 %v643
        %2017 = vmatprep.subr.bf16.mxu0 0
        %2018 = vmatpush1.bf16.xpose.msra.mxu0 %v640
        %2019 = vmatprep.subr.bf16.mxu0 0
        %2020 = vmatpush1.bf16.xpose.msra.mxu0 %v637
        %2021 = vmatprep.subr.bf16.mxu0 0
        %2022 = vmatpush1.bf16.xpose.msra.mxu0 %v634
        %2023 = vmatprep.subr.bf16.mxu0 0
        %2024 = vmatpush2.bf16.xpose.msra.mxu0 %v679
        %2025 = vmatprep.subr.bf16.mxu0 0
        %2026 = vmatpush2.bf16.xpose.msra.mxu0 %v676
        %2027 = vmatprep.subr.bf16.mxu0 0
        %2028 = vmatpush2.bf16.xpose.msra.mxu0 %v673
        %2029 = vmatprep.subr.bf16.mxu0 0
        %2030 = vmatpush2.bf16.xpose.msra.mxu0 %v670
        %2031 = vmatprep.subr.bf16.mxu0 0
        %2032 = vmatpush2.bf16.xpose.msra.mxu0 %v667
        %2033 = vmatprep.subr.bf16.mxu0 0
        %2034 = vmatpush2.bf16.xpose.msra.mxu0 %v664
        %2035 = vmatprep.subr.bf16.mxu0 0
        %2036 = vmatpush2.bf16.xpose.msra.mxu0 %v661
        %2037 = vmatprep.subr.bf16.mxu0 0
        %2038 = vmatpush2.bf16.xpose.msra.mxu0 %v658
        %2039 = vmatprep.mubr.bf16.mxu0 0
        %2040 = vmatmul.mubr.bf16.gmra.mxu0 %v1896
        %v2041 = vpop.f32.mrf.mxu0
        %v2042 = vadd.f32 0.0, %v2041
        %v2043 = vpop.f32.mrf.mxu0
        %v2044 = vadd.f32 0.0, %v2043
        %v2045 = vpop.f32.mrf.mxu0
        %v2046 = vadd.f32 0.0, %v2045
        %v2047 = vpop.f32.mrf.mxu0
        %v2048 = vadd.f32 0.0, %v2047
        %2049 = vmatprep.mubr.bf16.mxu0 0
        %2050 = vmatmul.mubr.bf16.gmra.mxu0 %v1899
        %v2051 = vpop.f32.mrf.mxu0
        %v2052 = vadd.f32 0.0, %v2051
        %v2053 = vpop.f32.mrf.mxu0
        %v2054 = vadd.f32 0.0, %v2053
        %v2055 = vpop.f32.mrf.mxu0
        %v2056 = vadd.f32 0.0, %v2055
        %v2057 = vpop.f32.mrf.mxu0
        %v2058 = vadd.f32 0.0, %v2057
        %2059 = vdwg.mxu0
        %2060 = vmatprep.subr.bf16.mxu0 0
        %2061 = vmatpush1.bf16.xpose.msra.mxu0 %v703
        %2062 = vmatprep.subr.bf16.mxu0 0
        %2063 = vmatpush1.bf16.xpose.msra.mxu0 %v700
        %2064 = vmatprep.subr.bf16.mxu0 0
        %2065 = vmatpush1.bf16.xpose.msra.mxu0 %v697
        %2066 = vmatprep.subr.bf16.mxu0 0
        %2067 = vmatpush1.bf16.xpose.msra.mxu0 %v694
        %2068 = vmatprep.subr.bf16.mxu0 0
        %2069 = vmatpush1.bf16.xpose.msra.mxu0 %v691
        %2070 = vmatprep.subr.bf16.mxu0 0
        %2071 = vmatpush1.bf16.xpose.msra.mxu0 %v688
        %2072 = vmatprep.subr.bf16.mxu0 0
        %2073 = vmatpush1.bf16.xpose.msra.mxu0 %v685
        %2074 = vmatprep.subr.bf16.mxu0 0
        %2075 = vmatpush1.bf16.xpose.msra.mxu0 %v682
        %2076 = vmatprep.subr.bf16.mxu0 0
        %2077 = vmatpush2.bf16.xpose.msra.mxu0 %v727
        %2078 = vmatprep.subr.bf16.mxu0 0
        %2079 = vmatpush2.bf16.xpose.msra.mxu0 %v724
        %2080 = vmatprep.subr.bf16.mxu0 0
        %2081 = vmatpush2.bf16.xpose.msra.mxu0 %v721
        %2082 = vmatprep.subr.bf16.mxu0 0
        %2083 = vmatpush2.bf16.xpose.msra.mxu0 %v718
        %2084 = vmatprep.subr.bf16.mxu0 0
        %2085 = vmatpush2.bf16.xpose.msra.mxu0 %v715
        %2086 = vmatprep.subr.bf16.mxu0 0
        %2087 = vmatpush2.bf16.xpose.msra.mxu0 %v712
        %2088 = vmatprep.subr.bf16.mxu0 0
        %2089 = vmatpush2.bf16.xpose.msra.mxu0 %v709
        %2090 = vmatprep.subr.bf16.mxu0 0
        %2091 = vmatpush2.bf16.xpose.msra.mxu0 %v706
        %2092 = vmatprep.mubr.bf16.mxu0 0
        %2093 = vmatmul.mubr.bf16.gmra.mxu0 %v1896
        %v2094 = vpop.f32.mrf.mxu0
        %v2095 = vadd.f32 0.0, %v2094
        %v2096 = vpop.f32.mrf.mxu0
        %v2097 = vadd.f32 0.0, %v2096
        %v2098 = vpop.f32.mrf.mxu0
        %v2099 = vadd.f32 0.0, %v2098
        %v2100 = vpop.f32.mrf.mxu0
        %v2101 = vadd.f32 0.0, %v2100
        %2102 = vmatprep.mubr.bf16.mxu0 0
        %2103 = vmatmul.mubr.bf16.gmra.mxu0 %v1899
        %v2104 = vpop.f32.mrf.mxu0
        %v2105 = vadd.f32 0.0, %v2104
        %v2106 = vpop.f32.mrf.mxu0
        %v2107 = vadd.f32 0.0, %v2106
        %v2108 = vpop.f32.mrf.mxu0
        %v2109 = vadd.f32 0.0, %v2108
        %v2110 = vpop.f32.mrf.mxu0
        %v2111 = vadd.f32 0.0, %v2110
        %2112 = vdwg.mxu0
        %v2114 = vsel %vm1020, %v1887, 0
        %v2117 = vsel %vm1020, %v1888, 0
        %2119 = vmatprep.subr.bf16.mxu0 0
        %2120 = vmatpush1.bf16.msra.mxu0 0
        %2121 = vmatprep.subr.bf16.mxu0 0
        %2122 = vmatpush1.bf16.msra.mxu0 0
        %2123 = vmatprep.subr.bf16.mxu0 0
        %2124 = vmatpush1.bf16.msra.mxu0 0
        %2125 = vmatprep.subr.bf16.mxu0 0
        %2126 = vmatpush1.bf16.msra.mxu0 0
        %2127 = vmatprep.subr.bf16.mxu0 0
        %2128 = vmatpush1.bf16.msra.mxu0 0
        %2129 = vmatprep.subr.bf16.mxu0 0
        %2130 = vmatpush1.bf16.msra.mxu0 0
        %2131 = vmatprep.subr.bf16.mxu0 %v1876
        %2132 = vmatpush1.bf16.msra.mxu0 %v1875
        %2133 = vmatprep.subr.bf16.mxu0 %v1868
        %2134 = vmatpush1.bf16.msra.mxu0 %v1867
        %2135 = vmatprep.subr.bf16.mxu0 0
        %2136 = vmatpush2.bf16.msra.mxu0 0
        %2137 = vmatprep.subr.bf16.mxu0 0
        %2138 = vmatpush2.bf16.msra.mxu0 0
        %2139 = vmatprep.subr.bf16.mxu0 0
        %2140 = vmatpush2.bf16.msra.mxu0 0
        %2141 = vmatprep.subr.bf16.mxu0 0
        %2142 = vmatpush2.bf16.msra.mxu0 0
        %2143 = vmatprep.subr.bf16.mxu0 0
        %2144 = vmatpush2.bf16.msra.mxu0 0
        %2145 = vmatprep.subr.bf16.mxu0 0
        %2146 = vmatpush2.bf16.msra.mxu0 0
        %2147 = vmatprep.subr.bf16.mxu0 0
        %2148 = vmatpush2.bf16.msra.mxu0 0
        %2149 = vmatprep.subr.bf16.mxu0 0
        %2150 = vmatpush2.bf16.msra.mxu0 0
        %2151 = vmatprep.mubr.bf16.mxu0 0
        %2152 = vmatmul.mubr.bf16.gmra.mxu0 %v2114
        %v2153 = vpop.f32.mrf.mxu0
        %v2154 = vadd.f32 %v1936, %v2153
        %v2155 = vpop.f32.mrf.mxu0
        %v2156 = vadd.f32 %v1938, %v2155
        %v2157 = vpop.f32.mrf.mxu0
        %v2158 = vadd.f32 %v1940, %v2157
        %v2159 = vpop.f32.mrf.mxu0
        %v2160 = vadd.f32 %v1942, %v2159
        %2161 = vmatprep.mubr.bf16.mxu0 0
        %2162 = vmatmul.mubr.bf16.gmra.mxu0 %v2117
        %v2163 = vpop.f32.mrf.mxu0
        %v2164 = vadd.f32 %v1946, %v2163
        %v2165 = vpop.f32.mrf.mxu0
        %v2166 = vadd.f32 %v1948, %v2165
        %v2167 = vpop.f32.mrf.mxu0
        %v2168 = vadd.f32 %v1950, %v2167
        %v2169 = vpop.f32.mrf.mxu0
        %v2170 = vadd.f32 %v1952, %v2169
        %2171 = vdwg.mxu0
        %2172 = vmatprep.subr.bf16.mxu0 0
        %2173 = vmatpush1.bf16.msra.mxu0 0
        %2174 = vmatprep.subr.bf16.mxu0 0
        %2175 = vmatpush1.bf16.msra.mxu0 0
        %2176 = vmatprep.subr.bf16.mxu0 0
        %2177 = vmatpush1.bf16.msra.mxu0 0
        %2178 = vmatprep.subr.bf16.mxu0 0
        %2179 = vmatpush1.bf16.msra.mxu0 0
        %2180 = vmatprep.subr.bf16.mxu0 0
        %2181 = vmatpush1.bf16.msra.mxu0 0
        %2182 = vmatprep.subr.bf16.mxu0 0
        %2183 = vmatpush1.bf16.msra.mxu0 0
        %2184 = vmatprep.subr.bf16.mxu0 %v1878
        %2185 = vmatpush1.bf16.msra.mxu0 %v1877
        %2186 = vmatprep.subr.bf16.mxu0 %v1870
        %2187 = vmatpush1.bf16.msra.mxu0 %v1869
        %2188 = vmatprep.subr.bf16.mxu0 0
        %2189 = vmatpush2.bf16.msra.mxu0 0
        %2190 = vmatprep.subr.bf16.mxu0 0
        %2191 = vmatpush2.bf16.msra.mxu0 0
        %2192 = vmatprep.subr.bf16.mxu0 0
        %2193 = vmatpush2.bf16.msra.mxu0 0
        %2194 = vmatprep.subr.bf16.mxu0 0
        %2195 = vmatpush2.bf16.msra.mxu0 0
        %2196 = vmatprep.subr.bf16.mxu0 0
        %2197 = vmatpush2.bf16.msra.mxu0 0
        %2198 = vmatprep.subr.bf16.mxu0 0
        %2199 = vmatpush2.bf16.msra.mxu0 0
        %2200 = vmatprep.subr.bf16.mxu0 0
        %2201 = vmatpush2.bf16.msra.mxu0 0
        %2202 = vmatprep.subr.bf16.mxu0 0
        %2203 = vmatpush2.bf16.msra.mxu0 0
        %2204 = vmatprep.mubr.bf16.mxu0 0
        %2205 = vmatmul.mubr.bf16.gmra.mxu0 %v2114
        %v2206 = vpop.f32.mrf.mxu0
        %v2207 = vadd.f32 %v1989, %v2206
        %v2208 = vpop.f32.mrf.mxu0
        %v2209 = vadd.f32 %v1991, %v2208
        %v2210 = vpop.f32.mrf.mxu0
        %v2211 = vadd.f32 %v1993, %v2210
        %v2212 = vpop.f32.mrf.mxu0
        %v2213 = vadd.f32 %v1995, %v2212
        %2214 = vmatprep.mubr.bf16.mxu0 0
        %2215 = vmatmul.mubr.bf16.gmra.mxu0 %v2117
        %v2216 = vpop.f32.mrf.mxu0
        %v2217 = vadd.f32 %v1999, %v2216
        %v2218 = vpop.f32.mrf.mxu0
        %v2219 = vadd.f32 %v2001, %v2218
        %v2220 = vpop.f32.mrf.mxu0
        %v2221 = vadd.f32 %v2003, %v2220
        %v2222 = vpop.f32.mrf.mxu0
        %v2223 = vadd.f32 %v2005, %v2222
        %2224 = vdwg.mxu0
        %2225 = vmatprep.subr.bf16.mxu0 0
        %2226 = vmatpush1.bf16.msra.mxu0 0
        %2227 = vmatprep.subr.bf16.mxu0 0
        %2228 = vmatpush1.bf16.msra.mxu0 0
        %2229 = vmatprep.subr.bf16.mxu0 0
        %2230 = vmatpush1.bf16.msra.mxu0 0
        %2231 = vmatprep.subr.bf16.mxu0 0
        %2232 = vmatpush1.bf16.msra.mxu0 0
        %2233 = vmatprep.subr.bf16.mxu0 0
        %2234 = vmatpush1.bf16.msra.mxu0 0
        %2235 = vmatprep.subr.bf16.mxu0 0
        %2236 = vmatpush1.bf16.msra.mxu0 0
        %2237 = vmatprep.subr.bf16.mxu0 %v1880
        %2238 = vmatpush1.bf16.msra.mxu0 %v1879
        %2239 = vmatprep.subr.bf16.mxu0 %v1872
        %2240 = vmatpush1.bf16.msra.mxu0 %v1871
        %2241 = vmatprep.subr.bf16.mxu0 0
        %2242 = vmatpush2.bf16.msra.mxu0 0
        %2243 = vmatprep.subr.bf16.mxu0 0
        %2244 = vmatpush2.bf16.msra.mxu0 0
        %2245 = vmatprep.subr.bf16.mxu0 0
        %2246 = vmatpush2.bf16.msra.mxu0 0
        %2247 = vmatprep.subr.bf16.mxu0 0
        %2248 = vmatpush2.bf16.msra.mxu0 0
        %2249 = vmatprep.subr.bf16.mxu0 0
        %2250 = vmatpush2.bf16.msra.mxu0 0
        %2251 = vmatprep.subr.bf16.mxu0 0
        %2252 = vmatpush2.bf16.msra.mxu0 0
        %2253 = vmatprep.subr.bf16.mxu0 0
        %2254 = vmatpush2.bf16.msra.mxu0 0
        %2255 = vmatprep.subr.bf16.mxu0 0
        %2256 = vmatpush2.bf16.msra.mxu0 0
        %2257 = vmatprep.mubr.bf16.mxu0 0
        %2258 = vmatmul.mubr.bf16.gmra.mxu0 %v2114
        %v2259 = vpop.f32.mrf.mxu0
        %v2260 = vadd.f32 %v2042, %v2259
        %v2261 = vpop.f32.mrf.mxu0
        %v2262 = vadd.f32 %v2044, %v2261
        %v2263 = vpop.f32.mrf.mxu0
        %v2264 = vadd.f32 %v2046, %v2263
        %v2265 = vpop.f32.mrf.mxu0
        %v2266 = vadd.f32 %v2048, %v2265
        %2267 = vmatprep.mubr.bf16.mxu0 0
        %2268 = vmatmul.mubr.bf16.gmra.mxu0 %v2117
        %v2269 = vpop.f32.mrf.mxu0
        %v2270 = vadd.f32 %v2052, %v2269
        %v2271 = vpop.f32.mrf.mxu0
        %v2272 = vadd.f32 %v2054, %v2271
        %v2273 = vpop.f32.mrf.mxu0
        %v2274 = vadd.f32 %v2056, %v2273
        %v2275 = vpop.f32.mrf.mxu0
        %v2276 = vadd.f32 %v2058, %v2275
        %2277 = vdwg.mxu0
        %2278 = vmatprep.subr.bf16.mxu0 0
        %2279 = vmatpush1.bf16.msra.mxu0 0
        %2280 = vmatprep.subr.bf16.mxu0 0
        %2281 = vmatpush1.bf16.msra.mxu0 0
        %2282 = vmatprep.subr.bf16.mxu0 0
        %2283 = vmatpush1.bf16.msra.mxu0 0
        %2284 = vmatprep.subr.bf16.mxu0 0
        %2285 = vmatpush1.bf16.msra.mxu0 0
        %2286 = vmatprep.subr.bf16.mxu0 0
        %2287 = vmatpush1.bf16.msra.mxu0 0
        %2288 = vmatprep.subr.bf16.mxu0 0
        %2289 = vmatpush1.bf16.msra.mxu0 0
        %2290 = vmatprep.subr.bf16.mxu0 %v1882
        %2291 = vmatpush1.bf16.msra.mxu0 %v1881
        %2292 = vmatprep.subr.bf16.mxu0 %v1874
        %2293 = vmatpush1.bf16.msra.mxu0 %v1873
        %2294 = vmatprep.subr.bf16.mxu0 0
        %2295 = vmatpush2.bf16.msra.mxu0 0
        %2296 = vmatprep.subr.bf16.mxu0 0
        %2297 = vmatpush2.bf16.msra.mxu0 0
        %2298 = vmatprep.subr.bf16.mxu0 0
        %2299 = vmatpush2.bf16.msra.mxu0 0
        %2300 = vmatprep.subr.bf16.mxu0 0
        %2301 = vmatpush2.bf16.msra.mxu0 0
        %2302 = vmatprep.subr.bf16.mxu0 0
        %2303 = vmatpush2.bf16.msra.mxu0 0
        %2304 = vmatprep.subr.bf16.mxu0 0
        %2305 = vmatpush2.bf16.msra.mxu0 0
        %2306 = vmatprep.subr.bf16.mxu0 0
        %2307 = vmatpush2.bf16.msra.mxu0 0
        %2308 = vmatprep.subr.bf16.mxu0 0
        %2309 = vmatpush2.bf16.msra.mxu0 0
        %2310 = vmatprep.mubr.bf16.mxu0 0
        %2311 = vmatmul.mubr.bf16.gmra.mxu0 %v2114
        %v2312 = vpop.f32.mrf.mxu0
        %v2313 = vadd.f32 %v2095, %v2312
        %v2314 = vpop.f32.mrf.mxu0
        %v2315 = vadd.f32 %v2097, %v2314
        %v2316 = vpop.f32.mrf.mxu0
        %v2317 = vadd.f32 %v2099, %v2316
        %v2318 = vpop.f32.mrf.mxu0
        %v2319 = vadd.f32 %v2101, %v2318
        %2320 = vmatprep.mubr.bf16.mxu0 0
        %2321 = vmatmul.mubr.bf16.gmra.mxu0 %v2117
        %v2322 = vpop.f32.mrf.mxu0
        %v2323 = vadd.f32 %v2105, %v2322
        %v2324 = vpop.f32.mrf.mxu0
        %v2325 = vadd.f32 %v2107, %v2324
        %v2326 = vpop.f32.mrf.mxu0
        %v2327 = vadd.f32 %v2109, %v2326
        %v2328 = vpop.f32.mrf.mxu0
        %v2329 = vadd.f32 %v2111, %v2328
        %2330 = vdwg.mxu0
        %s2331 = scalar_lea.vmem %s5, 128
        %v2332 = vld [vmem:[%s2331] sm:$0xff]
        %v2333 = vld [vmem:[%s2331 + $0x8] sm:$0xff]
        %v2334 = vld [vmem:[%s2331 + $0x10] sm:$0xff]
        %v2335 = vld [vmem:[%s2331 + $0x18] sm:$0xff]
        %2337 = vset.pattern.permute.xlu0 0
        %2338 = vperm.xlu0 %2337, %v2332
        %v2339 = vpop.permute.xlu0 %2338
        %2342 = vset.pattern.permute.xlu0 0
        %2343 = vperm.xlu0 %2342, %v2333
        %v2344 = vpop.permute.xlu0 %2343
        %2347 = vset.pattern.permute.xlu0 0
        %2348 = vperm.xlu0 %2347, %v2334
        %v2349 = vpop.permute.xlu0 %2348
        %2352 = vset.pattern.permute.xlu0 0
        %2353 = vperm.xlu0 %2352, %v2335
        %v2354 = vpop.permute.xlu0 %2353
        %v2356 = vadd.f32 %v2154, %v2339
        %v2357 = vadd.f32 %v2156, %v2339
        %v2358 = vadd.f32 %v2207, %v2339
        %v2359 = vadd.f32 %v2209, %v2339
        %v2360 = vadd.f32 %v2260, %v2339
        %v2361 = vadd.f32 %v2262, %v2339
        %v2362 = vadd.f32 %v2313, %v2339
        %v2363 = vadd.f32 %v2315, %v2339
        %v2364 = vadd.f32 %v2158, %v2344
        %v2365 = vadd.f32 %v2160, %v2344
        %v2366 = vadd.f32 %v2211, %v2344
        %v2367 = vadd.f32 %v2213, %v2344
        %v2368 = vadd.f32 %v2264, %v2344
        %v2369 = vadd.f32 %v2266, %v2344
        %v2370 = vadd.f32 %v2317, %v2344
        %v2371 = vadd.f32 %v2319, %v2344
        %v2372 = vadd.f32 %v2164, %v2349
        %v2373 = vadd.f32 %v2166, %v2349
        %v2374 = vadd.f32 %v2217, %v2349
        %v2375 = vadd.f32 %v2219, %v2349
        %v2376 = vadd.f32 %v2270, %v2349
        %v2377 = vadd.f32 %v2272, %v2349
        %v2378 = vadd.f32 %v2323, %v2349
        %v2379 = vadd.f32 %v2325, %v2349
        %v2380 = vadd.f32 %v2168, %v2354
        %v2381 = vadd.f32 %v2170, %v2354
        %v2382 = vadd.f32 %v2221, %v2354
        %v2383 = vadd.f32 %v2223, %v2354
        %v2384 = vadd.f32 %v2274, %v2354
        %v2385 = vadd.f32 %v2276, %v2354
        %v2386 = vadd.f32 %v2327, %v2354
        %v2387 = vadd.f32 %v2329, %v2354
        %v2388 = vmax.f32 %v2356, 0.0
        %v2389 = vmax.f32 %v2357, 0.0
        %v2390 = vmax.f32 %v2358, 0.0
        %v2391 = vmax.f32 %v2359, 0.0
        %v2392 = vmax.f32 %v2360, 0.0
        %v2393 = vmax.f32 %v2361, 0.0
        %v2394 = vmax.f32 %v2362, 0.0
        %v2395 = vmax.f32 %v2363, 0.0
        %v2396 = vmax.f32 %v2364, 0.0
        %v2397 = vmax.f32 %v2365, 0.0
        %v2398 = vmax.f32 %v2366, 0.0
        %v2399 = vmax.f32 %v2367, 0.0
        %v2400 = vmax.f32 %v2368, 0.0
        %v2401 = vmax.f32 %v2369, 0.0
        %v2402 = vmax.f32 %v2370, 0.0
        %v2403 = vmax.f32 %v2371, 0.0
        %v2404 = vmax.f32 %v2372, 0.0
        %v2405 = vmax.f32 %v2373, 0.0
        %v2406 = vmax.f32 %v2374, 0.0
        %v2407 = vmax.f32 %v2375, 0.0
        %v2408 = vmax.f32 %v2376, 0.0
        %v2409 = vmax.f32 %v2377, 0.0
        %v2410 = vmax.f32 %v2378, 0.0
        %v2411 = vmax.f32 %v2379, 0.0
        %v2412 = vmax.f32 %v2380, 0.0
        %v2413 = vmax.f32 %v2381, 0.0
        %v2414 = vmax.f32 %v2382, 0.0
        %v2415 = vmax.f32 %v2383, 0.0
        %v2416 = vmax.f32 %v2384, 0.0
        %v2417 = vmax.f32 %v2385, 0.0
        %v2418 = vmax.f32 %v2386, 0.0
        %v2419 = vmax.f32 %v2387, 0.0
        %v2420 = vpack.c.bf16 %v2396, %v2388
        %v2421 = vpack.c.bf16 %v2397, %v2389
        %v2422 = vpack.c.bf16 %v2398, %v2390
        %v2423 = vpack.c.bf16 %v2399, %v2391
        %v2424 = vpack.c.bf16 %v2400, %v2392
        %v2425 = vpack.c.bf16 %v2401, %v2393
        %v2426 = vpack.c.bf16 %v2402, %v2394
        %v2427 = vpack.c.bf16 %v2403, %v2395
        %v2428 = vpack.c.bf16 %v2412, %v2404
        %v2429 = vpack.c.bf16 %v2413, %v2405
        %v2430 = vpack.c.bf16 %v2414, %v2406
        %v2431 = vpack.c.bf16 %v2415, %v2407
        %v2432 = vpack.c.bf16 %v2416, %v2408
        %v2433 = vpack.c.bf16 %v2417, %v2409
        %v2434 = vpack.c.bf16 %v2418, %v2410
        %v2435 = vpack.c.bf16 %v2419, %v2411
        %s2436 = scalar_lea.vmem %s2, 96
        %v2437 = vld [vmem:[%s2436] sm:$0xff]
        %v2438 = vld [vmem:[%s2436 + $0x8] sm:$0xff]
        %v2439 = vld [vmem:[%s2436 + $0x10] sm:$0xff]
        %v2440 = vld [vmem:[%s2436 + $0x18] sm:$0xff]
        %v2441 = vpack.c.bf16 %v2438, %v2437
        %v2442 = vpack.c.bf16 %v2440, %v2439
        %s2443 = scalar_lea.vmem %s5, 160
        %v2444 = vld [vmem:[%s2443] sm:$0xff]
        %v2445 = vld [vmem:[%s2443 + $0x8] sm:$0xff]
        %v2446 = vld [vmem:[%s2443 + $0x10] sm:$0xff]
        %v2447 = vld [vmem:[%s2443 + $0x18] sm:$0xff]
        %2449 = vset.pattern.permute.xlu0 0
        %2450 = vperm.xlu0 %2449, %v2444
        %v2451 = vpop.permute.xlu0 %2450
        %2454 = vset.pattern.permute.xlu0 0
        %2455 = vperm.xlu0 %2454, %v2445
        %v2456 = vpop.permute.xlu0 %2455
        %2459 = vset.pattern.permute.xlu0 0
        %2460 = vperm.xlu0 %2459, %v2446
        %v2461 = vpop.permute.xlu0 %2460
        %2464 = vset.pattern.permute.xlu0 0
        %2465 = vperm.xlu0 %2464, %v2447
        %v2466 = vpop.permute.xlu0 %2465
        %v2469 = vsel %vm1020, %v2441, 0
        %v2472 = vsel %vm1020, %v2442, 0
        %2474 = vmatprep.subr.bf16.mxu0 0
        %2475 = vmatpush1.bf16.msra.mxu0 0
        %2476 = vmatprep.subr.bf16.mxu0 0
        %2477 = vmatpush1.bf16.msra.mxu0 0
        %2478 = vmatprep.subr.bf16.mxu0 0
        %2479 = vmatpush1.bf16.msra.mxu0 0
        %2480 = vmatprep.subr.bf16.mxu0 0
        %2481 = vmatpush1.bf16.msra.mxu0 0
        %2482 = vmatprep.subr.bf16.mxu0 0
        %2483 = vmatpush1.bf16.msra.mxu0 0
        %2484 = vmatprep.subr.bf16.mxu0 0
        %2485 = vmatpush1.bf16.msra.mxu0 0
        %2486 = vmatprep.subr.bf16.mxu0 %v2429
        %2487 = vmatpush1.bf16.msra.mxu0 %v2428
        %2488 = vmatprep.subr.bf16.mxu0 %v2421
        %2489 = vmatpush1.bf16.msra.mxu0 %v2420
        %2490 = vmatprep.subr.bf16.mxu0 0
        %2491 = vmatpush2.bf16.msra.mxu0 0
        %2492 = vmatprep.subr.bf16.mxu0 0
        %2493 = vmatpush2.bf16.msra.mxu0 0
        %2494 = vmatprep.subr.bf16.mxu0 0
        %2495 = vmatpush2.bf16.msra.mxu0 0
        %2496 = vmatprep.subr.bf16.mxu0 0
        %2497 = vmatpush2.bf16.msra.mxu0 0
        %2498 = vmatprep.subr.bf16.mxu0 0
        %2499 = vmatpush2.bf16.msra.mxu0 0
        %2500 = vmatprep.subr.bf16.mxu0 0
        %2501 = vmatpush2.bf16.msra.mxu0 0
        %2502 = vmatprep.subr.bf16.mxu0 0
        %2503 = vmatpush2.bf16.msra.mxu0 0
        %2504 = vmatprep.subr.bf16.mxu0 0
        %2505 = vmatpush2.bf16.msra.mxu0 0
        %2506 = vmatprep.mubr.bf16.mxu0 0
        %2507 = vmatmul.mubr.bf16.gmra.mxu0 %v2469
        %v2508 = vpop.f32.mrf.mxu0
        %v2509 = vadd.f32 %v2451, %v2508
        %v2510 = vpop.f32.mrf.mxu0
        %v2511 = vadd.f32 %v2451, %v2510
        %v2512 = vpop.f32.mrf.mxu0
        %v2513 = vadd.f32 %v2456, %v2512
        %v2514 = vpop.f32.mrf.mxu0
        %v2515 = vadd.f32 %v2456, %v2514
        %2516 = vmatprep.mubr.bf16.mxu0 0
        %2517 = vmatmul.mubr.bf16.gmra.mxu0 %v2472
        %v2518 = vpop.f32.mrf.mxu0
        %v2519 = vadd.f32 %v2461, %v2518
        %v2520 = vpop.f32.mrf.mxu0
        %v2521 = vadd.f32 %v2461, %v2520
        %v2522 = vpop.f32.mrf.mxu0
        %v2523 = vadd.f32 %v2466, %v2522
        %v2524 = vpop.f32.mrf.mxu0
        %v2525 = vadd.f32 %v2466, %v2524
        %2526 = vdwg.mxu0
        %2527 = vmatprep.subr.bf16.mxu0 0
        %2528 = vmatpush1.bf16.msra.mxu0 0
        %2529 = vmatprep.subr.bf16.mxu0 0
        %2530 = vmatpush1.bf16.msra.mxu0 0
        %2531 = vmatprep.subr.bf16.mxu0 0
        %2532 = vmatpush1.bf16.msra.mxu0 0
        %2533 = vmatprep.subr.bf16.mxu0 0
        %2534 = vmatpush1.bf16.msra.mxu0 0
        %2535 = vmatprep.subr.bf16.mxu0 0
        %2536 = vmatpush1.bf16.msra.mxu0 0
        %2537 = vmatprep.subr.bf16.mxu0 0
        %2538 = vmatpush1.bf16.msra.mxu0 0
        %2539 = vmatprep.subr.bf16.mxu0 %v2431
        %2540 = vmatpush1.bf16.msra.mxu0 %v2430
        %2541 = vmatprep.subr.bf16.mxu0 %v2423
        %2542 = vmatpush1.bf16.msra.mxu0 %v2422
        %2543 = vmatprep.subr.bf16.mxu0 0
        %2544 = vmatpush2.bf16.msra.mxu0 0
        %2545 = vmatprep.subr.bf16.mxu0 0
        %2546 = vmatpush2.bf16.msra.mxu0 0
        %2547 = vmatprep.subr.bf16.mxu0 0
        %2548 = vmatpush2.bf16.msra.mxu0 0
        %2549 = vmatprep.subr.bf16.mxu0 0
        %2550 = vmatpush2.bf16.msra.mxu0 0
        %2551 = vmatprep.subr.bf16.mxu0 0
        %2552 = vmatpush2.bf16.msra.mxu0 0
        %2553 = vmatprep.subr.bf16.mxu0 0
        %2554 = vmatpush2.bf16.msra.mxu0 0
        %2555 = vmatprep.subr.bf16.mxu0 0
        %2556 = vmatpush2.bf16.msra.mxu0 0
        %2557 = vmatprep.subr.bf16.mxu0 0
        %2558 = vmatpush2.bf16.msra.mxu0 0
        %2559 = vmatprep.mubr.bf16.mxu0 0
        %2560 = vmatmul.mubr.bf16.gmra.mxu0 %v2469
        %v2561 = vpop.f32.mrf.mxu0
        %v2562 = vadd.f32 %v2451, %v2561
        %v2563 = vpop.f32.mrf.mxu0
        %v2564 = vadd.f32 %v2451, %v2563
        %v2565 = vpop.f32.mrf.mxu0
        %v2566 = vadd.f32 %v2456, %v2565
        %v2567 = vpop.f32.mrf.mxu0
        %v2568 = vadd.f32 %v2456, %v2567
        %2569 = vmatprep.mubr.bf16.mxu0 0
        %2570 = vmatmul.mubr.bf16.gmra.mxu0 %v2472
        %v2571 = vpop.f32.mrf.mxu0
        %v2572 = vadd.f32 %v2461, %v2571
        %v2573 = vpop.f32.mrf.mxu0
        %v2574 = vadd.f32 %v2461, %v2573
        %v2575 = vpop.f32.mrf.mxu0
        %v2576 = vadd.f32 %v2466, %v2575
        %v2577 = vpop.f32.mrf.mxu0
        %v2578 = vadd.f32 %v2466, %v2577
        %2579 = vdwg.mxu0
        %2580 = vmatprep.subr.bf16.mxu0 0
        %2581 = vmatpush1.bf16.msra.mxu0 0
        %2582 = vmatprep.subr.bf16.mxu0 0
        %2583 = vmatpush1.bf16.msra.mxu0 0
        %2584 = vmatprep.subr.bf16.mxu0 0
        %2585 = vmatpush1.bf16.msra.mxu0 0
        %2586 = vmatprep.subr.bf16.mxu0 0
        %2587 = vmatpush1.bf16.msra.mxu0 0
        %2588 = vmatprep.subr.bf16.mxu0 0
        %2589 = vmatpush1.bf16.msra.mxu0 0
        %2590 = vmatprep.subr.bf16.mxu0 0
        %2591 = vmatpush1.bf16.msra.mxu0 0
        %2592 = vmatprep.subr.bf16.mxu0 %v2433
        %2593 = vmatpush1.bf16.msra.mxu0 %v2432
        %2594 = vmatprep.subr.bf16.mxu0 %v2425
        %2595 = vmatpush1.bf16.msra.mxu0 %v2424
        %2596 = vmatprep.subr.bf16.mxu0 0
        %2597 = vmatpush2.bf16.msra.mxu0 0
        %2598 = vmatprep.subr.bf16.mxu0 0
        %2599 = vmatpush2.bf16.msra.mxu0 0
        %2600 = vmatprep.subr.bf16.mxu0 0
        %2601 = vmatpush2.bf16.msra.mxu0 0
        %2602 = vmatprep.subr.bf16.mxu0 0
        %2603 = vmatpush2.bf16.msra.mxu0 0
        %2604 = vmatprep.subr.bf16.mxu0 0
        %2605 = vmatpush2.bf16.msra.mxu0 0
        %2606 = vmatprep.subr.bf16.mxu0 0
        %2607 = vmatpush2.bf16.msra.mxu0 0
        %2608 = vmatprep.subr.bf16.mxu0 0
        %2609 = vmatpush2.bf16.msra.mxu0 0
        %2610 = vmatprep.subr.bf16.mxu0 0
        %2611 = vmatpush2.bf16.msra.mxu0 0
        %2612 = vmatprep.mubr.bf16.mxu0 0
        %2613 = vmatmul.mubr.bf16.gmra.mxu0 %v2469
        %v2614 = vpop.f32.mrf.mxu0
        %v2615 = vadd.f32 %v2451, %v2614
        %v2616 = vpop.f32.mrf.mxu0
        %v2617 = vadd.f32 %v2451, %v2616
        %v2618 = vpop.f32.mrf.mxu0
        %v2619 = vadd.f32 %v2456, %v2618
        %v2620 = vpop.f32.mrf.mxu0
        %v2621 = vadd.f32 %v2456, %v2620
        %2622 = vmatprep.mubr.bf16.mxu0 0
        %2623 = vmatmul.mubr.bf16.gmra.mxu0 %v2472
        %v2624 = vpop.f32.mrf.mxu0
        %v2625 = vadd.f32 %v2461, %v2624
        %v2626 = vpop.f32.mrf.mxu0
        %v2627 = vadd.f32 %v2461, %v2626
        %v2628 = vpop.f32.mrf.mxu0
        %v2629 = vadd.f32 %v2466, %v2628
        %v2630 = vpop.f32.mrf.mxu0
        %v2631 = vadd.f32 %v2466, %v2630
        %2632 = vdwg.mxu0
        %2633 = vmatprep.subr.bf16.mxu0 0
        %2634 = vmatpush1.bf16.msra.mxu0 0
        %2635 = vmatprep.subr.bf16.mxu0 0
        %2636 = vmatpush1.bf16.msra.mxu0 0
        %2637 = vmatprep.subr.bf16.mxu0 0
        %2638 = vmatpush1.bf16.msra.mxu0 0
        %2639 = vmatprep.subr.bf16.mxu0 0
        %2640 = vmatpush1.bf16.msra.mxu0 0
        %2641 = vmatprep.subr.bf16.mxu0 0
        %2642 = vmatpush1.bf16.msra.mxu0 0
        %2643 = vmatprep.subr.bf16.mxu0 0
        %2644 = vmatpush1.bf16.msra.mxu0 0
        %2645 = vmatprep.subr.bf16.mxu0 %v2435
        %2646 = vmatpush1.bf16.msra.mxu0 %v2434
        %2647 = vmatprep.subr.bf16.mxu0 %v2427
        %2648 = vmatpush1.bf16.msra.mxu0 %v2426
        %2649 = vmatprep.subr.bf16.mxu0 0
        %2650 = vmatpush2.bf16.msra.mxu0 0
        %2651 = vmatprep.subr.bf16.mxu0 0
        %2652 = vmatpush2.bf16.msra.mxu0 0
        %2653 = vmatprep.subr.bf16.mxu0 0
        %2654 = vmatpush2.bf16.msra.mxu0 0
        %2655 = vmatprep.subr.bf16.mxu0 0
        %2656 = vmatpush2.bf16.msra.mxu0 0
        %2657 = vmatprep.subr.bf16.mxu0 0
        %2658 = vmatpush2.bf16.msra.mxu0 0
        %2659 = vmatprep.subr.bf16.mxu0 0
        %2660 = vmatpush2.bf16.msra.mxu0 0
        %2661 = vmatprep.subr.bf16.mxu0 0
        %2662 = vmatpush2.bf16.msra.mxu0 0
        %2663 = vmatprep.subr.bf16.mxu0 0
        %2664 = vmatpush2.bf16.msra.mxu0 0
        %2665 = vmatprep.mubr.bf16.mxu0 0
        %2666 = vmatmul.mubr.bf16.gmra.mxu0 %v2469
        %v2667 = vpop.f32.mrf.mxu0
        %v2668 = vadd.f32 %v2451, %v2667
        %v2669 = vpop.f32.mrf.mxu0
        %v2670 = vadd.f32 %v2451, %v2669
        %v2671 = vpop.f32.mrf.mxu0
        %v2672 = vadd.f32 %v2456, %v2671
        %v2673 = vpop.f32.mrf.mxu0
        %v2674 = vadd.f32 %v2456, %v2673
        %2675 = vmatprep.mubr.bf16.mxu0 0
        %2676 = vmatmul.mubr.bf16.gmra.mxu0 %v2472
        %v2677 = vpop.f32.mrf.mxu0
        %v2678 = vadd.f32 %v2461, %v2677
        %v2679 = vpop.f32.mrf.mxu0
        %v2680 = vadd.f32 %v2461, %v2679
        %v2681 = vpop.f32.mrf.mxu0
        %v2682 = vadd.f32 %v2466, %v2681
        %v2683 = vpop.f32.mrf.mxu0
        %v2684 = vadd.f32 %v2466, %v2683
        %2685 = vdwg.mxu0
        %v2686 = vmax.f32 %v2509, 0.0
        %v2687 = vmax.f32 %v2511, 0.0
        %v2688 = vmax.f32 %v2562, 0.0
        %v2689 = vmax.f32 %v2564, 0.0
        %v2690 = vmax.f32 %v2615, 0.0
        %v2691 = vmax.f32 %v2617, 0.0
        %v2692 = vmax.f32 %v2668, 0.0
        %v2693 = vmax.f32 %v2670, 0.0
        %v2694 = vmax.f32 %v2513, 0.0
        %v2695 = vmax.f32 %v2515, 0.0
        %v2696 = vmax.f32 %v2566, 0.0
        %v2697 = vmax.f32 %v2568, 0.0
        %v2698 = vmax.f32 %v2619, 0.0
        %v2699 = vmax.f32 %v2621, 0.0
        %v2700 = vmax.f32 %v2672, 0.0
        %v2701 = vmax.f32 %v2674, 0.0
        %v2702 = vmax.f32 %v2519, 0.0
        %v2703 = vmax.f32 %v2521, 0.0
        %v2704 = vmax.f32 %v2572, 0.0
        %v2705 = vmax.f32 %v2574, 0.0
        %v2706 = vmax.f32 %v2625, 0.0
        %v2707 = vmax.f32 %v2627, 0.0
        %v2708 = vmax.f32 %v2678, 0.0
        %v2709 = vmax.f32 %v2680, 0.0
        %v2710 = vmax.f32 %v2523, 0.0
        %v2711 = vmax.f32 %v2525, 0.0
        %v2712 = vmax.f32 %v2576, 0.0
        %v2713 = vmax.f32 %v2578, 0.0
        %v2714 = vmax.f32 %v2629, 0.0
        %v2715 = vmax.f32 %v2631, 0.0
        %v2716 = vmax.f32 %v2682, 0.0
        %v2717 = vmax.f32 %v2684, 0.0
        %v2718 = vpack.c.bf16 %v2694, %v2686
        %v2719 = vpack.c.bf16 %v2695, %v2687
        %v2720 = vpack.c.bf16 %v2696, %v2688
        %v2721 = vpack.c.bf16 %v2697, %v2689
        %v2722 = vpack.c.bf16 %v2698, %v2690
        %v2723 = vpack.c.bf16 %v2699, %v2691
        %v2724 = vpack.c.bf16 %v2700, %v2692
        %v2725 = vpack.c.bf16 %v2701, %v2693
        %v2726 = vpack.c.bf16 %v2710, %v2702
        %v2727 = vpack.c.bf16 %v2711, %v2703
        %v2728 = vpack.c.bf16 %v2712, %v2704
        %v2729 = vpack.c.bf16 %v2713, %v2705
        %v2730 = vpack.c.bf16 %v2714, %v2706
        %v2731 = vpack.c.bf16 %v2715, %v2707
        %v2732 = vpack.c.bf16 %v2716, %v2708
        %v2733 = vpack.c.bf16 %v2717, %v2709
        %s2734 = scalar_lea.vmem %s2, 128
        %v2735 = vld [vmem:[%s2734] sm:$0xff]
        %v2736 = vld [vmem:[%s2734 + $0x8] sm:$0xff]
        %v2737 = vld [vmem:[%s2734 + $0x10] sm:$0xff]
        %v2738 = vld [vmem:[%s2734 + $0x18] sm:$0xff]
        %v2739 = vpack.c.bf16 %v2736, %v2735
        %v2740 = vpack.c.bf16 %v2738, %v2737
        %s2741 = scalar_lea.vmem %s5, 192
        %v2742 = vld [vmem:[%s2741] sm:$0xff]
        %v2743 = vld [vmem:[%s2741 + $0x8] sm:$0xff]
        %v2744 = vld [vmem:[%s2741 + $0x10] sm:$0xff]
        %v2745 = vld [vmem:[%s2741 + $0x18] sm:$0xff]
        %2747 = vset.pattern.permute.xlu0 0
        %2748 = vperm.xlu0 %2747, %v2742
        %v2749 = vpop.permute.xlu0 %2748
        %2752 = vset.pattern.permute.xlu0 0
        %2753 = vperm.xlu0 %2752, %v2743
        %v2754 = vpop.permute.xlu0 %2753
        %2757 = vset.pattern.permute.xlu0 0
        %2758 = vperm.xlu0 %2757, %v2744
        %v2759 = vpop.permute.xlu0 %2758
        %2762 = vset.pattern.permute.xlu0 0
        %2763 = vperm.xlu0 %2762, %v2745
        %v2764 = vpop.permute.xlu0 %2763
        %v2767 = vsel %vm1020, %v2739, 0
        %v2770 = vsel %vm1020, %v2740, 0
        %2772 = vmatprep.subr.bf16.mxu0 0
        %2773 = vmatpush1.bf16.msra.mxu0 0
        %2774 = vmatprep.subr.bf16.mxu0 0
        %2775 = vmatpush1.bf16.msra.mxu0 0
        %2776 = vmatprep.subr.bf16.mxu0 0
        %2777 = vmatpush1.bf16.msra.mxu0 0
        %2778 = vmatprep.subr.bf16.mxu0 0
        %2779 = vmatpush1.bf16.msra.mxu0 0
        %2780 = vmatprep.subr.bf16.mxu0 0
        %2781 = vmatpush1.bf16.msra.mxu0 0
        %2782 = vmatprep.subr.bf16.mxu0 0
        %2783 = vmatpush1.bf16.msra.mxu0 0
        %2784 = vmatprep.subr.bf16.mxu0 %v2727
        %2785 = vmatpush1.bf16.msra.mxu0 %v2726
        %2786 = vmatprep.subr.bf16.mxu0 %v2719
        %2787 = vmatpush1.bf16.msra.mxu0 %v2718
        %2788 = vmatprep.subr.bf16.mxu0 0
        %2789 = vmatpush2.bf16.msra.mxu0 0
        %2790 = vmatprep.subr.bf16.mxu0 0
        %2791 = vmatpush2.bf16.msra.mxu0 0
        %2792 = vmatprep.subr.bf16.mxu0 0
        %2793 = vmatpush2.bf16.msra.mxu0 0
        %2794 = vmatprep.subr.bf16.mxu0 0
        %2795 = vmatpush2.bf16.msra.mxu0 0
        %2796 = vmatprep.subr.bf16.mxu0 0
        %2797 = vmatpush2.bf16.msra.mxu0 0
        %2798 = vmatprep.subr.bf16.mxu0 0
        %2799 = vmatpush2.bf16.msra.mxu0 0
        %2800 = vmatprep.subr.bf16.mxu0 0
        %2801 = vmatpush2.bf16.msra.mxu0 0
        %2802 = vmatprep.subr.bf16.mxu0 0
        %2803 = vmatpush2.bf16.msra.mxu0 0
        %2804 = vmatprep.mubr.bf16.mxu0 0
        %2805 = vmatmul.mubr.bf16.gmra.mxu0 %v2767
        %v2806 = vpop.f32.mrf.mxu0
        %v2807 = vadd.f32 %v2749, %v2806
        %v2808 = vpop.f32.mrf.mxu0
        %v2809 = vadd.f32 %v2749, %v2808
        %v2810 = vpop.f32.mrf.mxu0
        %v2811 = vadd.f32 %v2754, %v2810
        %v2812 = vpop.f32.mrf.mxu0
        %v2813 = vadd.f32 %v2754, %v2812
        %2814 = vmatprep.mubr.bf16.mxu0 0
        %2815 = vmatmul.mubr.bf16.gmra.mxu0 %v2770
        %v2816 = vpop.f32.mrf.mxu0
        %v2817 = vadd.f32 %v2759, %v2816
        %v2818 = vpop.f32.mrf.mxu0
        %v2819 = vadd.f32 %v2759, %v2818
        %v2820 = vpop.f32.mrf.mxu0
        %v2821 = vadd.f32 %v2764, %v2820
        %v2822 = vpop.f32.mrf.mxu0
        %v2823 = vadd.f32 %v2764, %v2822
        %2824 = vdwg.mxu0
        %2825 = vmatprep.subr.bf16.mxu0 0
        %2826 = vmatpush1.bf16.msra.mxu0 0
        %2827 = vmatprep.subr.bf16.mxu0 0
        %2828 = vmatpush1.bf16.msra.mxu0 0
        %2829 = vmatprep.subr.bf16.mxu0 0
        %2830 = vmatpush1.bf16.msra.mxu0 0
        %2831 = vmatprep.subr.bf16.mxu0 0
        %2832 = vmatpush1.bf16.msra.mxu0 0
        %2833 = vmatprep.subr.bf16.mxu0 0
        %2834 = vmatpush1.bf16.msra.mxu0 0
        %2835 = vmatprep.subr.bf16.mxu0 0
        %2836 = vmatpush1.bf16.msra.mxu0 0
        %2837 = vmatprep.subr.bf16.mxu0 %v2729
        %2838 = vmatpush1.bf16.msra.mxu0 %v2728
        %2839 = vmatprep.subr.bf16.mxu0 %v2721
        %2840 = vmatpush1.bf16.msra.mxu0 %v2720
        %2841 = vmatprep.subr.bf16.mxu0 0
        %2842 = vmatpush2.bf16.msra.mxu0 0
        %2843 = vmatprep.subr.bf16.mxu0 0
        %2844 = vmatpush2.bf16.msra.mxu0 0
        %2845 = vmatprep.subr.bf16.mxu0 0
        %2846 = vmatpush2.bf16.msra.mxu0 0
        %2847 = vmatprep.subr.bf16.mxu0 0
        %2848 = vmatpush2.bf16.msra.mxu0 0
        %2849 = vmatprep.subr.bf16.mxu0 0
        %2850 = vmatpush2.bf16.msra.mxu0 0
        %2851 = vmatprep.subr.bf16.mxu0 0
        %2852 = vmatpush2.bf16.msra.mxu0 0
        %2853 = vmatprep.subr.bf16.mxu0 0
        %2854 = vmatpush2.bf16.msra.mxu0 0
        %2855 = vmatprep.subr.bf16.mxu0 0
        %2856 = vmatpush2.bf16.msra.mxu0 0
        %2857 = vmatprep.mubr.bf16.mxu0 0
        %2858 = vmatmul.mubr.bf16.gmra.mxu0 %v2767
        %v2859 = vpop.f32.mrf.mxu0
        %v2860 = vadd.f32 %v2749, %v2859
        %v2861 = vpop.f32.mrf.mxu0
        %v2862 = vadd.f32 %v2749, %v2861
        %v2863 = vpop.f32.mrf.mxu0
        %v2864 = vadd.f32 %v2754, %v2863
        %v2865 = vpop.f32.mrf.mxu0
        %v2866 = vadd.f32 %v2754, %v2865
        %2867 = vmatprep.mubr.bf16.mxu0 0
        %2868 = vmatmul.mubr.bf16.gmra.mxu0 %v2770
        %v2869 = vpop.f32.mrf.mxu0
        %v2870 = vadd.f32 %v2759, %v2869
        %v2871 = vpop.f32.mrf.mxu0
        %v2872 = vadd.f32 %v2759, %v2871
        %v2873 = vpop.f32.mrf.mxu0
        %v2874 = vadd.f32 %v2764, %v2873
        %v2875 = vpop.f32.mrf.mxu0
        %v2876 = vadd.f32 %v2764, %v2875
        %2877 = vdwg.mxu0
        %2878 = vmatprep.subr.bf16.mxu0 0
        %2879 = vmatpush1.bf16.msra.mxu0 0
        %2880 = vmatprep.subr.bf16.mxu0 0
        %2881 = vmatpush1.bf16.msra.mxu0 0
        %2882 = vmatprep.subr.bf16.mxu0 0
        %2883 = vmatpush1.bf16.msra.mxu0 0
        %2884 = vmatprep.subr.bf16.mxu0 0
        %2885 = vmatpush1.bf16.msra.mxu0 0
        %2886 = vmatprep.subr.bf16.mxu0 0
        %2887 = vmatpush1.bf16.msra.mxu0 0
        %2888 = vmatprep.subr.bf16.mxu0 0
        %2889 = vmatpush1.bf16.msra.mxu0 0
        %2890 = vmatprep.subr.bf16.mxu0 %v2731
        %2891 = vmatpush1.bf16.msra.mxu0 %v2730
        %2892 = vmatprep.subr.bf16.mxu0 %v2723
        %2893 = vmatpush1.bf16.msra.mxu0 %v2722
        %2894 = vmatprep.subr.bf16.mxu0 0
        %2895 = vmatpush2.bf16.msra.mxu0 0
        %2896 = vmatprep.subr.bf16.mxu0 0
        %2897 = vmatpush2.bf16.msra.mxu0 0
        %2898 = vmatprep.subr.bf16.mxu0 0
        %2899 = vmatpush2.bf16.msra.mxu0 0
        %2900 = vmatprep.subr.bf16.mxu0 0
        %2901 = vmatpush2.bf16.msra.mxu0 0
        %2902 = vmatprep.subr.bf16.mxu0 0
        %2903 = vmatpush2.bf16.msra.mxu0 0
        %2904 = vmatprep.subr.bf16.mxu0 0
        %2905 = vmatpush2.bf16.msra.mxu0 0
        %2906 = vmatprep.subr.bf16.mxu0 0
        %2907 = vmatpush2.bf16.msra.mxu0 0
        %2908 = vmatprep.subr.bf16.mxu0 0
        %2909 = vmatpush2.bf16.msra.mxu0 0
        %2910 = vmatprep.mubr.bf16.mxu0 0
        %2911 = vmatmul.mubr.bf16.gmra.mxu0 %v2767
        %v2912 = vpop.f32.mrf.mxu0
        %v2913 = vadd.f32 %v2749, %v2912
        %v2914 = vpop.f32.mrf.mxu0
        %v2915 = vadd.f32 %v2749, %v2914
        %v2916 = vpop.f32.mrf.mxu0
        %v2917 = vadd.f32 %v2754, %v2916
        %v2918 = vpop.f32.mrf.mxu0
        %v2919 = vadd.f32 %v2754, %v2918
        %2920 = vmatprep.mubr.bf16.mxu0 0
        %2921 = vmatmul.mubr.bf16.gmra.mxu0 %v2770
        %v2922 = vpop.f32.mrf.mxu0
        %v2923 = vadd.f32 %v2759, %v2922
        %v2924 = vpop.f32.mrf.mxu0
        %v2925 = vadd.f32 %v2759, %v2924
        %v2926 = vpop.f32.mrf.mxu0
        %v2927 = vadd.f32 %v2764, %v2926
        %v2928 = vpop.f32.mrf.mxu0
        %v2929 = vadd.f32 %v2764, %v2928
        %2930 = vdwg.mxu0
        %2931 = vmatprep.subr.bf16.mxu0 0
        %2932 = vmatpush1.bf16.msra.mxu0 0
        %2933 = vmatprep.subr.bf16.mxu0 0
        %2934 = vmatpush1.bf16.msra.mxu0 0
        %2935 = vmatprep.subr.bf16.mxu0 0
        %2936 = vmatpush1.bf16.msra.mxu0 0
        %2937 = vmatprep.subr.bf16.mxu0 0
        %2938 = vmatpush1.bf16.msra.mxu0 0
        %2939 = vmatprep.subr.bf16.mxu0 0
        %2940 = vmatpush1.bf16.msra.mxu0 0
        %2941 = vmatprep.subr.bf16.mxu0 0
        %2942 = vmatpush1.bf16.msra.mxu0 0
        %2943 = vmatprep.subr.bf16.mxu0 %v2733
        %2944 = vmatpush1.bf16.msra.mxu0 %v2732
        %2945 = vmatprep.subr.bf16.mxu0 %v2725
        %2946 = vmatpush1.bf16.msra.mxu0 %v2724
        %2947 = vmatprep.subr.bf16.mxu0 0
        %2948 = vmatpush2.bf16.msra.mxu0 0
        %2949 = vmatprep.subr.bf16.mxu0 0
        %2950 = vmatpush2.bf16.msra.mxu0 0
        %2951 = vmatprep.subr.bf16.mxu0 0
        %2952 = vmatpush2.bf16.msra.mxu0 0
        %2953 = vmatprep.subr.bf16.mxu0 0
        %2954 = vmatpush2.bf16.msra.mxu0 0
        %2955 = vmatprep.subr.bf16.mxu0 0
        %2956 = vmatpush2.bf16.msra.mxu0 0
        %2957 = vmatprep.subr.bf16.mxu0 0
        %2958 = vmatpush2.bf16.msra.mxu0 0
        %2959 = vmatprep.subr.bf16.mxu0 0
        %2960 = vmatpush2.bf16.msra.mxu0 0
        %2961 = vmatprep.subr.bf16.mxu0 0
        %2962 = vmatpush2.bf16.msra.mxu0 0
        %2963 = vmatprep.mubr.bf16.mxu0 0
        %2964 = vmatmul.mubr.bf16.gmra.mxu0 %v2767
        %v2965 = vpop.f32.mrf.mxu0
        %v2966 = vadd.f32 %v2749, %v2965
        %v2967 = vpop.f32.mrf.mxu0
        %v2968 = vadd.f32 %v2749, %v2967
        %v2969 = vpop.f32.mrf.mxu0
        %v2970 = vadd.f32 %v2754, %v2969
        %v2971 = vpop.f32.mrf.mxu0
        %v2972 = vadd.f32 %v2754, %v2971
        %2973 = vmatprep.mubr.bf16.mxu0 0
        %2974 = vmatmul.mubr.bf16.gmra.mxu0 %v2770
        %v2975 = vpop.f32.mrf.mxu0
        %v2976 = vadd.f32 %v2759, %v2975
        %v2977 = vpop.f32.mrf.mxu0
        %v2978 = vadd.f32 %v2759, %v2977
        %v2979 = vpop.f32.mrf.mxu0
        %v2980 = vadd.f32 %v2764, %v2979
        %v2981 = vpop.f32.mrf.mxu0
        %v2982 = vadd.f32 %v2764, %v2981
        %2983 = vdwg.mxu0
        %v2984 = vmax.f32 %v2807, 0.0
        %v2985 = vmax.f32 %v2809, 0.0
        %v2986 = vmax.f32 %v2860, 0.0
        %v2987 = vmax.f32 %v2862, 0.0
        %v2988 = vmax.f32 %v2913, 0.0
        %v2989 = vmax.f32 %v2915, 0.0
        %v2990 = vmax.f32 %v2966, 0.0
        %v2991 = vmax.f32 %v2968, 0.0
        %v2992 = vmax.f32 %v2811, 0.0
        %v2993 = vmax.f32 %v2813, 0.0
        %v2994 = vmax.f32 %v2864, 0.0
        %v2995 = vmax.f32 %v2866, 0.0
        %v2996 = vmax.f32 %v2917, 0.0
        %v2997 = vmax.f32 %v2919, 0.0
        %v2998 = vmax.f32 %v2970, 0.0
        %v2999 = vmax.f32 %v2972, 0.0
        %v3000 = vmax.f32 %v2817, 0.0
        %v3001 = vmax.f32 %v2819, 0.0
        %v3002 = vmax.f32 %v2870, 0.0
        %v3003 = vmax.f32 %v2872, 0.0
        %v3004 = vmax.f32 %v2923, 0.0
        %v3005 = vmax.f32 %v2925, 0.0
        %v3006 = vmax.f32 %v2976, 0.0
        %v3007 = vmax.f32 %v2978, 0.0
        %v3008 = vmax.f32 %v2821, 0.0
        %v3009 = vmax.f32 %v2823, 0.0
        %v3010 = vmax.f32 %v2874, 0.0
        %v3011 = vmax.f32 %v2876, 0.0
        %v3012 = vmax.f32 %v2927, 0.0
        %v3013 = vmax.f32 %v2929, 0.0
        %v3014 = vmax.f32 %v2980, 0.0
        %v3015 = vmax.f32 %v2982, 0.0
        %v3016 = vpack.c.bf16 %v2992, %v2984
        %v3017 = vpack.c.bf16 %v2993, %v2985
        %v3018 = vpack.c.bf16 %v2994, %v2986
        %v3019 = vpack.c.bf16 %v2995, %v2987
        %v3020 = vpack.c.bf16 %v2996, %v2988
        %v3021 = vpack.c.bf16 %v2997, %v2989
        %v3022 = vpack.c.bf16 %v2998, %v2990
        %v3023 = vpack.c.bf16 %v2999, %v2991
        %v3024 = vpack.c.bf16 %v3008, %v3000
        %v3025 = vpack.c.bf16 %v3009, %v3001
        %v3026 = vpack.c.bf16 %v3010, %v3002
        %v3027 = vpack.c.bf16 %v3011, %v3003
        %v3028 = vpack.c.bf16 %v3012, %v3004
        %v3029 = vpack.c.bf16 %v3013, %v3005
        %v3030 = vpack.c.bf16 %v3014, %v3006
        %v3031 = vpack.c.bf16 %v3015, %v3007
        %s3032 = scalar_lea.vmem %s2, 160
        %v3033 = vld [vmem:[%s3032] sm:$0xff]
        %v3034 = vld [vmem:[%s3032 + $0x8] sm:$0xff]
        %v3035 = vld [vmem:[%s3032 + $0x10] sm:$0xff]
        %v3036 = vld [vmem:[%s3032 + $0x18] sm:$0xff]
        %v3037 = vpack.c.bf16 %v3034, %v3033
        %v3038 = vpack.c.bf16 %v3036, %v3035
        %s3039 = scalar_lea.vmem %s5, 224
        %v3040 = vld [vmem:[%s3039] sm:$0xff]
        %v3041 = vld [vmem:[%s3039 + $0x8] sm:$0xff]
        %v3042 = vld [vmem:[%s3039 + $0x10] sm:$0xff]
        %v3043 = vld [vmem:[%s3039 + $0x18] sm:$0xff]
        %3045 = vset.pattern.permute.xlu0 0
        %3046 = vperm.xlu0 %3045, %v3040
        %v3047 = vpop.permute.xlu0 %3046
        %3050 = vset.pattern.permute.xlu0 0
        %3051 = vperm.xlu0 %3050, %v3041
        %v3052 = vpop.permute.xlu0 %3051
        %3055 = vset.pattern.permute.xlu0 0
        %3056 = vperm.xlu0 %3055, %v3042
        %v3057 = vpop.permute.xlu0 %3056
        %3060 = vset.pattern.permute.xlu0 0
        %3061 = vperm.xlu0 %3060, %v3043
        %v3062 = vpop.permute.xlu0 %3061
        %v3065 = vsel %vm1020, %v3037, 0
        %v3068 = vsel %vm1020, %v3038, 0
        %3070 = vmatprep.subr.bf16.mxu0 0
        %3071 = vmatpush1.bf16.msra.mxu0 0
        %3072 = vmatprep.subr.bf16.mxu0 0
        %3073 = vmatpush1.bf16.msra.mxu0 0
        %3074 = vmatprep.subr.bf16.mxu0 0
        %3075 = vmatpush1.bf16.msra.mxu0 0
        %3076 = vmatprep.subr.bf16.mxu0 0
        %3077 = vmatpush1.bf16.msra.mxu0 0
        %3078 = vmatprep.subr.bf16.mxu0 0
        %3079 = vmatpush1.bf16.msra.mxu0 0
        %3080 = vmatprep.subr.bf16.mxu0 0
        %3081 = vmatpush1.bf16.msra.mxu0 0
        %3082 = vmatprep.subr.bf16.mxu0 %v3025
        %3083 = vmatpush1.bf16.msra.mxu0 %v3024
        %3084 = vmatprep.subr.bf16.mxu0 %v3017
        %3085 = vmatpush1.bf16.msra.mxu0 %v3016
        %3086 = vmatprep.subr.bf16.mxu0 0
        %3087 = vmatpush2.bf16.msra.mxu0 0
        %3088 = vmatprep.subr.bf16.mxu0 0
        %3089 = vmatpush2.bf16.msra.mxu0 0
        %3090 = vmatprep.subr.bf16.mxu0 0
        %3091 = vmatpush2.bf16.msra.mxu0 0
        %3092 = vmatprep.subr.bf16.mxu0 0
        %3093 = vmatpush2.bf16.msra.mxu0 0
        %3094 = vmatprep.subr.bf16.mxu0 0
        %3095 = vmatpush2.bf16.msra.mxu0 0
        %3096 = vmatprep.subr.bf16.mxu0 0
        %3097 = vmatpush2.bf16.msra.mxu0 0
        %3098 = vmatprep.subr.bf16.mxu0 0
        %3099 = vmatpush2.bf16.msra.mxu0 0
        %3100 = vmatprep.subr.bf16.mxu0 0
        %3101 = vmatpush2.bf16.msra.mxu0 0
        %3102 = vmatprep.mubr.bf16.mxu0 0
        %3103 = vmatmul.mubr.bf16.gmra.mxu0 %v3065
        %v3104 = vpop.f32.mrf.mxu0
        %v3105 = vadd.f32 %v3047, %v3104
        %v3106 = vpop.f32.mrf.mxu0
        %v3107 = vadd.f32 %v3047, %v3106
        %v3108 = vpop.f32.mrf.mxu0
        %v3109 = vadd.f32 %v3052, %v3108
        %v3110 = vpop.f32.mrf.mxu0
        %v3111 = vadd.f32 %v3052, %v3110
        %3112 = vmatprep.mubr.bf16.mxu0 0
        %3113 = vmatmul.mubr.bf16.gmra.mxu0 %v3068
        %v3114 = vpop.f32.mrf.mxu0
        %v3115 = vadd.f32 %v3057, %v3114
        %v3116 = vpop.f32.mrf.mxu0
        %v3117 = vadd.f32 %v3057, %v3116
        %v3118 = vpop.f32.mrf.mxu0
        %v3119 = vadd.f32 %v3062, %v3118
        %v3120 = vpop.f32.mrf.mxu0
        %v3121 = vadd.f32 %v3062, %v3120
        %3122 = vdwg.mxu0
        %3123 = vmatprep.subr.bf16.mxu0 0
        %3124 = vmatpush1.bf16.msra.mxu0 0
        %3125 = vmatprep.subr.bf16.mxu0 0
        %3126 = vmatpush1.bf16.msra.mxu0 0
        %3127 = vmatprep.subr.bf16.mxu0 0
        %3128 = vmatpush1.bf16.msra.mxu0 0
        %3129 = vmatprep.subr.bf16.mxu0 0
        %3130 = vmatpush1.bf16.msra.mxu0 0
        %3131 = vmatprep.subr.bf16.mxu0 0
        %3132 = vmatpush1.bf16.msra.mxu0 0
        %3133 = vmatprep.subr.bf16.mxu0 0
        %3134 = vmatpush1.bf16.msra.mxu0 0
        %3135 = vmatprep.subr.bf16.mxu0 %v3027
        %3136 = vmatpush1.bf16.msra.mxu0 %v3026
        %3137 = vmatprep.subr.bf16.mxu0 %v3019
        %3138 = vmatpush1.bf16.msra.mxu0 %v3018
        %3139 = vmatprep.subr.bf16.mxu0 0
        %3140 = vmatpush2.bf16.msra.mxu0 0
        %3141 = vmatprep.subr.bf16.mxu0 0
        %3142 = vmatpush2.bf16.msra.mxu0 0
        %3143 = vmatprep.subr.bf16.mxu0 0
        %3144 = vmatpush2.bf16.msra.mxu0 0
        %3145 = vmatprep.subr.bf16.mxu0 0
        %3146 = vmatpush2.bf16.msra.mxu0 0
        %3147 = vmatprep.subr.bf16.mxu0 0
        %3148 = vmatpush2.bf16.msra.mxu0 0
        %3149 = vmatprep.subr.bf16.mxu0 0
        %3150 = vmatpush2.bf16.msra.mxu0 0
        %3151 = vmatprep.subr.bf16.mxu0 0
        %3152 = vmatpush2.bf16.msra.mxu0 0
        %3153 = vmatprep.subr.bf16.mxu0 0
        %3154 = vmatpush2.bf16.msra.mxu0 0
        %3155 = vmatprep.mubr.bf16.mxu0 0
        %3156 = vmatmul.mubr.bf16.gmra.mxu0 %v3065
        %v3157 = vpop.f32.mrf.mxu0
        %v3158 = vadd.f32 %v3047, %v3157
        %v3159 = vpop.f32.mrf.mxu0
        %v3160 = vadd.f32 %v3047, %v3159
        %v3161 = vpop.f32.mrf.mxu0
        %v3162 = vadd.f32 %v3052, %v3161
        %v3163 = vpop.f32.mrf.mxu0
        %v3164 = vadd.f32 %v3052, %v3163
        %3165 = vmatprep.mubr.bf16.mxu0 0
        %3166 = vmatmul.mubr.bf16.gmra.mxu0 %v3068
        %v3167 = vpop.f32.mrf.mxu0
        %v3168 = vadd.f32 %v3057, %v3167
        %v3169 = vpop.f32.mrf.mxu0
        %v3170 = vadd.f32 %v3057, %v3169
        %v3171 = vpop.f32.mrf.mxu0
        %v3172 = vadd.f32 %v3062, %v3171
        %v3173 = vpop.f32.mrf.mxu0
        %v3174 = vadd.f32 %v3062, %v3173
        %3175 = vdwg.mxu0
        %3176 = vmatprep.subr.bf16.mxu0 0
        %3177 = vmatpush1.bf16.msra.mxu0 0
        %3178 = vmatprep.subr.bf16.mxu0 0
        %3179 = vmatpush1.bf16.msra.mxu0 0
        %3180 = vmatprep.subr.bf16.mxu0 0
        %3181 = vmatpush1.bf16.msra.mxu0 0
        %3182 = vmatprep.subr.bf16.mxu0 0
        %3183 = vmatpush1.bf16.msra.mxu0 0
        %3184 = vmatprep.subr.bf16.mxu0 0
        %3185 = vmatpush1.bf16.msra.mxu0 0
        %3186 = vmatprep.subr.bf16.mxu0 0
        %3187 = vmatpush1.bf16.msra.mxu0 0
        %3188 = vmatprep.subr.bf16.mxu0 %v3029
        %3189 = vmatpush1.bf16.msra.mxu0 %v3028
        %3190 = vmatprep.subr.bf16.mxu0 %v3021
        %3191 = vmatpush1.bf16.msra.mxu0 %v3020
        %3192 = vmatprep.subr.bf16.mxu0 0
        %3193 = vmatpush2.bf16.msra.mxu0 0
        %3194 = vmatprep.subr.bf16.mxu0 0
        %3195 = vmatpush2.bf16.msra.mxu0 0
        %3196 = vmatprep.subr.bf16.mxu0 0
        %3197 = vmatpush2.bf16.msra.mxu0 0
        %3198 = vmatprep.subr.bf16.mxu0 0
        %3199 = vmatpush2.bf16.msra.mxu0 0
        %3200 = vmatprep.subr.bf16.mxu0 0
        %3201 = vmatpush2.bf16.msra.mxu0 0
        %3202 = vmatprep.subr.bf16.mxu0 0
        %3203 = vmatpush2.bf16.msra.mxu0 0
        %3204 = vmatprep.subr.bf16.mxu0 0
        %3205 = vmatpush2.bf16.msra.mxu0 0
        %3206 = vmatprep.subr.bf16.mxu0 0
        %3207 = vmatpush2.bf16.msra.mxu0 0
        %3208 = vmatprep.mubr.bf16.mxu0 0
        %3209 = vmatmul.mubr.bf16.gmra.mxu0 %v3065
        %v3210 = vpop.f32.mrf.mxu0
        %v3211 = vadd.f32 %v3047, %v3210
        %v3212 = vpop.f32.mrf.mxu0
        %v3213 = vadd.f32 %v3047, %v3212
        %v3214 = vpop.f32.mrf.mxu0
        %v3215 = vadd.f32 %v3052, %v3214
        %v3216 = vpop.f32.mrf.mxu0
        %v3217 = vadd.f32 %v3052, %v3216
        %3218 = vmatprep.mubr.bf16.mxu0 0
        %3219 = vmatmul.mubr.bf16.gmra.mxu0 %v3068
        %v3220 = vpop.f32.mrf.mxu0
        %v3221 = vadd.f32 %v3057, %v3220
        %v3222 = vpop.f32.mrf.mxu0
        %v3223 = vadd.f32 %v3057, %v3222
        %v3224 = vpop.f32.mrf.mxu0
        %v3225 = vadd.f32 %v3062, %v3224
        %v3226 = vpop.f32.mrf.mxu0
        %v3227 = vadd.f32 %v3062, %v3226
        %3228 = vdwg.mxu0
        %3229 = vmatprep.subr.bf16.mxu0 0
        %3230 = vmatpush1.bf16.msra.mxu0 0
        %3231 = vmatprep.subr.bf16.mxu0 0
        %3232 = vmatpush1.bf16.msra.mxu0 0
        %3233 = vmatprep.subr.bf16.mxu0 0
        %3234 = vmatpush1.bf16.msra.mxu0 0
        %3235 = vmatprep.subr.bf16.mxu0 0
        %3236 = vmatpush1.bf16.msra.mxu0 0
        %3237 = vmatprep.subr.bf16.mxu0 0
        %3238 = vmatpush1.bf16.msra.mxu0 0
        %3239 = vmatprep.subr.bf16.mxu0 0
        %3240 = vmatpush1.bf16.msra.mxu0 0
        %3241 = vmatprep.subr.bf16.mxu0 %v3031
        %3242 = vmatpush1.bf16.msra.mxu0 %v3030
        %3243 = vmatprep.subr.bf16.mxu0 %v3023
        %3244 = vmatpush1.bf16.msra.mxu0 %v3022
        %3245 = vmatprep.subr.bf16.mxu0 0
        %3246 = vmatpush2.bf16.msra.mxu0 0
        %3247 = vmatprep.subr.bf16.mxu0 0
        %3248 = vmatpush2.bf16.msra.mxu0 0
        %3249 = vmatprep.subr.bf16.mxu0 0
        %3250 = vmatpush2.bf16.msra.mxu0 0
        %3251 = vmatprep.subr.bf16.mxu0 0
        %3252 = vmatpush2.bf16.msra.mxu0 0
        %3253 = vmatprep.subr.bf16.mxu0 0
        %3254 = vmatpush2.bf16.msra.mxu0 0
        %3255 = vmatprep.subr.bf16.mxu0 0
        %3256 = vmatpush2.bf16.msra.mxu0 0
        %3257 = vmatprep.subr.bf16.mxu0 0
        %3258 = vmatpush2.bf16.msra.mxu0 0
        %3259 = vmatprep.subr.bf16.mxu0 0
        %3260 = vmatpush2.bf16.msra.mxu0 0
        %3261 = vmatprep.mubr.bf16.mxu0 0
        %3262 = vmatmul.mubr.bf16.gmra.mxu0 %v3065
        %v3263 = vpop.f32.mrf.mxu0
        %v3264 = vadd.f32 %v3047, %v3263
        %v3265 = vpop.f32.mrf.mxu0
        %v3266 = vadd.f32 %v3047, %v3265
        %v3267 = vpop.f32.mrf.mxu0
        %v3268 = vadd.f32 %v3052, %v3267
        %v3269 = vpop.f32.mrf.mxu0
        %v3270 = vadd.f32 %v3052, %v3269
        %3271 = vmatprep.mubr.bf16.mxu0 0
        %3272 = vmatmul.mubr.bf16.gmra.mxu0 %v3068
        %v3273 = vpop.f32.mrf.mxu0
        %v3274 = vadd.f32 %v3057, %v3273
        %v3275 = vpop.f32.mrf.mxu0
        %v3276 = vadd.f32 %v3057, %v3275
        %v3277 = vpop.f32.mrf.mxu0
        %v3278 = vadd.f32 %v3062, %v3277
        %v3279 = vpop.f32.mrf.mxu0
        %v3280 = vadd.f32 %v3062, %v3279
        %3281 = vdwg.mxu0
        %v3282 = vmax.f32 %v3105, 0.0
        %v3283 = vmax.f32 %v3107, 0.0
        %v3284 = vmax.f32 %v3158, 0.0
        %v3285 = vmax.f32 %v3160, 0.0
        %v3286 = vmax.f32 %v3211, 0.0
        %v3287 = vmax.f32 %v3213, 0.0
        %v3288 = vmax.f32 %v3264, 0.0
        %v3289 = vmax.f32 %v3266, 0.0
        %v3290 = vmax.f32 %v3109, 0.0
        %v3291 = vmax.f32 %v3111, 0.0
        %v3292 = vmax.f32 %v3162, 0.0
        %v3293 = vmax.f32 %v3164, 0.0
        %v3294 = vmax.f32 %v3215, 0.0
        %v3295 = vmax.f32 %v3217, 0.0
        %v3296 = vmax.f32 %v3268, 0.0
        %v3297 = vmax.f32 %v3270, 0.0
        %v3298 = vmax.f32 %v3115, 0.0
        %v3299 = vmax.f32 %v3117, 0.0
        %v3300 = vmax.f32 %v3168, 0.0
        %v3301 = vmax.f32 %v3170, 0.0
        %v3302 = vmax.f32 %v3221, 0.0
        %v3303 = vmax.f32 %v3223, 0.0
        %v3304 = vmax.f32 %v3274, 0.0
        %v3305 = vmax.f32 %v3276, 0.0
        %v3306 = vmax.f32 %v3119, 0.0
        %v3307 = vmax.f32 %v3121, 0.0
        %v3308 = vmax.f32 %v3172, 0.0
        %v3309 = vmax.f32 %v3174, 0.0
        %v3310 = vmax.f32 %v3225, 0.0
        %v3311 = vmax.f32 %v3227, 0.0
        %v3312 = vmax.f32 %v3278, 0.0
        %v3313 = vmax.f32 %v3280, 0.0
        %v3314 = vpack.c.bf16 %v3290, %v3282
        %v3315 = vpack.c.bf16 %v3291, %v3283
        %v3316 = vpack.c.bf16 %v3292, %v3284
        %v3317 = vpack.c.bf16 %v3293, %v3285
        %v3318 = vpack.c.bf16 %v3294, %v3286
        %v3319 = vpack.c.bf16 %v3295, %v3287
        %v3320 = vpack.c.bf16 %v3296, %v3288
        %v3321 = vpack.c.bf16 %v3297, %v3289
        %v3322 = vpack.c.bf16 %v3306, %v3298
        %v3323 = vpack.c.bf16 %v3307, %v3299
        %v3324 = vpack.c.bf16 %v3308, %v3300
        %v3325 = vpack.c.bf16 %v3309, %v3301
        %v3326 = vpack.c.bf16 %v3310, %v3302
        %v3327 = vpack.c.bf16 %v3311, %v3303
        %v3328 = vpack.c.bf16 %v3312, %v3304
        %v3329 = vpack.c.bf16 %v3313, %v3305
        %v3330 = vld [vmem:[%s6] sm:$0x7]
        %v3331 = vpack.c.bf16 %v3330, %v3330
        %v3332 = vld [vmem:[%s7] sm:$0x7]
        %3334 = vset.pattern.permute.xlu0 0
        %3335 = vperm.xlu0 %3334, %v3332
        %v3336 = vpop.permute.xlu0 %3335
        %v3339 = vsel %vm1020, %v3331, 0
        %3341 = vmatprep.subr.bf16.mxu0 0
        %3342 = vmatpush1.bf16.msra.mxu0 0
        %3343 = vmatprep.subr.bf16.mxu0 0
        %3344 = vmatpush1.bf16.msra.mxu0 0
        %3345 = vmatprep.subr.bf16.mxu0 0
        %3346 = vmatpush1.bf16.msra.mxu0 0
        %3347 = vmatprep.subr.bf16.mxu0 0
        %3348 = vmatpush1.bf16.msra.mxu0 0
        %3349 = vmatprep.subr.bf16.mxu0 0
        %3350 = vmatpush1.bf16.msra.mxu0 0
        %3351 = vmatprep.subr.bf16.mxu0 0
        %3352 = vmatpush1.bf16.msra.mxu0 0
        %3353 = vmatprep.subr.bf16.mxu0 %v3323
        %3354 = vmatpush1.bf16.msra.mxu0 %v3322
        %3355 = vmatprep.subr.bf16.mxu0 %v3315
        %3356 = vmatpush1.bf16.msra.mxu0 %v3314
        %3357 = vmatprep.subr.bf16.mxu0 0
        %3358 = vmatpush2.bf16.msra.mxu0 0
        %3359 = vmatprep.subr.bf16.mxu0 0
        %3360 = vmatpush2.bf16.msra.mxu0 0
        %3361 = vmatprep.subr.bf16.mxu0 0
        %3362 = vmatpush2.bf16.msra.mxu0 0
        %3363 = vmatprep.subr.bf16.mxu0 0
        %3364 = vmatpush2.bf16.msra.mxu0 0
        %3365 = vmatprep.subr.bf16.mxu0 0
        %3366 = vmatpush2.bf16.msra.mxu0 0
        %3367 = vmatprep.subr.bf16.mxu0 0
        %3368 = vmatpush2.bf16.msra.mxu0 0
        %3369 = vmatprep.subr.bf16.mxu0 0
        %3370 = vmatpush2.bf16.msra.mxu0 0
        %3371 = vmatprep.subr.bf16.mxu0 0
        %3372 = vmatpush2.bf16.msra.mxu0 0
        %3373 = vmatprep.mubr.bf16.mxu0 0
        %3374 = vmatmul.mubr.bf16.gmra.mxu0 %v3339
        %v3375 = vpop.f32.mrf.mxu0
        %v3376 = vadd.f32 %v3336, %v3375
        %v3377 = vpop.f32.mrf.mxu0
        %v3378 = vadd.f32 %v3336, %v3377
        %v3379 = vpop.f32.mrf.mxu0
        %v3380 = vpop.f32.mrf.mxu0
        %3381 = vdwg.mxu0
        %3382 = vmatprep.subr.bf16.mxu0 0
        %3383 = vmatpush1.bf16.msra.mxu0 0
        %3384 = vmatprep.subr.bf16.mxu0 0
        %3385 = vmatpush1.bf16.msra.mxu0 0
        %3386 = vmatprep.subr.bf16.mxu0 0
        %3387 = vmatpush1.bf16.msra.mxu0 0
        %3388 = vmatprep.subr.bf16.mxu0 0
        %3389 = vmatpush1.bf16.msra.mxu0 0
        %3390 = vmatprep.subr.bf16.mxu0 0
        %3391 = vmatpush1.bf16.msra.mxu0 0
        %3392 = vmatprep.subr.bf16.mxu0 0
        %3393 = vmatpush1.bf16.msra.mxu0 0
        %3394 = vmatprep.subr.bf16.mxu0 %v3325
        %3395 = vmatpush1.bf16.msra.mxu0 %v3324
        %3396 = vmatprep.subr.bf16.mxu0 %v3317
        %3397 = vmatpush1.bf16.msra.mxu0 %v3316
        %3398 = vmatprep.subr.bf16.mxu0 0
        %3399 = vmatpush2.bf16.msra.mxu0 0
        %3400 = vmatprep.subr.bf16.mxu0 0
        %3401 = vmatpush2.bf16.msra.mxu0 0
        %3402 = vmatprep.subr.bf16.mxu0 0
        %3403 = vmatpush2.bf16.msra.mxu0 0
        %3404 = vmatprep.subr.bf16.mxu0 0
        %3405 = vmatpush2.bf16.msra.mxu0 0
        %3406 = vmatprep.subr.bf16.mxu0 0
        %3407 = vmatpush2.bf16.msra.mxu0 0
        %3408 = vmatprep.subr.bf16.mxu0 0
        %3409 = vmatpush2.bf16.msra.mxu0 0
        %3410 = vmatprep.subr.bf16.mxu0 0
        %3411 = vmatpush2.bf16.msra.mxu0 0
        %3412 = vmatprep.subr.bf16.mxu0 0
        %3413 = vmatpush2.bf16.msra.mxu0 0
        %3414 = vmatprep.mubr.bf16.mxu0 0
        %3415 = vmatmul.mubr.bf16.gmra.mxu0 %v3339
        %v3416 = vpop.f32.mrf.mxu0
        %v3417 = vadd.f32 %v3336, %v3416
        %v3418 = vpop.f32.mrf.mxu0
        %v3419 = vadd.f32 %v3336, %v3418
        %v3420 = vpop.f32.mrf.mxu0
        %v3421 = vpop.f32.mrf.mxu0
        %3422 = vdwg.mxu0
        %3423 = vmatprep.subr.bf16.mxu0 0
        %3424 = vmatpush1.bf16.msra.mxu0 0
        %3425 = vmatprep.subr.bf16.mxu0 0
        %3426 = vmatpush1.bf16.msra.mxu0 0
        %3427 = vmatprep.subr.bf16.mxu0 0
        %3428 = vmatpush1.bf16.msra.mxu0 0
        %3429 = vmatprep.subr.bf16.mxu0 0
        %3430 = vmatpush1.bf16.msra.mxu0 0
        %3431 = vmatprep.subr.bf16.mxu0 0
        %3432 = vmatpush1.bf16.msra.mxu0 0
        %3433 = vmatprep.subr.bf16.mxu0 0
        %3434 = vmatpush1.bf16.msra.mxu0 0
        %3435 = vmatprep.subr.bf16.mxu0 %v3327
        %3436 = vmatpush1.bf16.msra.mxu0 %v3326
        %3437 = vmatprep.subr.bf16.mxu0 %v3319
        %3438 = vmatpush1.bf16.msra.mxu0 %v3318
        %3439 = vmatprep.subr.bf16.mxu0 0
        %3440 = vmatpush2.bf16.msra.mxu0 0
        %3441 = vmatprep.subr.bf16.mxu0 0
        %3442 = vmatpush2.bf16.msra.mxu0 0
        %3443 = vmatprep.subr.bf16.mxu0 0
        %3444 = vmatpush2.bf16.msra.mxu0 0
        %3445 = vmatprep.subr.bf16.mxu0 0
        %3446 = vmatpush2.bf16.msra.mxu0 0
        %3447 = vmatprep.subr.bf16.mxu0 0
        %3448 = vmatpush2.bf16.msra.mxu0 0
        %3449 = vmatprep.subr.bf16.mxu0 0
        %3450 = vmatpush2.bf16.msra.mxu0 0
        %3451 = vmatprep.subr.bf16.mxu0 0
        %3452 = vmatpush2.bf16.msra.mxu0 0
        %3453 = vmatprep.subr.bf16.mxu0 0
        %3454 = vmatpush2.bf16.msra.mxu0 0
        %3455 = vmatprep.mubr.bf16.mxu0 0
        %3456 = vmatmul.mubr.bf16.gmra.mxu0 %v3339
        %v3457 = vpop.f32.mrf.mxu0
        %v3458 = vadd.f32 %v3336, %v3457
        %v3459 = vpop.f32.mrf.mxu0
        %v3460 = vadd.f32 %v3336, %v3459
        %v3461 = vpop.f32.mrf.mxu0
        %v3462 = vpop.f32.mrf.mxu0
        %3463 = vdwg.mxu0
        %3464 = vmatprep.subr.bf16.mxu0 0
        %3465 = vmatpush1.bf16.msra.mxu0 0
        %3466 = vmatprep.subr.bf16.mxu0 0
        %3467 = vmatpush1.bf16.msra.mxu0 0
        %3468 = vmatprep.subr.bf16.mxu0 0
        %3469 = vmatpush1.bf16.msra.mxu0 0
        %3470 = vmatprep.subr.bf16.mxu0 0
        %3471 = vmatpush1.bf16.msra.mxu0 0
        %3472 = vmatprep.subr.bf16.mxu0 0
        %3473 = vmatpush1.bf16.msra.mxu0 0
        %3474 = vmatprep.subr.bf16.mxu0 0
        %3475 = vmatpush1.bf16.msra.mxu0 0
        %3476 = vmatprep.subr.bf16.mxu0 %v3329
        %3477 = vmatpush1.bf16.msra.mxu0 %v3328
        %3478 = vmatprep.subr.bf16.mxu0 %v3321
        %3479 = vmatpush1.bf16.msra.mxu0 %v3320
        %3480 = vmatprep.subr.bf16.mxu0 0
        %3481 = vmatpush2.bf16.msra.mxu0 0
        %3482 = vmatprep.subr.bf16.mxu0 0
        %3483 = vmatpush2.bf16.msra.mxu0 0
        %3484 = vmatprep.subr.bf16.mxu0 0
        %3485 = vmatpush2.bf16.msra.mxu0 0
        %3486 = vmatprep.subr.bf16.mxu0 0
        %3487 = vmatpush2.bf16.msra.mxu0 0
        %3488 = vmatprep.subr.bf16.mxu0 0
        %3489 = vmatpush2.bf16.msra.mxu0 0
        %3490 = vmatprep.subr.bf16.mxu0 0
        %3491 = vmatpush2.bf16.msra.mxu0 0
        %3492 = vmatprep.subr.bf16.mxu0 0
        %3493 = vmatpush2.bf16.msra.mxu0 0
        %3494 = vmatprep.subr.bf16.mxu0 0
        %3495 = vmatpush2.bf16.msra.mxu0 0
        %3496 = vmatprep.mubr.bf16.mxu0 0
        %3497 = vmatmul.mubr.bf16.gmra.mxu0 %v3339
        %v3498 = vpop.f32.mrf.mxu0
        %v3499 = vadd.f32 %v3336, %v3498
        %v3500 = vpop.f32.mrf.mxu0
        %v3501 = vadd.f32 %v3336, %v3500
        %v3502 = vpop.f32.mrf.mxu0
        %v3503 = vpop.f32.mrf.mxu0
        %3504 = vdwg.mxu0
        %v3505 = vsub.f32 0.0, %v3376
        %v3506 = vsub.f32 0.0, %v3378
        %v3507 = vsub.f32 0.0, %v3417
        %v3508 = vsub.f32 0.0, %v3419
        %v3509 = vsub.f32 0.0, %v3458
        %v3510 = vsub.f32 0.0, %v3460
        %v3511 = vsub.f32 0.0, %v3499
        %v3512 = vsub.f32 0.0, %v3501
        %v3513 = vmul.f32 %v3505, 1.442695
        %v3514 = vpow.pop %v3513
        %v3515 = vmul.f32 %v3506, 1.442695
        %v3516 = vpow.pop %v3515
        %v3517 = vmul.f32 %v3507, 1.442695
        %v3518 = vpow.pop %v3517
        %v3519 = vmul.f32 %v3508, 1.442695
        %v3520 = vpow.pop %v3519
        %v3521 = vmul.f32 %v3509, 1.442695
        %v3522 = vpow.pop %v3521
        %v3523 = vmul.f32 %v3510, 1.442695
        %v3524 = vpow.pop %v3523
        %v3525 = vmul.f32 %v3511, 1.442695
        %v3526 = vpow.pop %v3525
        %v3527 = vmul.f32 %v3512, 1.442695
        %v3528 = vpow.pop %v3527
        %v3529 = vadd.f32 %v3514, 1.0
        %v3530 = vadd.f32 %v3516, 1.0
        %v3531 = vadd.f32 %v3518, 1.0
        %v3532 = vadd.f32 %v3520, 1.0
        %v3533 = vadd.f32 %v3522, 1.0
        %v3534 = vadd.f32 %v3524, 1.0
        %v3535 = vadd.f32 %v3526, 1.0
        %v3536 = vadd.f32 %v3528, 1.0
        %v3537 = vrcp.pop %v3529
        %v3538 = vrcp.pop %v3530
        %v3539 = vrcp.pop %v3531
        %v3540 = vrcp.pop %v3532
        %v3541 = vrcp.pop %v3533
        %v3542 = vrcp.pop %v3534
        %v3543 = vrcp.pop %v3535
        %v3544 = vrcp.pop %v3536
        %v3553 = vcombine.low %v3537, %v3538
        %v3554 = vcombine.low %v3539, %v3540
        %v3555 = vcombine.low %v3541, %v3542
        %v3556 = vcombine.low %v3543, %v3544
        %3561 = vst [vmem:[%s299] sm:$0x77] %v3553
        %3562 = vst [vmem:[%s299 + $0x8] sm:$0x77] %v3554
        %3563 = vst [vmem:[%s299 + $0x10] sm:$0x77] %v3555
        %3564 = vst [vmem:[%s299 + $0x18] sm:$0x77] %v3556
        %s3565 = sand.u32 %s203, 1
        %s3566 = scalar_lea.sflag [#allocation3], %s3565
        %s3567 = sand.u32 %s203, 1
        %s3568 = smul.addr %s3567, 32
        %s3569 = scalar_lea.vmem [#allocation2], %s3568
        // Predicated region
        $region53: #{nelf_forward.1} parent=51 // pred_check
          %p3570 = pneg %p213
        $region54: #{nelf_forward.1} parent=51 // pred_check_branch
          %3572 = sbr.rel (%p3570) target = $region56
        $region55: #{nelf_forward.1} parent=51 // pred_region
          %s3573 = smul.u32 8, %s22
          %s3575 = ssub.s32 512, 512
          %3576 = vsyncadd %s3566, %s3575
          %s3577 = smul.addr %s3573, 64
          %s3578 = scalar_lea.hbm %s8, %s3577
          %s3580 = sshll.u32 %s3569, 4
          %s3581 = int_to_ptr.vmem [resolvable:$true] %s3580
          %3583 = dma.vmem_to_hbm [thread:$0]  %s3581, 512, %s3578, %s3566
        $region56: #{nelf_forward.1} parent=51 // pred_fallthru
          _
      $region52: #{nelf_forward.1} parent=5 // pred_fallthru
        _
      %p3584 = scmp.le.s32.totalorder 2, %s17
      // Predicated region
      $region57: #{nelf_forward.1} parent=5 // pred_check
        %p3585 = pneg %p3584
      $region58: #{nelf_forward.1} parent=5 // pred_check_branch
        %3587 = sbr.rel (%p3585) target = $region60
      $region59: #{nelf_forward.1} parent=5 // pred_region
        %s3588 = ssub.s32 %s17, 2
        // Predicated region
        $region61: #{nelf_forward.1} parent=59 // pred_check
          %p3589 = pneg %p219
        $region62: #{nelf_forward.1} parent=59 // pred_check_branch
          %3591 = sbr.rel (%p3589) target = $region64
        $region63: #{nelf_forward.1} parent=59 // pred_region
          %s3592 = sand.u32 %s204, 1
          %s3593 = scalar_lea.sflag [#allocation3], %s3592
          %s3594 = sand.u32 %s204, 1
          %s3595 = smul.addr %s3594, 32
          %s3596 = scalar_lea.vmem [#allocation2], %s3595
          %3597 = dma.done %s3593, 512
        $region64: #{nelf_forward.1} parent=59 // pred_fallthru
          _
      $region60: #{nelf_forward.1} parent=5 // pred_fallthru
        _
    $region6: #{nelf_forward.1} parent=1 // loop_footer
      %s21 = sadd.s32 1, %s17
    $region7: #{nelf_forward.1} parent=1 // loop_footer_branch
      %16 = sbr.rel target = $region3
    $region8: #{nelf_forward.1} parent=1 // loop_exit
      _
    %3598 = vsyncpa [#allocation3], 1
    %s3599 = scalar_lea.sflag [#allocation3], 1
    %3600 = vsyncpa %s3599, 1

</llo_original>
